<compile_context>
chip_gen: v7x
topology: tpu7x:2x2x1
jax: 0.10.0
libtpu: 0.0.40
codegen_flags: <defaults>
</compile_context>

<pallas_src>
import functools

import jax
import jax.numpy as jnp
from jax.experimental import pallas as pl
from jax.experimental.pallas import tpu as pltpu


def _off(P):
    """Lane-aligned offset of the current tile inside the window scratch."""
    return (-(-P // 128)) * 128 if P > 0 else 0


# ---------------------------------------------------------------------------
# Fused kernel: all temporal blocks + mean-over-time + linear classifier
# ---------------------------------------------------------------------------
def _fused_tcn_kernel(*refs, blocks, tT, T_real, has_pad, inv_T, cdt):
    it = iter(refs)
    x_ref = next(it)
    wrefs = []
    for (_Cin, _Cout, _K, _d, down) in blocks:
        w1 = next(it); b1 = next(it); w2 = next(it); b2 = next(it)
        wd = next(it) if down else None
        bd = next(it) if down else None
        wrefs.append((w1, b1, w2, b2, wd, bd))
    wc_ref = next(it)
    bc_ref = next(it)
    o_ref = next(it)
    wins = [(next(it), next(it)) for _ in blocks]
    acc_ref = next(it)

    j = pl.program_id(1)
    h = x_ref[0].astype(jnp.float32)                       # (Cin0, tT)

    for (Cin, Cout, K, d, _down), (w1, b1, w2, b2, wd, bd), (xw, ow) in zip(
            blocks, wrefs, wins):
        P = (K - 1) * d            # causal context of one conv
        OFF = _off(P)              # lane-aligned start of the current tile

        if P > 0:
            @pl.when(j == 0)
            def _init(xw=xw, ow=ow, P=P, OFF=OFF, Cin=Cin, Cout=Cout):
                # causal zero padding for the first time tile (both convs)
                xw[:, OFF - P:OFF] = jnp.zeros((Cin, P), cdt)
                ow[:, OFF - P:OFF] = jnp.zeros((Cout, P), cdt)

            @pl.when(j > 0)
            def _carry(xw=xw, ow=ow, P=P, OFF=OFF):
                # halo = last P columns of the previous tile, carried in VMEM
                xw[:, OFF - P:OFF] = xw[:, OFF + tT - P:OFF + tT]
                ow[:, OFF - P:OFF] = ow[:, OFF + tT - P:OFF + tT]

        hc = h.astype(cdt)
        xw[:, OFF:] = hc                                   # lane-aligned store

        # conv1 + ReLU: K dilated taps as K accumulated MXU dots on window views
        z = None
        for k in range(K):
            wk = w1[:, k * Cin:(k + 1) * Cin]              # (Cout, Cin)
            xs = xw[:, OFF - P + k * d: OFF - P + k * d + tT]
            t = jnp.dot(wk, xs, preferred_element_type=jnp.float32)
            z = t if z is None else z + t
        out1 = jnp.maximum(z + b1[...], 0.0)               # (Cout, tT) f32

        ow[:, OFF:] = out1.astype(cdt)

        # conv2: its causal zero padding is exactly the (zero / carried) halo
        # of conv1's OUTPUT, so no pre-t0 masking is needed on any tile.
        z = None
        for k in range(K):
            wk = w2[:, k * Cout:(k + 1) * Cout]            # (Cout, Cout)
            xs = ow[:, OFF - P + k * d: OFF - P + k * d + tT]
            t = jnp.dot(wk, xs, preferred_element_type=jnp.float32)
            z = t if z is None else z + t
        out2 = z + b2[...]

        # residual (identity or fused 1x1 conv) + final ReLU
        if wd is None:
            res = h
        else:
            res = jnp.dot(wd[...], hc, preferred_element_type=jnp.float32) + bd[...]
        h = jnp.maximum(out2 + res, 0.0)                   # (Cout, tT) f32

    # ---- fused mean-over-time + linear classifier head ----------------------
    @pl.when(j == 0)
    def _acc_init():
        acc_ref[...] = jnp.zeros_like(acc_ref)

    if has_pad:
        col = jax.lax.broadcasted_iota(jnp.int32, h.shape, 1) + j * tT
        h_sum = jnp.where(col < T_real, h, 0.0)            # ignore padded cols
    else:
        h_sum = h
    acc_ref[...] += jnp.sum(h_sum, axis=1, keepdims=True)  # (Clast, 1)

    @pl.when(j == pl.num_programs(1) - 1)
    def _finalize():
        m = acc_ref[...] * inv_T                           # mean over time
        logits = jnp.dot(wc_ref[...], m,
                         preferred_element_type=jnp.float32) + bc_ref[...]
        o_ref[0] = logits.astype(o_ref.dtype)              # (nc, 1)


# ---------------------------------------------------------------------------
# Wrapper
# ---------------------------------------------------------------------------
def audio_tcn_forward(x, params, *, time_tile=4096, compute_dtype=jnp.float32):
    """x: (N, C_in, T) NCT layout (time on lanes).  Returns (N, num_classes)."""
    N, Cin0, T = x.shape
    blocks_p = params["blocks"]
    wc, bc = params["wc"], params["bc"]
    nc, Clast = wc.shape

    # Time tiling: one full-length tile if it fits, otherwise lane-aligned
    # tiles via cdiv + zero padding (padded columns masked out of the mean).
    if T <= time_tile:
        tT, nT = T, 1
    else:
        tT = max(128, (time_tile // 128) * 128)
        nT = -(-T // tT)
    Tp = nT * tT
    has_pad = Tp != T
    xp = jnp.pad(x, ((0, 0), (0, 0), (0, Tp - T))) if has_pad else x

    cdt = compute_dtype
    cfg = []
    args = [xp]
    in_specs = [pl.BlockSpec((1, Cin0, tT), lambda n, j: (n, 0, j))]
    scratch = []
    c_in = Cin0
    for i, blk in enumerate(blocks_p):
        c_out, _, K = blk["w1"].shape
        d = 2 ** i
        P = (K - 1) * d
        down = blk["wd"] is not None
        if nT > 1:
            assert tT >= P, "time tile must cover one conv's causal context"
        cfg.append((c_in, c_out, K, d, down))

        # Per-tap weights flattened to (Cout, K*Cin): tap k lives at cols
        # [k*Cin, (k+1)*Cin) and is statically sliced inside the kernel.
        w1f = jnp.transpose(blk["w1"], (0, 2, 1)).reshape(c_out, K * c_in).astype(cdt)
        w2f = jnp.transpose(blk["w2"], (0, 2, 1)).reshape(c_out, K * c_out).astype(cdt)
        args += [w1f, blk["b1"].reshape(c_out, 1).astype(jnp.float32),
                 w2f, blk["b2"].reshape(c_out, 1).astype(jnp.float32)]
        in_specs += [pl.BlockSpec((c_out, K * c_in), lambda n, j: (0, 0)),
                     pl.BlockSpec((c_out, 1), lambda n, j: (0, 0)),
                     pl.BlockSpec((c_out, K * c_out), lambda n, j: (0, 0)),
                     pl.BlockSpec((c_out, 1), lambda n, j: (0, 0))]
        if down:
            args += [blk["wd"].reshape(c_out, c_in).astype(cdt),
                     blk["bd"].reshape(c_out, 1).astype(jnp.float32)]
            in_specs += [pl.BlockSpec((c_out, c_in), lambda n, j: (0, 0)),
                         pl.BlockSpec((c_out, 1), lambda n, j: (0, 0))]

        OFF = _off(P)
        # Per-block conv-input and conv1-output windows (halo carried in-place).
        scratch += [pltpu.VMEM((c_in, OFF + tT), cdt),
                    pltpu.VMEM((c_out, OFF + tT), cdt)]
        c_in = c_out

    args += [wc.astype(jnp.float32), bc.reshape(nc, 1).astype(jnp.float32)]
    in_specs += [pl.BlockSpec((nc, Clast), lambda n, j: (0, 0)),
                 pl.BlockSpec((nc, 1), lambda n, j: (0, 0))]
    scratch += [pltpu.VMEM((Clast, 1), jnp.float32)]        # running time-sum

    kern = functools.partial(
        _fused_tcn_kernel, blocks=tuple(cfg), tT=tT, T_real=T,
        has_pad=has_pad, inv_T=1.0 / T, cdt=cdt)

    # NOTE: the time axis MUST stay the inner, sequentially-iterated grid axis
    # ("arbitrary"): the per-block halos and the mean accumulator are carried
    # in VMEM scratch across it.  Batch is the parallel (megacore) axis.
    out = pl.pallas_call(
        kern,
        out_shape=jax.ShapeDtypeStruct((N, nc, 1), jnp.float32),
        grid=(N, nT),
        in_specs=in_specs,
        out_specs=pl.BlockSpec((1, nc, 1), lambda n, j: (n, 0, 0)),
        scratch_shapes=scratch,
        compiler_params=pltpu.CompilerParams(
            dimension_semantics=("parallel", "arbitrary")),
    )(*args)
    return out[:, :, 0]


# ---------------------------------------------------------------------------
# Deterministic parameter init (PyTorch weight layouts)
# ---------------------------------------------------------------------------
def init_params(key, input_channels, num_classes, num_channels, kernel_size):
    params = {"blocks": []}
    c_in = input_channels
    for c_out in num_channels:
        key, k1, k2, k3, k4, k5, k6 = jax.random.split(key, 7)
        blk = {
            "w1": 0.1 * jax.random.normal(k1, (c_out, c_in, kernel_size), jnp.float32),
            "b1": 0.1 * jax.random.normal(k2, (c_out,), jnp.float32),
            "w2": 0.1 * jax.random.normal(k3, (c_out, c_out, kernel_size), jnp.float32),
            "b2": 0.1 * jax.random.normal(k4, (c_out,), jnp.float32),
        }
        if c_in != c_out:
            blk["wd"] = 0.1 * jax.random.normal(k5, (c_out, c_in, 1), jnp.float32)
            blk["bd"] = 0.1 * jax.random.normal(k6, (c_out,), jnp.float32)
        else:
            blk["wd"] = None
            blk["bd"] = None
        params["blocks"].append(blk)
        c_in = c_out
    key, k1, k2 = jax.random.split(key, 3)
    params["wc"] = 0.1 * jax.random.normal(k1, (num_classes, num_channels[-1]), jnp.float32)
    params["bc"] = 0.1 * jax.random.normal(k2, (num_classes,), jnp.float32)
    return params


# ---------------------------------------------------------------------------
# Pure-JAX reference (same math, no Pallas) for the correctness check
# ---------------------------------------------------------------------------
def _ref_causal_conv(x, w, b, d):
    N, Cin, T = x.shape
    Cout, _, K = w.shape
    pad = (K - 1) * d
    xpad = jnp.pad(x, ((0, 0), (0, 0), (pad, 0)))
    acc = jnp.zeros((N, Cout, T), jnp.float32)
    for k in range(K):
        acc = acc + jnp.einsum("nct,oc->not", xpad[:, :, k * d: k * d + T], w[:, :, k])
    return acc + b[None, :, None]


def ref_forward(x, params):
    h = x
    for i, blk in enumerate(params["blocks"]):
        d = 2 ** i
        out = jnp.maximum(_ref_causal_conv(h, blk["w1"], blk["b1"], d), 0.0)
        out = _ref_causal_conv(out, blk["w2"], blk["b2"], d)
        res = h if blk["wd"] is None else _ref_causal_conv(h, blk["wd"], blk["bd"], 1)
        h = jnp.maximum(out + res, 0.0)
    m = jnp.mean(h, axis=2)
    return m @ params["wc"].T + params["bc"]


# ---------------------------------------------------------------------------
if __name__ == "__main__":
    # Small shapes consistent with the module: x is (batch, input_channels, time)
    N, C_IN, T = 2, 4, 16
    NUM_CHANNELS = [8, 8, 16]    # exercises both identity and 1x1-conv residuals
    NUM_CLASSES = 5
    KERNEL_SIZE = 3

    key = jax.random.PRNGKey(0)
    key, kx, kp = jax.random.split(key, 3)
    x = jax.random.normal(kx, (N, C_IN, T), jnp.float32)
    params = init_params(kp, C_IN, NUM_CLASSES, NUM_CHANNELS, KERNEL_SIZE)

    # single-tile path
    out = jax.block_until_ready(jax.jit(audio_tcn_forward)(x, params))
    assert out.shape == (N, NUM_CLASSES), out.shape
    ref = ref_forward(x, params)
    assert jnp.allclose(out, ref, atol=1e-4, rtol=1e-4), (out, ref)

    # time-tiled path (halo carried across tiles in VMEM scratch)
    T2 = 256
    key, kx2 = jax.random.split(key)
    x2 = jax.random.normal(kx2, (N, C_IN, T2), jnp.float32)
    out2 = jax.block_until_ready(audio_tcn_forward(x2, params, time_tile=128))
    ref2 = ref_forward(x2, params)
    assert out2.shape == (N, NUM_CLASSES), out2.shape
    assert jnp.allclose(out2, ref2, atol=1e-4, rtol=1e-4), (out2, ref2)

    # ragged T (cdiv tiling + zero padding masked out of the mean)
    T3 = 300
    key, kx3 = jax.random.split(key)
    x3 = jax.random.normal(kx3, (N, C_IN, T3), jnp.float32)
    out3 = jax.block_until_ready(audio_tcn_forward(x3, params, time_tile=128))
    ref3 = ref_forward(x3, params)
    assert jnp.allclose(out3, ref3, atol=1e-4, rtol=1e-4), (out3, ref3)

    # bf16 MXU operands / bf16 windows (v6e/v7x path) -- looser tolerance
    out4 = jax.block_until_ready(
        audio_tcn_forward(x2, params, time_tile=128, compute_dtype=jnp.bfloat16))
    assert jnp.allclose(out4, ref2, atol=5e-2, rtol=5e-2), (out4, ref2)

    print("KERNEL_OK")
</pallas_src>

<mosaic_0001>
module attributes {stable_mosaic.version = 11 : i64} {
  func.func @_fused_tcn_kernel(%arg0: i32, %arg1: i32, %arg2: memref<1x4x16xf32, #tpu.memory_space<vmem>>, %arg3: memref<8x12xf32, #tpu.memory_space<vmem>>, %arg4: memref<8x1xf32, #tpu.memory_space<vmem>>, %arg5: memref<8x24xf32, #tpu.memory_space<vmem>>, %arg6: memref<8x1xf32, #tpu.memory_space<vmem>>, %arg7: memref<8x4xf32, #tpu.memory_space<vmem>>, %arg8: memref<8x1xf32, #tpu.memory_space<vmem>>, %arg9: memref<8x24xf32, #tpu.memory_space<vmem>>, %arg10: memref<8x1xf32, #tpu.memory_space<vmem>>, %arg11: memref<8x24xf32, #tpu.memory_space<vmem>>, %arg12: memref<8x1xf32, #tpu.memory_space<vmem>>, %arg13: memref<16x24xf32, #tpu.memory_space<vmem>>, %arg14: memref<16x1xf32, #tpu.memory_space<vmem>>, %arg15: memref<16x48xf32, #tpu.memory_space<vmem>>, %arg16: memref<16x1xf32, #tpu.memory_space<vmem>>, %arg17: memref<16x8xf32, #tpu.memory_space<vmem>>, %arg18: memref<16x1xf32, #tpu.memory_space<vmem>>, %arg19: memref<5x16xf32, #tpu.memory_space<vmem>>, %arg20: memref<5x1xf32, #tpu.memory_space<vmem>>, %arg21: memref<1x5x1xf32, #tpu.memory_space<vmem>>, %arg22: memref<4x144xf32, #tpu.memory_space<vmem>>, %arg23: memref<8x144xf32, #tpu.memory_space<vmem>>, %arg24: memref<8x144xf32, #tpu.memory_space<vmem>>, %arg25: memref<8x144xf32, #tpu.memory_space<vmem>>, %arg26: memref<8x144xf32, #tpu.memory_space<vmem>>, %arg27: memref<16x144xf32, #tpu.memory_space<vmem>>, %arg28: memref<16x1xf32, #tpu.memory_space<vmem>>) attributes {dimension_semantics = [#tpu.dimension_semantics<parallel>, #tpu.dimension_semantics<arbitrary>], iteration_bounds = array<i64: 2, 1>, scalar_prefetch = 0 : i64, scratch_operands = 7 : i64, tpu.core_type = #tpu.core_type<tc>, window_params = [{transform_indices = @transform_0, window_bounds = array<i64: 1, 4, 16>}, {pipeline_mode = #tpu.pipeline_mode<synchronous>, transform_indices = @transform_1, window_bounds = array<i64: 8, 12>}, {pipeline_mode = #tpu.pipeline_mode<synchronous>, transform_indices = @transform_2, window_bounds = array<i64: 8, 1>}, {pipeline_mode = #tpu.pipeline_mode<synchronous>, transform_indices = @transform_3, window_bounds = array<i64: 8, 24>}, {pipeline_mode = #tpu.pipeline_mode<synchronous>, transform_indices = @transform_4, window_bounds = array<i64: 8, 1>}, {pipeline_mode = #tpu.pipeline_mode<synchronous>, transform_indices = @transform_5, window_bounds = array<i64: 8, 4>}, {pipeline_mode = #tpu.pipeline_mode<synchronous>, transform_indices = @transform_6, window_bounds = array<i64: 8, 1>}, {pipeline_mode = #tpu.pipeline_mode<synchronous>, transform_indices = @transform_7, window_bounds = array<i64: 8, 24>}, {pipeline_mode = #tpu.pipeline_mode<synchronous>, transform_indices = @transform_8, window_bounds = array<i64: 8, 1>}, {pipeline_mode = #tpu.pipeline_mode<synchronous>, transform_indices = @transform_9, window_bounds = array<i64: 8, 24>}, {pipeline_mode = #tpu.pipeline_mode<synchronous>, transform_indices = @transform_10, window_bounds = array<i64: 8, 1>}, {pipeline_mode = #tpu.pipeline_mode<synchronous>, transform_indices = @transform_11, window_bounds = array<i64: 16, 24>}, {pipeline_mode = #tpu.pipeline_mode<synchronous>, transform_indices = @transform_12, window_bounds = array<i64: 16, 1>}, {pipeline_mode = #tpu.pipeline_mode<synchronous>, transform_indices = @transform_13, window_bounds = array<i64: 16, 48>}, {pipeline_mode = #tpu.pipeline_mode<synchronous>, transform_indices = @transform_14, window_bounds = array<i64: 16, 1>}, {pipeline_mode = #tpu.pipeline_mode<synchronous>, transform_indices = @transform_15, window_bounds = array<i64: 16, 8>}, {pipeline_mode = #tpu.pipeline_mode<synchronous>, transform_indices = @transform_16, window_bounds = array<i64: 16, 1>}, {pipeline_mode = #tpu.pipeline_mode<synchronous>, transform_indices = @transform_17, window_bounds = array<i64: 5, 16>}, {pipeline_mode = #tpu.pipeline_mode<synchronous>, transform_indices = @transform_18, window_bounds = array<i64: 5, 1>}, {transform_indices = @transform_19, window_bounds = array<i64: 1, 5, 1>}]} {
    %c0 = arith.constant 0 : index
    %c0_0 = arith.constant 0 : index
    %c0_1 = arith.constant 0 : index
    %0 = vector.load %arg2[%c0, %c0_0, %c0_1] : memref<1x4x16xf32, #tpu.memory_space<vmem>>, vector<1x4x16xf32>
    %1 = vector.shape_cast %0 : vector<1x4x16xf32> to vector<4x16xf32>
    %c0_i32 = arith.constant 0 : i32
    %2 = arith.cmpi eq, %arg1, %c0_i32 : i32
    %3 = arith.extui %2 : i1 to i32
    %c0_i32_2 = arith.constant 0 : i32
    %4 = arith.cmpi ne, %3, %c0_i32_2 : i32
    scf.if %4 {
      %cst_142 = arith.constant 0.000000e+00 : f32
      %146 = vector.broadcast %cst_142 : f32 to vector<4x2xf32>
      %c0_143 = arith.constant 0 : index
      %c126_144 = arith.constant 126 : index
      %147 = vector.load %arg22[%c0_143, %c126_144] : memref<4x144xf32, #tpu.memory_space<vmem>>, vector<4x2xf32>
      tpu.vector_store %arg22[%c0_143, %c126_144], %146 {strides = array<i32>} : memref<4x144xf32, #tpu.memory_space<vmem>>, vector<4x2xf32>,
      %cst_145 = arith.constant 0.000000e+00 : f32
      %148 = vector.broadcast %cst_145 : f32 to vector<8x2xf32>
      %c0_146 = arith.constant 0 : index
      %c126_147 = arith.constant 126 : index
      %149 = vector.load %arg23[%c0_146, %c126_147] : memref<8x144xf32, #tpu.memory_space<vmem>>, vector<8x2xf32>
      tpu.vector_store %arg23[%c0_146, %c126_147], %148 {strides = array<i32>} : memref<8x144xf32, #tpu.memory_space<vmem>>, vector<8x2xf32>,
    } else {
    }
    %c0_i32_3 = arith.constant 0 : i32
    %5 = arith.cmpi sgt, %arg1, %c0_i32_3 : i32
    %6 = arith.extui %5 : i1 to i32
    %c0_i32_4 = arith.constant 0 : i32
    %7 = arith.cmpi ne, %6, %c0_i32_4 : i32
    scf.if %7 {
      %c0_142 = arith.constant 0 : index
      %c142 = arith.constant 142 : index
      %146 = vector.load %arg22[%c0_142, %c142] : memref<4x144xf32, #tpu.memory_space<vmem>>, vector<4x2xf32>
      %c0_143 = arith.constant 0 : index
      %c126_144 = arith.constant 126 : index
      %147 = vector.load %arg22[%c0_143, %c126_144] : memref<4x144xf32, #tpu.memory_space<vmem>>, vector<4x2xf32>
      tpu.vector_store %arg22[%c0_143, %c126_144], %146 {strides = array<i32>} : memref<4x144xf32, #tpu.memory_space<vmem>>, vector<4x2xf32>,
      %c0_145 = arith.constant 0 : index
      %c142_146 = arith.constant 142 : index
      %148 = vector.load %arg23[%c0_145, %c142_146] : memref<8x144xf32, #tpu.memory_space<vmem>>, vector<8x2xf32>
      %c0_147 = arith.constant 0 : index
      %c126_148 = arith.constant 126 : index
      %149 = vector.load %arg23[%c0_147, %c126_148] : memref<8x144xf32, #tpu.memory_space<vmem>>, vector<8x2xf32>
      tpu.vector_store %arg23[%c0_147, %c126_148], %148 {strides = array<i32>} : memref<8x144xf32, #tpu.memory_space<vmem>>, vector<8x2xf32>,
    } else {
    }
    %c0_5 = arith.constant 0 : index
    %c128 = arith.constant 128 : index
    %8 = vector.load %arg22[%c0_5, %c128] : memref<4x144xf32, #tpu.memory_space<vmem>>, vector<4x16xf32>
    tpu.vector_store %arg22[%c0_5, %c128], %1 {strides = array<i32>} : memref<4x144xf32, #tpu.memory_space<vmem>>, vector<4x16xf32>,
    %c0_6 = arith.constant 0 : index
    %c0_7 = arith.constant 0 : index
    %9 = vector.load %arg3[%c0_6, %c0_7] : memref<8x12xf32, #tpu.memory_space<vmem>>, vector<8x4xf32>
    %c0_8 = arith.constant 0 : index
    %c126 = arith.constant 126 : index
    %10 = vector.load %arg22[%c0_8, %c126] : memref<4x144xf32, #tpu.memory_space<vmem>>, vector<4x16xf32>
    %cst = arith.constant dense<0.000000e+00> : vector<8x16xf32>
    %11 = tpu.matmul %9, %10, %cst {dimension_numbers = #tpu.dot_dimension_numbers<[1], [0], [0], [1], [0, 0, 1, 1], [], []>} : vector<8x4xf32>, vector<4x16xf32>, vector<8x16xf32> -> vector<8x16xf32>
    %c0_9 = arith.constant 0 : index
    %c4 = arith.constant 4 : index
    %12 = vector.load %arg3[%c0_9, %c4] : memref<8x12xf32, #tpu.memory_space<vmem>>, vector<8x4xf32>
    %c0_10 = arith.constant 0 : index
    %c127 = arith.constant 127 : index
    %13 = vector.load %arg22[%c0_10, %c127] : memref<4x144xf32, #tpu.memory_space<vmem>>, vector<4x16xf32>
    %cst_11 = arith.constant dense<0.000000e+00> : vector<8x16xf32>
    %14 = tpu.matmul %12, %13, %cst_11 {dimension_numbers = #tpu.dot_dimension_numbers<[1], [0], [0], [1], [0, 0, 1, 1], [], []>} : vector<8x4xf32>, vector<4x16xf32>, vector<8x16xf32> -> vector<8x16xf32>
    %15 = arith.addf %11, %14 : vector<8x16xf32>
    %c0_12 = arith.constant 0 : index
    %c8 = arith.constant 8 : index
    %16 = vector.load %arg3[%c0_12, %c8] : memref<8x12xf32, #tpu.memory_space<vmem>>, vector<8x4xf32>
    %c0_13 = arith.constant 0 : index
    %c128_14 = arith.constant 128 : index
    %17 = vector.load %arg22[%c0_13, %c128_14] : memref<4x144xf32, #tpu.memory_space<vmem>>, vector<4x16xf32>
    %cst_15 = arith.constant dense<0.000000e+00> : vector<8x16xf32>
    %18 = tpu.matmul %16, %17, %cst_15 {dimension_numbers = #tpu.dot_dimension_numbers<[1], [0], [0], [1], [0, 0, 1, 1], [], []>} : vector<8x4xf32>, vector<4x16xf32>, vector<8x16xf32> -> vector<8x16xf32>
    %19 = arith.addf %15, %18 : vector<8x16xf32>
    %c0_16 = arith.constant 0 : index
    %c0_17 = arith.constant 0 : index
    %20 = vector.load %arg4[%c0_16, %c0_17] : memref<8x1xf32, #tpu.memory_space<vmem>>, vector<8x1xf32>
    %21 = vector.broadcast %20 : vector<8x1xf32> to vector<8x16xf32>
    %22 = arith.addf %19, %21 : vector<8x16xf32>
    %cst_18 = arith.constant 0.000000e+00 : f32
    %23 = vector.broadcast %cst_18 : f32 to vector<8x16xf32>
    %24 = arith.maximumf %22, %23 : vector<8x16xf32>
    %c0_19 = arith.constant 0 : index
    %c128_20 = arith.constant 128 : index
    %25 = vector.load %arg23[%c0_19, %c128_20] : memref<8x144xf32, #tpu.memory_space<vmem>>, vector<8x16xf32>
    tpu.vector_store %arg23[%c0_19, %c128_20], %24 {strides = array<i32>} : memref<8x144xf32, #tpu.memory_space<vmem>>, vector<8x16xf32>,
    %c0_21 = arith.constant 0 : index
    %c0_22 = arith.constant 0 : index
    %26 = vector.load %arg5[%c0_21, %c0_22] : memref<8x24xf32, #tpu.memory_space<vmem>>, vector<8x8xf32>
    %c0_23 = arith.constant 0 : index
    %c126_24 = arith.constant 126 : index
    %27 = vector.load %arg23[%c0_23, %c126_24] : memref<8x144xf32, #tpu.memory_space<vmem>>, vector<8x16xf32>
    %cst_25 = arith.constant dense<0.000000e+00> : vector<8x16xf32>
    %28 = tpu.matmul %26, %27, %cst_25 {dimension_numbers = #tpu.dot_dimension_numbers<[1], [0], [0], [1], [0, 0, 1, 1], [], []>} : vector<8x8xf32>, vector<8x16xf32>, vector<8x16xf32> -> vector<8x16xf32>
    %c0_26 = arith.constant 0 : index
    %c8_27 = arith.constant 8 : index
    %29 = vector.load %arg5[%c0_26, %c8_27] : memref<8x24xf32, #tpu.memory_space<vmem>>, vector<8x8xf32>
    %c0_28 = arith.constant 0 : index
    %c127_29 = arith.constant 127 : index
    %30 = vector.load %arg23[%c0_28, %c127_29] : memref<8x144xf32, #tpu.memory_space<vmem>>, vector<8x16xf32>
    %cst_30 = arith.constant dense<0.000000e+00> : vector<8x16xf32>
    %31 = tpu.matmul %29, %30, %cst_30 {dimension_numbers = #tpu.dot_dimension_numbers<[1], [0], [0], [1], [0, 0, 1, 1], [], []>} : vector<8x8xf32>, vector<8x16xf32>, vector<8x16xf32> -> vector<8x16xf32>
    %32 = arith.addf %28, %31 : vector<8x16xf32>
    %c0_31 = arith.constant 0 : index
    %c16 = arith.constant 16 : index
    %33 = vector.load %arg5[%c0_31, %c16] : memref<8x24xf32, #tpu.memory_space<vmem>>, vector<8x8xf32>
    %c0_32 = arith.constant 0 : index
    %c128_33 = arith.constant 128 : index
    %34 = vector.load %arg23[%c0_32, %c128_33] : memref<8x144xf32, #tpu.memory_space<vmem>>, vector<8x16xf32>
    %cst_34 = arith.constant dense<0.000000e+00> : vector<8x16xf32>
    %35 = tpu.matmul %33, %34, %cst_34 {dimension_numbers = #tpu.dot_dimension_numbers<[1], [0], [0], [1], [0, 0, 1, 1], [], []>} : vector<8x8xf32>, vector<8x16xf32>, vector<8x16xf32> -> vector<8x16xf32>
    %36 = arith.addf %32, %35 : vector<8x16xf32>
    %c0_35 = arith.constant 0 : index
    %c0_36 = arith.constant 0 : index
    %37 = vector.load %arg6[%c0_35, %c0_36] : memref<8x1xf32, #tpu.memory_space<vmem>>, vector<8x1xf32>
    %38 = vector.broadcast %37 : vector<8x1xf32> to vector<8x16xf32>
    %39 = arith.addf %36, %38 : vector<8x16xf32>
    %c0_37 = arith.constant 0 : index
    %c0_38 = arith.constant 0 : index
    %40 = vector.load %arg7[%c0_37, %c0_38] : memref<8x4xf32, #tpu.memory_space<vmem>>, vector<8x4xf32>
    %cst_39 = arith.constant dense<0.000000e+00> : vector<8x16xf32>
    %41 = tpu.matmul %40, %1, %cst_39 {dimension_numbers = #tpu.dot_dimension_numbers<[1], [0], [0], [1], [0, 0, 1, 1], [], []>} : vector<8x4xf32>, vector<4x16xf32>, vector<8x16xf32> -> vector<8x16xf32>
    %c0_40 = arith.constant 0 : index
    %c0_41 = arith.constant 0 : index
    %42 = vector.load %arg8[%c0_40, %c0_41] : memref<8x1xf32, #tpu.memory_space<vmem>>, vector<8x1xf32>
    %43 = vector.broadcast %42 : vector<8x1xf32> to vector<8x16xf32>
    %44 = arith.addf %41, %43 : vector<8x16xf32>
    %45 = arith.addf %39, %44 : vector<8x16xf32>
    %cst_42 = arith.constant 0.000000e+00 : f32
    %46 = vector.broadcast %cst_42 : f32 to vector<8x16xf32>
    %47 = arith.maximumf %45, %46 : vector<8x16xf32>
    %c0_i32_43 = arith.constant 0 : i32
    %48 = arith.cmpi eq, %arg1, %c0_i32_43 : i32
    %49 = arith.extui %48 : i1 to i32
    %c0_i32_44 = arith.constant 0 : i32
    %50 = arith.cmpi ne, %49, %c0_i32_44 : i32
    scf.if %50 {
      %cst_142 = arith.constant 0.000000e+00 : f32
      %146 = vector.broadcast %cst_142 : f32 to vector<8x4xf32>
      %c0_143 = arith.constant 0 : index
      %c124_144 = arith.constant 124 : index
      %147 = vector.load %arg24[%c0_143, %c124_144] : memref<8x144xf32, #tpu.memory_space<vmem>>, vector<8x4xf32>
      tpu.vector_store %arg24[%c0_143, %c124_144], %146 {strides = array<i32>} : memref<8x144xf32, #tpu.memory_space<vmem>>, vector<8x4xf32>,
      %cst_145 = arith.constant 0.000000e+00 : f32
      %148 = vector.broadcast %cst_145 : f32 to vector<8x4xf32>
      %c0_146 = arith.constant 0 : index
      %c124_147 = arith.constant 124 : index
      %149 = vector.load %arg25[%c0_146, %c124_147] : memref<8x144xf32, #tpu.memory_space<vmem>>, vector<8x4xf32>
      tpu.vector_store %arg25[%c0_146, %c124_147], %148 {strides = array<i32>} : memref<8x144xf32, #tpu.memory_space<vmem>>, vector<8x4xf32>,
    } else {
    }
    %c0_i32_45 = arith.constant 0 : i32
    %51 = arith.cmpi sgt, %arg1, %c0_i32_45 : i32
    %52 = arith.extui %51 : i1 to i32
    %c0_i32_46 = arith.constant 0 : i32
    %53 = arith.cmpi ne, %52, %c0_i32_46 : i32
    scf.if %53 {
      %c0_142 = arith.constant 0 : index
      %c140 = arith.constant 140 : index
      %146 = vector.load %arg24[%c0_142, %c140] : memref<8x144xf32, #tpu.memory_space<vmem>>, vector<8x4xf32>
      %c0_143 = arith.constant 0 : index
      %c124_144 = arith.constant 124 : index
      %147 = vector.load %arg24[%c0_143, %c124_144] : memref<8x144xf32, #tpu.memory_space<vmem>>, vector<8x4xf32>
      tpu.vector_store %arg24[%c0_143, %c124_144], %146 {strides = array<i32>} : memref<8x144xf32, #tpu.memory_space<vmem>>, vector<8x4xf32>,
      %c0_145 = arith.constant 0 : index
      %c140_146 = arith.constant 140 : index
      %148 = vector.load %arg25[%c0_145, %c140_146] : memref<8x144xf32, #tpu.memory_space<vmem>>, vector<8x4xf32>
      %c0_147 = arith.constant 0 : index
      %c124_148 = arith.constant 124 : index
      %149 = vector.load %arg25[%c0_147, %c124_148] : memref<8x144xf32, #tpu.memory_space<vmem>>, vector<8x4xf32>
      tpu.vector_store %arg25[%c0_147, %c124_148], %148 {strides = array<i32>} : memref<8x144xf32, #tpu.memory_space<vmem>>, vector<8x4xf32>,
    } else {
    }
    %c0_47 = arith.constant 0 : index
    %c128_48 = arith.constant 128 : index
    %54 = vector.load %arg24[%c0_47, %c128_48] : memref<8x144xf32, #tpu.memory_space<vmem>>, vector<8x16xf32>
    tpu.vector_store %arg24[%c0_47, %c128_48], %47 {strides = array<i32>} : memref<8x144xf32, #tpu.memory_space<vmem>>, vector<8x16xf32>,
    %c0_49 = arith.constant 0 : index
    %c0_50 = arith.constant 0 : index
    %55 = vector.load %arg9[%c0_49, %c0_50] : memref<8x24xf32, #tpu.memory_space<vmem>>, vector<8x8xf32>
    %c0_51 = arith.constant 0 : index
    %c124 = arith.constant 124 : index
    %56 = vector.load %arg24[%c0_51, %c124] : memref<8x144xf32, #tpu.memory_space<vmem>>, vector<8x16xf32>
    %cst_52 = arith.constant dense<0.000000e+00> : vector<8x16xf32>
    %57 = tpu.matmul %55, %56, %cst_52 {dimension_numbers = #tpu.dot_dimension_numbers<[1], [0], [0], [1], [0, 0, 1, 1], [], []>} : vector<8x8xf32>, vector<8x16xf32>, vector<8x16xf32> -> vector<8x16xf32>
    %c0_53 = arith.constant 0 : index
    %c8_54 = arith.constant 8 : index
    %58 = vector.load %arg9[%c0_53, %c8_54] : memref<8x24xf32, #tpu.memory_space<vmem>>, vector<8x8xf32>
    %c0_55 = arith.constant 0 : index
    %c126_56 = arith.constant 126 : index
    %59 = vector.load %arg24[%c0_55, %c126_56] : memref<8x144xf32, #tpu.memory_space<vmem>>, vector<8x16xf32>
    %cst_57 = arith.constant dense<0.000000e+00> : vector<8x16xf32>
    %60 = tpu.matmul %58, %59, %cst_57 {dimension_numbers = #tpu.dot_dimension_numbers<[1], [0], [0], [1], [0, 0, 1, 1], [], []>} : vector<8x8xf32>, vector<8x16xf32>, vector<8x16xf32> -> vector<8x16xf32>
    %61 = arith.addf %57, %60 : vector<8x16xf32>
    %c0_58 = arith.constant 0 : index
    %c16_59 = arith.constant 16 : index
    %62 = vector.load %arg9[%c0_58, %c16_59] : memref<8x24xf32, #tpu.memory_space<vmem>>, vector<8x8xf32>
    %c0_60 = arith.constant 0 : index
    %c128_61 = arith.constant 128 : index
    %63 = vector.load %arg24[%c0_60, %c128_61] : memref<8x144xf32, #tpu.memory_space<vmem>>, vector<8x16xf32>
    %cst_62 = arith.constant dense<0.000000e+00> : vector<8x16xf32>
    %64 = tpu.matmul %62, %63, %cst_62 {dimension_numbers = #tpu.dot_dimension_numbers<[1], [0], [0], [1], [0, 0, 1, 1], [], []>} : vector<8x8xf32>, vector<8x16xf32>, vector<8x16xf32> -> vector<8x16xf32>
    %65 = arith.addf %61, %64 : vector<8x16xf32>
    %c0_63 = arith.constant 0 : index
    %c0_64 = arith.constant 0 : index
    %66 = vector.load %arg10[%c0_63, %c0_64] : memref<8x1xf32, #tpu.memory_space<vmem>>, vector<8x1xf32>
    %67 = vector.broadcast %66 : vector<8x1xf32> to vector<8x16xf32>
    %68 = arith.addf %65, %67 : vector<8x16xf32>
    %cst_65 = arith.constant 0.000000e+00 : f32
    %69 = vector.broadcast %cst_65 : f32 to vector<8x16xf32>
    %70 = arith.maximumf %68, %69 : vector<8x16xf32>
    %c0_66 = arith.constant 0 : index
    %c128_67 = arith.constant 128 : index
    %71 = vector.load %arg25[%c0_66, %c128_67] : memref<8x144xf32, #tpu.memory_space<vmem>>, vector<8x16xf32>
    tpu.vector_store %arg25[%c0_66, %c128_67], %70 {strides = array<i32>} : memref<8x144xf32, #tpu.memory_space<vmem>>, vector<8x16xf32>,
    %c0_68 = arith.constant 0 : index
    %c0_69 = arith.constant 0 : index
    %72 = vector.load %arg11[%c0_68, %c0_69] : memref<8x24xf32, #tpu.memory_space<vmem>>, vector<8x8xf32>
    %c0_70 = arith.constant 0 : index
    %c124_71 = arith.constant 124 : index
    %73 = vector.load %arg25[%c0_70, %c124_71] : memref<8x144xf32, #tpu.memory_space<vmem>>, vector<8x16xf32>
    %cst_72 = arith.constant dense<0.000000e+00> : vector<8x16xf32>
    %74 = tpu.matmul %72, %73, %cst_72 {dimension_numbers = #tpu.dot_dimension_numbers<[1], [0], [0], [1], [0, 0, 1, 1], [], []>} : vector<8x8xf32>, vector<8x16xf32>, vector<8x16xf32> -> vector<8x16xf32>
    %c0_73 = arith.constant 0 : index
    %c8_74 = arith.constant 8 : index
    %75 = vector.load %arg11[%c0_73, %c8_74] : memref<8x24xf32, #tpu.memory_space<vmem>>, vector<8x8xf32>
    %c0_75 = arith.constant 0 : index
    %c126_76 = arith.constant 126 : index
    %76 = vector.load %arg25[%c0_75, %c126_76] : memref<8x144xf32, #tpu.memory_space<vmem>>, vector<8x16xf32>
    %cst_77 = arith.constant dense<0.000000e+00> : vector<8x16xf32>
    %77 = tpu.matmul %75, %76, %cst_77 {dimension_numbers = #tpu.dot_dimension_numbers<[1], [0], [0], [1], [0, 0, 1, 1], [], []>} : vector<8x8xf32>, vector<8x16xf32>, vector<8x16xf32> -> vector<8x16xf32>
    %78 = arith.addf %74, %77 : vector<8x16xf32>
    %c0_78 = arith.constant 0 : index
    %c16_79 = arith.constant 16 : index
    %79 = vector.load %arg11[%c0_78, %c16_79] : memref<8x24xf32, #tpu.memory_space<vmem>>, vector<8x8xf32>
    %c0_80 = arith.constant 0 : index
    %c128_81 = arith.constant 128 : index
    %80 = vector.load %arg25[%c0_80, %c128_81] : memref<8x144xf32, #tpu.memory_space<vmem>>, vector<8x16xf32>
    %cst_82 = arith.constant dense<0.000000e+00> : vector<8x16xf32>
    %81 = tpu.matmul %79, %80, %cst_82 {dimension_numbers = #tpu.dot_dimension_numbers<[1], [0], [0], [1], [0, 0, 1, 1], [], []>} : vector<8x8xf32>, vector<8x16xf32>, vector<8x16xf32> -> vector<8x16xf32>
    %82 = arith.addf %78, %81 : vector<8x16xf32>
    %c0_83 = arith.constant 0 : index
    %c0_84 = arith.constant 0 : index
    %83 = vector.load %arg12[%c0_83, %c0_84] : memref<8x1xf32, #tpu.memory_space<vmem>>, vector<8x1xf32>
    %84 = vector.broadcast %83 : vector<8x1xf32> to vector<8x16xf32>
    %85 = arith.addf %82, %84 : vector<8x16xf32>
    %86 = arith.addf %85, %47 : vector<8x16xf32>
    %cst_85 = arith.constant 0.000000e+00 : f32
    %87 = vector.broadcast %cst_85 : f32 to vector<8x16xf32>
    %88 = arith.maximumf %86, %87 : vector<8x16xf32>
    %c0_i32_86 = arith.constant 0 : i32
    %89 = arith.cmpi eq, %arg1, %c0_i32_86 : i32
    %90 = arith.extui %89 : i1 to i32
    %c0_i32_87 = arith.constant 0 : i32
    %91 = arith.cmpi ne, %90, %c0_i32_87 : i32
    scf.if %91 {
      %cst_142 = arith.constant 0.000000e+00 : f32
      %146 = vector.broadcast %cst_142 : f32 to vector<8x8xf32>
      %c0_143 = arith.constant 0 : index
      %c120_144 = arith.constant 120 : index
      %147 = vector.load %arg26[%c0_143, %c120_144] : memref<8x144xf32, #tpu.memory_space<vmem>>, vector<8x8xf32>
      tpu.vector_store %arg26[%c0_143, %c120_144], %146 {strides = array<i32>} : memref<8x144xf32, #tpu.memory_space<vmem>>, vector<8x8xf32>,
      %cst_145 = arith.constant 0.000000e+00 : f32
      %148 = vector.broadcast %cst_145 : f32 to vector<16x8xf32>
      %c0_146 = arith.constant 0 : index
      %c120_147 = arith.constant 120 : index
      %149 = vector.load %arg27[%c0_146, %c120_147] : memref<16x144xf32, #tpu.memory_space<vmem>>, vector<16x8xf32>
      tpu.vector_store %arg27[%c0_146, %c120_147], %148 {strides = array<i32>} : memref<16x144xf32, #tpu.memory_space<vmem>>, vector<16x8xf32>,
    } else {
    }
    %c0_i32_88 = arith.constant 0 : i32
    %92 = arith.cmpi sgt, %arg1, %c0_i32_88 : i32
    %93 = arith.extui %92 : i1 to i32
    %c0_i32_89 = arith.constant 0 : i32
    %94 = arith.cmpi ne, %93, %c0_i32_89 : i32
    scf.if %94 {
      %c0_142 = arith.constant 0 : index
      %c136 = arith.constant 136 : index
      %146 = vector.load %arg26[%c0_142, %c136] : memref<8x144xf32, #tpu.memory_space<vmem>>, vector<8x8xf32>
      %c0_143 = arith.constant 0 : index
      %c120_144 = arith.constant 120 : index
      %147 = vector.load %arg26[%c0_143, %c120_144] : memref<8x144xf32, #tpu.memory_space<vmem>>, vector<8x8xf32>
      tpu.vector_store %arg26[%c0_143, %c120_144], %146 {strides = array<i32>} : memref<8x144xf32, #tpu.memory_space<vmem>>, vector<8x8xf32>,
      %c0_145 = arith.constant 0 : index
      %c136_146 = arith.constant 136 : index
      %148 = vector.load %arg27[%c0_145, %c136_146] : memref<16x144xf32, #tpu.memory_space<vmem>>, vector<16x8xf32>
      %c0_147 = arith.constant 0 : index
      %c120_148 = arith.constant 120 : index
      %149 = vector.load %arg27[%c0_147, %c120_148] : memref<16x144xf32, #tpu.memory_space<vmem>>, vector<16x8xf32>
      tpu.vector_store %arg27[%c0_147, %c120_148], %148 {strides = array<i32>} : memref<16x144xf32, #tpu.memory_space<vmem>>, vector<16x8xf32>,
    } else {
    }
    %c0_90 = arith.constant 0 : index
    %c128_91 = arith.constant 128 : index
    %95 = vector.load %arg26[%c0_90, %c128_91] : memref<8x144xf32, #tpu.memory_space<vmem>>, vector<8x16xf32>
    tpu.vector_store %arg26[%c0_90, %c128_91], %88 {strides = array<i32>} : memref<8x144xf32, #tpu.memory_space<vmem>>, vector<8x16xf32>,
    %c0_92 = arith.constant 0 : index
    %c0_93 = arith.constant 0 : index
    %96 = vector.load %arg13[%c0_92, %c0_93] : memref<16x24xf32, #tpu.memory_space<vmem>>, vector<16x8xf32>
    %c0_94 = arith.constant 0 : index
    %c120 = arith.constant 120 : index
    %97 = vector.load %arg26[%c0_94, %c120] : memref<8x144xf32, #tpu.memory_space<vmem>>, vector<8x16xf32>
    %cst_95 = arith.constant dense<0.000000e+00> : vector<16x16xf32>
    %98 = tpu.matmul %96, %97, %cst_95 {dimension_numbers = #tpu.dot_dimension_numbers<[1], [0], [0], [1], [0, 0, 1, 1], [], []>} : vector<16x8xf32>, vector<8x16xf32>, vector<16x16xf32> -> vector<16x16xf32>
    %c0_96 = arith.constant 0 : index
    %c8_97 = arith.constant 8 : index
    %99 = vector.load %arg13[%c0_96, %c8_97] : memref<16x24xf32, #tpu.memory_space<vmem>>, vector<16x8xf32>
    %c0_98 = arith.constant 0 : index
    %c124_99 = arith.constant 124 : index
    %100 = vector.load %arg26[%c0_98, %c124_99] : memref<8x144xf32, #tpu.memory_space<vmem>>, vector<8x16xf32>
    %cst_100 = arith.constant dense<0.000000e+00> : vector<16x16xf32>
    %101 = tpu.matmul %99, %100, %cst_100 {dimension_numbers = #tpu.dot_dimension_numbers<[1], [0], [0], [1], [0, 0, 1, 1], [], []>} : vector<16x8xf32>, vector<8x16xf32>, vector<16x16xf32> -> vector<16x16xf32>
    %102 = arith.addf %98, %101 : vector<16x16xf32>
    %c0_101 = arith.constant 0 : index
    %c16_102 = arith.constant 16 : index
    %103 = vector.load %arg13[%c0_101, %c16_102] : memref<16x24xf32, #tpu.memory_space<vmem>>, vector<16x8xf32>
    %c0_103 = arith.constant 0 : index
    %c128_104 = arith.constant 128 : index
    %104 = vector.load %arg26[%c0_103, %c128_104] : memref<8x144xf32, #tpu.memory_space<vmem>>, vector<8x16xf32>
    %cst_105 = arith.constant dense<0.000000e+00> : vector<16x16xf32>
    %105 = tpu.matmul %103, %104, %cst_105 {dimension_numbers = #tpu.dot_dimension_numbers<[1], [0], [0], [1], [0, 0, 1, 1], [], []>} : vector<16x8xf32>, vector<8x16xf32>, vector<16x16xf32> -> vector<16x16xf32>
    %106 = arith.addf %102, %105 : vector<16x16xf32>
    %c0_106 = arith.constant 0 : index
    %c0_107 = arith.constant 0 : index
    %107 = vector.load %arg14[%c0_106, %c0_107] : memref<16x1xf32, #tpu.memory_space<vmem>>, vector<16x1xf32>
    %108 = vector.broadcast %107 : vector<16x1xf32> to vector<16x16xf32>
    %109 = arith.addf %106, %108 : vector<16x16xf32>
    %cst_108 = arith.constant 0.000000e+00 : f32
    %110 = vector.broadcast %cst_108 : f32 to vector<16x16xf32>
    %111 = arith.maximumf %109, %110 : vector<16x16xf32>
    %c0_109 = arith.constant 0 : index
    %c128_110 = arith.constant 128 : index
    %112 = vector.load %arg27[%c0_109, %c128_110] : memref<16x144xf32, #tpu.memory_space<vmem>>, vector<16x16xf32>
    tpu.vector_store %arg27[%c0_109, %c128_110], %111 {strides = array<i32>} : memref<16x144xf32, #tpu.memory_space<vmem>>, vector<16x16xf32>,
    %c0_111 = arith.constant 0 : index
    %c0_112 = arith.constant 0 : index
    %113 = vector.load %arg15[%c0_111, %c0_112] : memref<16x48xf32, #tpu.memory_space<vmem>>, vector<16x16xf32>
    %c0_113 = arith.constant 0 : index
    %c120_114 = arith.constant 120 : index
    %114 = vector.load %arg27[%c0_113, %c120_114] : memref<16x144xf32, #tpu.memory_space<vmem>>, vector<16x16xf32>
    %cst_115 = arith.constant dense<0.000000e+00> : vector<16x16xf32>
    %115 = tpu.matmul %113, %114, %cst_115 {dimension_numbers = #tpu.dot_dimension_numbers<[1], [0], [0], [1], [0, 0, 1, 1], [], []>} : vector<16x16xf32>, vector<16x16xf32>, vector<16x16xf32> -> vector<16x16xf32>
    %c0_116 = arith.constant 0 : index
    %c16_117 = arith.constant 16 : index
    %116 = vector.load %arg15[%c0_116, %c16_117] : memref<16x48xf32, #tpu.memory_space<vmem>>, vector<16x16xf32>
    %c0_118 = arith.constant 0 : index
    %c124_119 = arith.constant 124 : index
    %117 = vector.load %arg27[%c0_118, %c124_119] : memref<16x144xf32, #tpu.memory_space<vmem>>, vector<16x16xf32>
    %cst_120 = arith.constant dense<0.000000e+00> : vector<16x16xf32>
    %118 = tpu.matmul %116, %117, %cst_120 {dimension_numbers = #tpu.dot_dimension_numbers<[1], [0], [0], [1], [0, 0, 1, 1], [], []>} : vector<16x16xf32>, vector<16x16xf32>, vector<16x16xf32> -> vector<16x16xf32>
    %119 = arith.addf %115, %118 : vector<16x16xf32>
    %c0_121 = arith.constant 0 : index
    %c32 = arith.constant 32 : index
    %120 = vector.load %arg15[%c0_121, %c32] : memref<16x48xf32, #tpu.memory_space<vmem>>, vector<16x16xf32>
    %c0_122 = arith.constant 0 : index
    %c128_123 = arith.constant 128 : index
    %121 = vector.load %arg27[%c0_122, %c128_123] : memref<16x144xf32, #tpu.memory_space<vmem>>, vector<16x16xf32>
    %cst_124 = arith.constant dense<0.000000e+00> : vector<16x16xf32>
    %122 = tpu.matmul %120, %121, %cst_124 {dimension_numbers = #tpu.dot_dimension_numbers<[1], [0], [0], [1], [0, 0, 1, 1], [], []>} : vector<16x16xf32>, vector<16x16xf32>, vector<16x16xf32> -> vector<16x16xf32>
    %123 = arith.addf %119, %122 : vector<16x16xf32>
    %c0_125 = arith.constant 0 : index
    %c0_126 = arith.constant 0 : index
    %124 = vector.load %arg16[%c0_125, %c0_126] : memref<16x1xf32, #tpu.memory_space<vmem>>, vector<16x1xf32>
    %125 = vector.broadcast %124 : vector<16x1xf32> to vector<16x16xf32>
    %126 = arith.addf %123, %125 : vector<16x16xf32>
    %c0_127 = arith.constant 0 : index
    %c0_128 = arith.constant 0 : index
    %127 = vector.load %arg17[%c0_127, %c0_128] : memref<16x8xf32, #tpu.memory_space<vmem>>, vector<16x8xf32>
    %cst_129 = arith.constant dense<0.000000e+00> : vector<16x16xf32>
    %128 = tpu.matmul %127, %88, %cst_129 {dimension_numbers = #tpu.dot_dimension_numbers<[1], [0], [0], [1], [0, 0, 1, 1], [], []>} : vector<16x8xf32>, vector<8x16xf32>, vector<16x16xf32> -> vector<16x16xf32>
    %c0_130 = arith.constant 0 : index
    %c0_131 = arith.constant 0 : index
    %129 = vector.load %arg18[%c0_130, %c0_131] : memref<16x1xf32, #tpu.memory_space<vmem>>, vector<16x1xf32>
    %130 = vector.broadcast %129 : vector<16x1xf32> to vector<16x16xf32>
    %131 = arith.addf %128, %130 : vector<16x16xf32>
    %132 = arith.addf %126, %131 : vector<16x16xf32>
    %cst_132 = arith.constant 0.000000e+00 : f32
    %133 = vector.broadcast %cst_132 : f32 to vector<16x16xf32>
    %134 = arith.maximumf %132, %133 : vector<16x16xf32>
    %c0_i32_133 = arith.constant 0 : i32
    %135 = arith.cmpi eq, %arg1, %c0_i32_133 : i32
    %136 = arith.extui %135 : i1 to i32
    %c0_i32_134 = arith.constant 0 : i32
    %137 = arith.cmpi ne, %136, %c0_i32_134 : i32
    scf.if %137 {
      %cst_142 = arith.constant 0.000000e+00 : f32
      %146 = vector.broadcast %cst_142 : f32 to vector<16x1xf32>
      %c0_143 = arith.constant 0 : index
      %c0_144 = arith.constant 0 : index
      %147 = vector.load %arg28[%c0_143, %c0_144] : memref<16x1xf32, #tpu.memory_space<vmem>>, vector<16x1xf32>
      tpu.vector_store %arg28[%c0_143, %c0_144], %146 {strides = array<i32>} : memref<16x1xf32, #tpu.memory_space<vmem>>, vector<16x1xf32>,
    } else {
    }
    %c0_135 = arith.constant 0 : index
    %c0_136 = arith.constant 0 : index
    %138 = vector.load %arg28[%c0_135, %c0_136] : memref<16x1xf32, #tpu.memory_space<vmem>>, vector<16x1xf32>
    %cst_137 = arith.constant dense<0.000000e+00> : vector<16xf32>
    %139 = vector.multi_reduction <add>, %134, %cst_137 [1] : vector<16x16xf32> to vector<16xf32>
    %140 = vector.shape_cast %139 : vector<16xf32> to vector<16x1xf32>
    %141 = arith.addf %138, %140 : vector<16x1xf32>
    %c0_138 = arith.constant 0 : index
    %c0_139 = arith.constant 0 : index
    %142 = vector.load %arg28[%c0_138, %c0_139] : memref<16x1xf32, #tpu.memory_space<vmem>>, vector<16x1xf32>
    tpu.vector_store %arg28[%c0_138, %c0_139], %141 {strides = array<i32>} : memref<16x1xf32, #tpu.memory_space<vmem>>, vector<16x1xf32>,
    %c0_i32_140 = arith.constant 0 : i32
    %143 = arith.cmpi eq, %arg1, %c0_i32_140 : i32
    %144 = arith.extui %143 : i1 to i32
    %c0_i32_141 = arith.constant 0 : i32
    %145 = arith.cmpi ne, %144, %c0_i32_141 : i32
    scf.if %145 {
      %c0_142 = arith.constant 0 : index
      %c0_143 = arith.constant 0 : index
      %146 = vector.load %arg28[%c0_142, %c0_143] : memref<16x1xf32, #tpu.memory_space<vmem>>, vector<16x1xf32>
      %cst_144 = arith.constant 6.250000e-02 : f32
      %147 = vector.broadcast %cst_144 : f32 to vector<16x1xf32>
      %148 = arith.mulf %146, %147 : vector<16x1xf32>
      %c0_145 = arith.constant 0 : index
      %c0_146 = arith.constant 0 : index
      %149 = vector.load %arg19[%c0_145, %c0_146] : memref<5x16xf32, #tpu.memory_space<vmem>>, vector<5x16xf32>
      %cst_147 = arith.constant dense<0.000000e+00> : vector<5x1xf32>
      %150 = tpu.matmul %149, %148, %cst_147 {dimension_numbers = #tpu.dot_dimension_numbers<[1], [0], [0], [1], [0, 0, 1, 1], [], []>} : vector<5x16xf32>, vector<16x1xf32>, vector<5x1xf32> -> vector<5x1xf32>
      %c0_148 = arith.constant 0 : index
      %c0_149 = arith.constant 0 : index
      %151 = vector.load %arg20[%c0_148, %c0_149] : memref<5x1xf32, #tpu.memory_space<vmem>>, vector<5x1xf32>
      %152 = arith.addf %150, %151 : vector<5x1xf32>
      %c0_150 = arith.constant 0 : index
      %c0_151 = arith.constant 0 : index
      %c0_152 = arith.constant 0 : index
      %153 = vector.load %arg21[%c0_150, %c0_151, %c0_152] : memref<1x5x1xf32, #tpu.memory_space<vmem>>, vector<1x5x1xf32>
      %154 = vector.shape_cast %153 : vector<1x5x1xf32> to vector<5x1xf32>
      %155 = vector.shape_cast %152 : vector<5x1xf32> to vector<1x5x1xf32>
      tpu.vector_store %arg21[%c0_150, %c0_151, %c0_152], %155 {strides = array<i32>} : memref<1x5x1xf32, #tpu.memory_space<vmem>>, vector<1x5x1xf32>,
    } else {
    }
    return
  }
  func.func @transform_0(%arg0: i32, %arg1: i32) -> (i32, i32, i32) {
    %c0_i32 = arith.constant 0 : i32
    %c0_i32_0 = arith.constant 0 : i32
    return %arg0, %c0_i32, %arg1 : i32, i32, i32
  }
  func.func @transform_1(%arg0: i32, %arg1: i32) -> (i32, i32) {
    %c0_i32 = arith.constant 0 : i32
    %c0_i32_0 = arith.constant 0 : i32
    %c0_i32_1 = arith.constant 0 : i32
    return %c0_i32, %c0_i32_0 : i32, i32
  }
  func.func @transform_2(%arg0: i32, %arg1: i32) -> (i32, i32) {
    %c0_i32 = arith.constant 0 : i32
    %c0_i32_0 = arith.constant 0 : i32
    %c0_i32_1 = arith.constant 0 : i32
    return %c0_i32, %c0_i32_0 : i32, i32
  }
  func.func @transform_3(%arg0: i32, %arg1: i32) -> (i32, i32) {
    %c0_i32 = arith.constant 0 : i32
    %c0_i32_0 = arith.constant 0 : i32
    %c0_i32_1 = arith.constant 0 : i32
    return %c0_i32, %c0_i32_0 : i32, i32
  }
  func.func @transform_4(%arg0: i32, %arg1: i32) -> (i32, i32) {
    %c0_i32 = arith.constant 0 : i32
    %c0_i32_0 = arith.constant 0 : i32
    %c0_i32_1 = arith.constant 0 : i32
    return %c0_i32, %c0_i32_0 : i32, i32
  }
  func.func @transform_5(%arg0: i32, %arg1: i32) -> (i32, i32) {
    %c0_i32 = arith.constant 0 : i32
    %c0_i32_0 = arith.constant 0 : i32
    %c0_i32_1 = arith.constant 0 : i32
    return %c0_i32, %c0_i32_0 : i32, i32
  }
  func.func @transform_6(%arg0: i32, %arg1: i32) -> (i32, i32) {
    %c0_i32 = arith.constant 0 : i32
    %c0_i32_0 = arith.constant 0 : i32
    %c0_i32_1 = arith.constant 0 : i32
    return %c0_i32, %c0_i32_0 : i32, i32
  }
  func.func @transform_7(%arg0: i32, %arg1: i32) -> (i32, i32) {
    %c0_i32 = arith.constant 0 : i32
    %c0_i32_0 = arith.constant 0 : i32
    %c0_i32_1 = arith.constant 0 : i32
    return %c0_i32, %c0_i32_0 : i32, i32
  }
  func.func @transform_8(%arg0: i32, %arg1: i32) -> (i32, i32) {
    %c0_i32 = arith.constant 0 : i32
    %c0_i32_0 = arith.constant 0 : i32
    %c0_i32_1 = arith.constant 0 : i32
    return %c0_i32, %c0_i32_0 : i32, i32
  }
  func.func @transform_9(%arg0: i32, %arg1: i32) -> (i32, i32) {
    %c0_i32 = arith.constant 0 : i32
    %c0_i32_0 = arith.constant 0 : i32
    %c0_i32_1 = arith.constant 0 : i32
    return %c0_i32, %c0_i32_0 : i32, i32
  }
  func.func @transform_10(%arg0: i32, %arg1: i32) -> (i32, i32) {
    %c0_i32 = arith.constant 0 : i32
    %c0_i32_0 = arith.constant 0 : i32
    %c0_i32_1 = arith.constant 0 : i32
    return %c0_i32, %c0_i32_0 : i32, i32
  }
  func.func @transform_11(%arg0: i32, %arg1: i32) -> (i32, i32) {
    %c0_i32 = arith.constant 0 : i32
    %c0_i32_0 = arith.constant 0 : i32
    %c0_i32_1 = arith.constant 0 : i32
    return %c0_i32, %c0_i32_0 : i32, i32
  }
  func.func @transform_12(%arg0: i32, %arg1: i32) -> (i32, i32) {
    %c0_i32 = arith.constant 0 : i32
    %c0_i32_0 = arith.constant 0 : i32
    %c0_i32_1 = arith.constant 0 : i32
    return %c0_i32, %c0_i32_0 : i32, i32
  }
  func.func @transform_13(%arg0: i32, %arg1: i32) -> (i32, i32) {
    %c0_i32 = arith.constant 0 : i32
    %c0_i32_0 = arith.constant 0 : i32
    %c0_i32_1 = arith.constant 0 : i32
    return %c0_i32, %c0_i32_0 : i32, i32
  }
  func.func @transform_14(%arg0: i32, %arg1: i32) -> (i32, i32) {
    %c0_i32 = arith.constant 0 : i32
    %c0_i32_0 = arith.constant 0 : i32
    %c0_i32_1 = arith.constant 0 : i32
    return %c0_i32, %c0_i32_0 : i32, i32
  }
  func.func @transform_15(%arg0: i32, %arg1: i32) -> (i32, i32) {
    %c0_i32 = arith.constant 0 : i32
    %c0_i32_0 = arith.constant 0 : i32
    %c0_i32_1 = arith.constant 0 : i32
    return %c0_i32, %c0_i32_0 : i32, i32
  }
  func.func @transform_16(%arg0: i32, %arg1: i32) -> (i32, i32) {
    %c0_i32 = arith.constant 0 : i32
    %c0_i32_0 = arith.constant 0 : i32
    %c0_i32_1 = arith.constant 0 : i32
    return %c0_i32, %c0_i32_0 : i32, i32
  }
  func.func @transform_17(%arg0: i32, %arg1: i32) -> (i32, i32) {
    %c0_i32 = arith.constant 0 : i32
    %c0_i32_0 = arith.constant 0 : i32
    %c0_i32_1 = arith.constant 0 : i32
    return %c0_i32, %c0_i32_0 : i32, i32
  }
  func.func @transform_18(%arg0: i32, %arg1: i32) -> (i32, i32) {
    %c0_i32 = arith.constant 0 : i32
    %c0_i32_0 = arith.constant 0 : i32
    %c0_i32_1 = arith.constant 0 : i32
    return %c0_i32, %c0_i32_0 : i32, i32
  }
  func.func @transform_19(%arg0: i32, %arg1: i32) -> (i32, i32, i32) {
    %c0_i32 = arith.constant 0 : i32
    %c0_i32_0 = arith.constant 0 : i32
    %c0_i32_1 = arith.constant 0 : i32
    return %arg0, %c0_i32, %c0_i32_0 : i32, i32, i32
  }
}

</mosaic_0001>

<llo_original>
// kernel: audio_tcn_forward.1
$region0: #{audio_tcn_forward.1}
  #allocation0 [shape = 'u32[]', space=smem, size = 0x4, offset = 0x4, fixed_abs, tag = 'smem constant byte address 0x4 - core index']
  #allocation1 [shape = 'u32[144,128]{1,0:T(1,128)}', space=vmem, size = 0x12000, scoped, tag = 'internal scratch']
  #allocation2 [shape = 'f32[4,144]{1,0:T(4,128)}', space=vmem, size = 0x1000, scoped, tag = 'scratch operand']
  #allocation3 [shape = 'f32[8,144]{1,0:T(8,128)}', space=vmem, size = 0x2000, scoped, tag = 'scratch operand']
  #allocation4 [shape = 'f32[8,144]{1,0:T(8,128)}', space=vmem, size = 0x2000, scoped, tag = 'scratch operand']
  #allocation5 [shape = 'f32[8,144]{1,0:T(8,128)}', space=vmem, size = 0x2000, scoped, tag = 'scratch operand']
  #allocation6 [shape = 'f32[8,144]{1,0:T(8,128)}', space=vmem, size = 0x2000, scoped, tag = 'scratch operand']
  #allocation7 [shape = 'f32[16,144]{1,0:T(8,128)}', space=vmem, size = 0x4000, scoped, tag = 'scratch operand']
  #allocation8 [shape = 'f32[16,1]{1,0:T(8,128)}', space=vmem, size = 0x2000, scoped, tag = 'scratch operand']
  %s0 = inlined_call_operand.vmem [shape: f32[2,4,16], index: 0, kind: input, shape index: {}]
  %s1 = inlined_call_operand.vmem [shape: f32[8,12], index: 1, kind: input, shape index: {}]
  %s2 = inlined_call_operand.vmem [shape: f32[8,1], index: 2, kind: input, shape index: {}]
  %s3 = inlined_call_operand.vmem [shape: f32[8,24], index: 3, kind: input, shape index: {}]
  %s4 = inlined_call_operand.vmem [shape: f32[8,1], index: 4, kind: input, shape index: {}]
  %s5 = inlined_call_operand.vmem [shape: f32[8,4], index: 5, kind: input, shape index: {}]
  %s6 = inlined_call_operand.vmem [shape: f32[8,1], index: 6, kind: input, shape index: {}]
  %s7 = inlined_call_operand.vmem [shape: f32[8,24], index: 7, kind: input, shape index: {}]
  %s8 = inlined_call_operand.vmem [shape: f32[8,1], index: 8, kind: input, shape index: {}]
  %s9 = inlined_call_operand.vmem [shape: f32[8,24], index: 9, kind: input, shape index: {}]
  %s10 = inlined_call_operand.vmem [shape: f32[8,1], index: 10, kind: input, shape index: {}]
  %s11 = inlined_call_operand.vmem [shape: f32[16,24], index: 11, kind: input, shape index: {}]
  %s12 = inlined_call_operand.vmem [shape: f32[16,1], index: 12, kind: input, shape index: {}]
  %s13 = inlined_call_operand.vmem [shape: f32[16,48], index: 13, kind: input, shape index: {}]
  %s14 = inlined_call_operand.vmem [shape: f32[16,1], index: 14, kind: input, shape index: {}]
  %s15 = inlined_call_operand.vmem [shape: f32[16,8], index: 15, kind: input, shape index: {}]
  %s16 = inlined_call_operand.vmem [shape: f32[16,1], index: 16, kind: input, shape index: {}]
  %s17 = inlined_call_operand.vmem [shape: f32[5,16], index: 17, kind: input, shape index: {}]
  %s18 = inlined_call_operand.vmem [shape: f32[5,1], index: 18, kind: input, shape index: {}]
  %s19 = inlined_call_operand.vmem [shape: f32[2,5,1], index: 19, kind: output, shape index: {}]
  %s20 = sld [smem:[#allocation0]]
  $region141: #{audio_tcn_forward.1} parent=0
    _
  %s22 = ssub.s32 1, %s20
  %s23 = scalar_select 0, %s22, %s20
  loop: start=0, step=1, limit=4
  $region2: #{audio_tcn_forward.1} parent=0 // loop_pre_header
    _
  $region3: #{audio_tcn_forward.1} parent=0 // loop_header
    %s25 = sphi 0, %s29
    %p26 = scmp.ge.s32.totalorder %s25, 4
    %s32 = sphi 0, %s44
    %s33 = sphi 0, %s40
    %s34 = sphi 0, %s32
    %s35 = sphi 0, %s33
    %s36 = sphi 0, %s34
    %s37 = sphi 0, %s35
    %s49 = sphi 0, %s51
    %s52 = sphi 0, %s49
    %s53 = sphi 0, %s52
    %s69 = sphi 0, %s53
    %s73 = sphi 0, %s73
    %s75 = sphi 0, %s73
    %s76 = sphi 0, %s75
    %s90 = sphi 0, %s76
    %s94 = sphi 0, %s94
    %s96 = sphi 0, %s94
    %s97 = sphi 0, %s96
    %s111 = sphi 0, %s97
    %s115 = sphi 0, %s115
    %s117 = sphi 0, %s115
    %s118 = sphi 0, %s117
    %s132 = sphi 0, %s118
    %s136 = sphi 0, %s136
    %s138 = sphi 0, %s136
    %s139 = sphi 0, %s138
    %s153 = sphi 0, %s139
    %s157 = sphi 0, %s157
    %s159 = sphi 0, %s157
    %s160 = sphi 0, %s159
    %s174 = sphi 0, %s160
    %s178 = sphi 0, %s178
    %s180 = sphi 0, %s178
    %s181 = sphi 0, %s180
    %s195 = sphi 0, %s181
    %s199 = sphi 0, %s199
    %s201 = sphi 0, %s199
    %s202 = sphi 0, %s201
    %s216 = sphi 0, %s202
    %s220 = sphi 0, %s220
    %s222 = sphi 0, %s220
    %s223 = sphi 0, %s222
    %s237 = sphi 0, %s223
    %s241 = sphi 0, %s241
    %s243 = sphi 0, %s241
    %s244 = sphi 0, %s243
    %s258 = sphi 0, %s244
    %s262 = sphi 0, %s262
    %s264 = sphi 0, %s262
    %s265 = sphi 0, %s264
    %s279 = sphi 0, %s265
    %s283 = sphi 0, %s283
    %s285 = sphi 0, %s283
    %s286 = sphi 0, %s285
    %s300 = sphi 0, %s286
    %s304 = sphi 0, %s304
    %s306 = sphi 0, %s304
    %s307 = sphi 0, %s306
    %s321 = sphi 0, %s307
    %s325 = sphi 0, %s325
    %s327 = sphi 0, %s325
    %s328 = sphi 0, %s327
    %s342 = sphi 0, %s328
    %s346 = sphi 0, %s346
    %s348 = sphi 0, %s346
    %s349 = sphi 0, %s348
    %s363 = sphi 0, %s349
    %s367 = sphi 0, %s367
    %s369 = sphi 0, %s367
    %s370 = sphi 0, %s369
    %s384 = sphi 0, %s370
    %s388 = sphi 0, %s388
    %s390 = sphi 0, %s388
    %s391 = sphi 0, %s390
    %s405 = sphi 0, %s391
    %s409 = sphi 0, %s409
    %s411 = sphi 0, %s409
    %s412 = sphi 0, %s411
    %s426 = sphi 0, %s412
    %s430 = sphi 0, %s430
    %s432 = sphi 0, %s430
    %s433 = sphi 0, %s432
    %s447 = sphi 0, %s433
    %s453 = sphi 0, %s455
    %s456 = sphi 0, %s453
    %s457 = sphi 0, %s456
    %s473 = sphi 0, %s457
  $region4: #{audio_tcn_forward.1} parent=0 // loop_header_branch
    %28 = sbr.rel (%p26) target = $region8
  $region5: #{audio_tcn_forward.1} parent=0 // loop_body
    %s30 = ssub.s32 %s25, 1
    %s31 = ssub.s32 %s25, 2
    %s38 = sadd.s32 1, %s33
    %p39 = scmp.ge.s32.totalorder %s38, 1
    %s40 = scalar_select %p39, 0, %s38
    %s41 = sadd.s32 1, %s32
    %s42 = scalar_select %p39, %s41, %s32
    %p43 = scmp.ge.s32.totalorder %s42, 2
    %s44 = scalar_select %p43, 0, %s42
    %s45 = ssub.s32 %s32, %s44
    %s46 = ssub.s32 %s33, %s40
    %s47 = sor.u32 %s45, %s46
    %p48 = scmp.eq.s32.totalorder %s47, 0
    %s50 = sadd.s32 %s49, 1
    %s51 = scalar_select %p48, %s49, %s50
    %p54 = pneg %p48
    %p55 = scmp.eq.s32.totalorder %s25, 1
    %p56 = por %p54, %p55
    %p57 = scmp.ne.s32.totalorder %s49, %s52
    %p58 = scmp.eq.s32.totalorder %s25, 0
    %p59 = por %p57, %p58
    %p60 = scmp.ne.s32.totalorder %s49, %s52
    %p61 = scmp.eq.s32.totalorder %s30, 1
    %p62 = por %p60, %p61
    %p63 = scmp.ne.s32.totalorder %s52, %s53
    %p64 = scmp.eq.s32.totalorder %s30, 0
    %p65 = por %p63, %p64
    %p66 = scmp.ne.s32.totalorder %s52, %s53
    %p67 = scmp.eq.s32.totalorder %s31, 1
    %p68 = por %p66, %p67
    %p70 = scmp.ne.s32.totalorder %s53, %s69
    %p71 = scmp.eq.s32.totalorder %s31, 0
    %p72 = por %p70, %p71
    %s74 = sadd.s32 %s73, 1
    %p77 = scmp.eq.s32.totalorder %s25, 1
    %p78 = scmp.ne.s32.totalorder %s73, %s75
    %p79 = scmp.eq.s32.totalorder %s25, 0
    %p80 = por %p78, %p79
    %p81 = scmp.ne.s32.totalorder %s73, %s75
    %p82 = scmp.eq.s32.totalorder %s30, 1
    %p83 = por %p81, %p82
    %p84 = scmp.ne.s32.totalorder %s75, %s76
    %p85 = scmp.eq.s32.totalorder %s30, 0
    %p86 = por %p84, %p85
    %p87 = scmp.ne.s32.totalorder %s75, %s76
    %p88 = scmp.eq.s32.totalorder %s31, 1
    %p89 = por %p87, %p88
    %p91 = scmp.ne.s32.totalorder %s76, %s90
    %p92 = scmp.eq.s32.totalorder %s31, 0
    %p93 = por %p91, %p92
    %s95 = sadd.s32 %s94, 1
    %p98 = scmp.eq.s32.totalorder %s25, 1
    %p99 = scmp.ne.s32.totalorder %s94, %s96
    %p100 = scmp.eq.s32.totalorder %s25, 0
    %p101 = por %p99, %p100
    %p102 = scmp.ne.s32.totalorder %s94, %s96
    %p103 = scmp.eq.s32.totalorder %s30, 1
    %p104 = por %p102, %p103
    %p105 = scmp.ne.s32.totalorder %s96, %s97
    %p106 = scmp.eq.s32.totalorder %s30, 0
    %p107 = por %p105, %p106
    %p108 = scmp.ne.s32.totalorder %s96, %s97
    %p109 = scmp.eq.s32.totalorder %s31, 1
    %p110 = por %p108, %p109
    %p112 = scmp.ne.s32.totalorder %s97, %s111
    %p113 = scmp.eq.s32.totalorder %s31, 0
    %p114 = por %p112, %p113
    %s116 = sadd.s32 %s115, 1
    %p119 = scmp.eq.s32.totalorder %s25, 1
    %p120 = scmp.ne.s32.totalorder %s115, %s117
    %p121 = scmp.eq.s32.totalorder %s25, 0
    %p122 = por %p120, %p121
    %p123 = scmp.ne.s32.totalorder %s115, %s117
    %p124 = scmp.eq.s32.totalorder %s30, 1
    %p125 = por %p123, %p124
    %p126 = scmp.ne.s32.totalorder %s117, %s118
    %p127 = scmp.eq.s32.totalorder %s30, 0
    %p128 = por %p126, %p127
    %p129 = scmp.ne.s32.totalorder %s117, %s118
    %p130 = scmp.eq.s32.totalorder %s31, 1
    %p131 = por %p129, %p130
    %p133 = scmp.ne.s32.totalorder %s118, %s132
    %p134 = scmp.eq.s32.totalorder %s31, 0
    %p135 = por %p133, %p134
    %s137 = sadd.s32 %s136, 1
    %p140 = scmp.eq.s32.totalorder %s25, 1
    %p141 = scmp.ne.s32.totalorder %s136, %s138
    %p142 = scmp.eq.s32.totalorder %s25, 0
    %p143 = por %p141, %p142
    %p144 = scmp.ne.s32.totalorder %s136, %s138
    %p145 = scmp.eq.s32.totalorder %s30, 1
    %p146 = por %p144, %p145
    %p147 = scmp.ne.s32.totalorder %s138, %s139
    %p148 = scmp.eq.s32.totalorder %s30, 0
    %p149 = por %p147, %p148
    %p150 = scmp.ne.s32.totalorder %s138, %s139
    %p151 = scmp.eq.s32.totalorder %s31, 1
    %p152 = por %p150, %p151
    %p154 = scmp.ne.s32.totalorder %s139, %s153
    %p155 = scmp.eq.s32.totalorder %s31, 0
    %p156 = por %p154, %p155
    %s158 = sadd.s32 %s157, 1
    %p161 = scmp.eq.s32.totalorder %s25, 1
    %p162 = scmp.ne.s32.totalorder %s157, %s159
    %p163 = scmp.eq.s32.totalorder %s25, 0
    %p164 = por %p162, %p163
    %p165 = scmp.ne.s32.totalorder %s157, %s159
    %p166 = scmp.eq.s32.totalorder %s30, 1
    %p167 = por %p165, %p166
    %p168 = scmp.ne.s32.totalorder %s159, %s160
    %p169 = scmp.eq.s32.totalorder %s30, 0
    %p170 = por %p168, %p169
    %p171 = scmp.ne.s32.totalorder %s159, %s160
    %p172 = scmp.eq.s32.totalorder %s31, 1
    %p173 = por %p171, %p172
    %p175 = scmp.ne.s32.totalorder %s160, %s174
    %p176 = scmp.eq.s32.totalorder %s31, 0
    %p177 = por %p175, %p176
    %s179 = sadd.s32 %s178, 1
    %p182 = scmp.eq.s32.totalorder %s25, 1
    %p183 = scmp.ne.s32.totalorder %s178, %s180
    %p184 = scmp.eq.s32.totalorder %s25, 0
    %p185 = por %p183, %p184
    %p186 = scmp.ne.s32.totalorder %s178, %s180
    %p187 = scmp.eq.s32.totalorder %s30, 1
    %p188 = por %p186, %p187
    %p189 = scmp.ne.s32.totalorder %s180, %s181
    %p190 = scmp.eq.s32.totalorder %s30, 0
    %p191 = por %p189, %p190
    %p192 = scmp.ne.s32.totalorder %s180, %s181
    %p193 = scmp.eq.s32.totalorder %s31, 1
    %p194 = por %p192, %p193
    %p196 = scmp.ne.s32.totalorder %s181, %s195
    %p197 = scmp.eq.s32.totalorder %s31, 0
    %p198 = por %p196, %p197
    %s200 = sadd.s32 %s199, 1
    %p203 = scmp.eq.s32.totalorder %s25, 1
    %p204 = scmp.ne.s32.totalorder %s199, %s201
    %p205 = scmp.eq.s32.totalorder %s25, 0
    %p206 = por %p204, %p205
    %p207 = scmp.ne.s32.totalorder %s199, %s201
    %p208 = scmp.eq.s32.totalorder %s30, 1
    %p209 = por %p207, %p208
    %p210 = scmp.ne.s32.totalorder %s201, %s202
    %p211 = scmp.eq.s32.totalorder %s30, 0
    %p212 = por %p210, %p211
    %p213 = scmp.ne.s32.totalorder %s201, %s202
    %p214 = scmp.eq.s32.totalorder %s31, 1
    %p215 = por %p213, %p214
    %p217 = scmp.ne.s32.totalorder %s202, %s216
    %p218 = scmp.eq.s32.totalorder %s31, 0
    %p219 = por %p217, %p218
    %s221 = sadd.s32 %s220, 1
    %p224 = scmp.eq.s32.totalorder %s25, 1
    %p225 = scmp.ne.s32.totalorder %s220, %s222
    %p226 = scmp.eq.s32.totalorder %s25, 0
    %p227 = por %p225, %p226
    %p228 = scmp.ne.s32.totalorder %s220, %s222
    %p229 = scmp.eq.s32.totalorder %s30, 1
    %p230 = por %p228, %p229
    %p231 = scmp.ne.s32.totalorder %s222, %s223
    %p232 = scmp.eq.s32.totalorder %s30, 0
    %p233 = por %p231, %p232
    %p234 = scmp.ne.s32.totalorder %s222, %s223
    %p235 = scmp.eq.s32.totalorder %s31, 1
    %p236 = por %p234, %p235
    %p238 = scmp.ne.s32.totalorder %s223, %s237
    %p239 = scmp.eq.s32.totalorder %s31, 0
    %p240 = por %p238, %p239
    %s242 = sadd.s32 %s241, 1
    %p245 = scmp.eq.s32.totalorder %s25, 1
    %p246 = scmp.ne.s32.totalorder %s241, %s243
    %p247 = scmp.eq.s32.totalorder %s25, 0
    %p248 = por %p246, %p247
    %p249 = scmp.ne.s32.totalorder %s241, %s243
    %p250 = scmp.eq.s32.totalorder %s30, 1
    %p251 = por %p249, %p250
    %p252 = scmp.ne.s32.totalorder %s243, %s244
    %p253 = scmp.eq.s32.totalorder %s30, 0
    %p254 = por %p252, %p253
    %p255 = scmp.ne.s32.totalorder %s243, %s244
    %p256 = scmp.eq.s32.totalorder %s31, 1
    %p257 = por %p255, %p256
    %p259 = scmp.ne.s32.totalorder %s244, %s258
    %p260 = scmp.eq.s32.totalorder %s31, 0
    %p261 = por %p259, %p260
    %s263 = sadd.s32 %s262, 1
    %p266 = scmp.eq.s32.totalorder %s25, 1
    %p267 = scmp.ne.s32.totalorder %s262, %s264
    %p268 = scmp.eq.s32.totalorder %s25, 0
    %p269 = por %p267, %p268
    %p270 = scmp.ne.s32.totalorder %s262, %s264
    %p271 = scmp.eq.s32.totalorder %s30, 1
    %p272 = por %p270, %p271
    %p273 = scmp.ne.s32.totalorder %s264, %s265
    %p274 = scmp.eq.s32.totalorder %s30, 0
    %p275 = por %p273, %p274
    %p276 = scmp.ne.s32.totalorder %s264, %s265
    %p277 = scmp.eq.s32.totalorder %s31, 1
    %p278 = por %p276, %p277
    %p280 = scmp.ne.s32.totalorder %s265, %s279
    %p281 = scmp.eq.s32.totalorder %s31, 0
    %p282 = por %p280, %p281
    %s284 = sadd.s32 %s283, 1
    %p287 = scmp.eq.s32.totalorder %s25, 1
    %p288 = scmp.ne.s32.totalorder %s283, %s285
    %p289 = scmp.eq.s32.totalorder %s25, 0
    %p290 = por %p288, %p289
    %p291 = scmp.ne.s32.totalorder %s283, %s285
    %p292 = scmp.eq.s32.totalorder %s30, 1
    %p293 = por %p291, %p292
    %p294 = scmp.ne.s32.totalorder %s285, %s286
    %p295 = scmp.eq.s32.totalorder %s30, 0
    %p296 = por %p294, %p295
    %p297 = scmp.ne.s32.totalorder %s285, %s286
    %p298 = scmp.eq.s32.totalorder %s31, 1
    %p299 = por %p297, %p298
    %p301 = scmp.ne.s32.totalorder %s286, %s300
    %p302 = scmp.eq.s32.totalorder %s31, 0
    %p303 = por %p301, %p302
    %s305 = sadd.s32 %s304, 1
    %p308 = scmp.eq.s32.totalorder %s25, 1
    %p309 = scmp.ne.s32.totalorder %s304, %s306
    %p310 = scmp.eq.s32.totalorder %s25, 0
    %p311 = por %p309, %p310
    %p312 = scmp.ne.s32.totalorder %s304, %s306
    %p313 = scmp.eq.s32.totalorder %s30, 1
    %p314 = por %p312, %p313
    %p315 = scmp.ne.s32.totalorder %s306, %s307
    %p316 = scmp.eq.s32.totalorder %s30, 0
    %p317 = por %p315, %p316
    %p318 = scmp.ne.s32.totalorder %s306, %s307
    %p319 = scmp.eq.s32.totalorder %s31, 1
    %p320 = por %p318, %p319
    %p322 = scmp.ne.s32.totalorder %s307, %s321
    %p323 = scmp.eq.s32.totalorder %s31, 0
    %p324 = por %p322, %p323
    %s326 = sadd.s32 %s325, 1
    %p329 = scmp.eq.s32.totalorder %s25, 1
    %p330 = scmp.ne.s32.totalorder %s325, %s327
    %p331 = scmp.eq.s32.totalorder %s25, 0
    %p332 = por %p330, %p331
    %p333 = scmp.ne.s32.totalorder %s325, %s327
    %p334 = scmp.eq.s32.totalorder %s30, 1
    %p335 = por %p333, %p334
    %p336 = scmp.ne.s32.totalorder %s327, %s328
    %p337 = scmp.eq.s32.totalorder %s30, 0
    %p338 = por %p336, %p337
    %p339 = scmp.ne.s32.totalorder %s327, %s328
    %p340 = scmp.eq.s32.totalorder %s31, 1
    %p341 = por %p339, %p340
    %p343 = scmp.ne.s32.totalorder %s328, %s342
    %p344 = scmp.eq.s32.totalorder %s31, 0
    %p345 = por %p343, %p344
    %s347 = sadd.s32 %s346, 1
    %p350 = scmp.eq.s32.totalorder %s25, 1
    %p351 = scmp.ne.s32.totalorder %s346, %s348
    %p352 = scmp.eq.s32.totalorder %s25, 0
    %p353 = por %p351, %p352
    %p354 = scmp.ne.s32.totalorder %s346, %s348
    %p355 = scmp.eq.s32.totalorder %s30, 1
    %p356 = por %p354, %p355
    %p357 = scmp.ne.s32.totalorder %s348, %s349
    %p358 = scmp.eq.s32.totalorder %s30, 0
    %p359 = por %p357, %p358
    %p360 = scmp.ne.s32.totalorder %s348, %s349
    %p361 = scmp.eq.s32.totalorder %s31, 1
    %p362 = por %p360, %p361
    %p364 = scmp.ne.s32.totalorder %s349, %s363
    %p365 = scmp.eq.s32.totalorder %s31, 0
    %p366 = por %p364, %p365
    %s368 = sadd.s32 %s367, 1
    %p371 = scmp.eq.s32.totalorder %s25, 1
    %p372 = scmp.ne.s32.totalorder %s367, %s369
    %p373 = scmp.eq.s32.totalorder %s25, 0
    %p374 = por %p372, %p373
    %p375 = scmp.ne.s32.totalorder %s367, %s369
    %p376 = scmp.eq.s32.totalorder %s30, 1
    %p377 = por %p375, %p376
    %p378 = scmp.ne.s32.totalorder %s369, %s370
    %p379 = scmp.eq.s32.totalorder %s30, 0
    %p380 = por %p378, %p379
    %p381 = scmp.ne.s32.totalorder %s369, %s370
    %p382 = scmp.eq.s32.totalorder %s31, 1
    %p383 = por %p381, %p382
    %p385 = scmp.ne.s32.totalorder %s370, %s384
    %p386 = scmp.eq.s32.totalorder %s31, 0
    %p387 = por %p385, %p386
    %s389 = sadd.s32 %s388, 1
    %p392 = scmp.eq.s32.totalorder %s25, 1
    %p393 = scmp.ne.s32.totalorder %s388, %s390
    %p394 = scmp.eq.s32.totalorder %s25, 0
    %p395 = por %p393, %p394
    %p396 = scmp.ne.s32.totalorder %s388, %s390
    %p397 = scmp.eq.s32.totalorder %s30, 1
    %p398 = por %p396, %p397
    %p399 = scmp.ne.s32.totalorder %s390, %s391
    %p400 = scmp.eq.s32.totalorder %s30, 0
    %p401 = por %p399, %p400
    %p402 = scmp.ne.s32.totalorder %s390, %s391
    %p403 = scmp.eq.s32.totalorder %s31, 1
    %p404 = por %p402, %p403
    %p406 = scmp.ne.s32.totalorder %s391, %s405
    %p407 = scmp.eq.s32.totalorder %s31, 0
    %p408 = por %p406, %p407
    %s410 = sadd.s32 %s409, 1
    %p413 = scmp.eq.s32.totalorder %s25, 1
    %p414 = scmp.ne.s32.totalorder %s409, %s411
    %p415 = scmp.eq.s32.totalorder %s25, 0
    %p416 = por %p414, %p415
    %p417 = scmp.ne.s32.totalorder %s409, %s411
    %p418 = scmp.eq.s32.totalorder %s30, 1
    %p419 = por %p417, %p418
    %p420 = scmp.ne.s32.totalorder %s411, %s412
    %p421 = scmp.eq.s32.totalorder %s30, 0
    %p422 = por %p420, %p421
    %p423 = scmp.ne.s32.totalorder %s411, %s412
    %p424 = scmp.eq.s32.totalorder %s31, 1
    %p425 = por %p423, %p424
    %p427 = scmp.ne.s32.totalorder %s412, %s426
    %p428 = scmp.eq.s32.totalorder %s31, 0
    %p429 = por %p427, %p428
    %s431 = sadd.s32 %s430, 1
    %p434 = scmp.eq.s32.totalorder %s25, 1
    %p435 = scmp.ne.s32.totalorder %s430, %s432
    %p436 = scmp.eq.s32.totalorder %s25, 0
    %p437 = por %p435, %p436
    %p438 = scmp.ne.s32.totalorder %s430, %s432
    %p439 = scmp.eq.s32.totalorder %s30, 1
    %p440 = por %p438, %p439
    %p441 = scmp.ne.s32.totalorder %s432, %s433
    %p442 = scmp.eq.s32.totalorder %s30, 0
    %p443 = por %p441, %p442
    %p444 = scmp.ne.s32.totalorder %s432, %s433
    %p445 = scmp.eq.s32.totalorder %s31, 1
    %p446 = por %p444, %p445
    %p448 = scmp.ne.s32.totalorder %s433, %s447
    %p449 = scmp.eq.s32.totalorder %s31, 0
    %p450 = por %p448, %p449
    %s451 = ssub.s32 %s32, %s44
    %p452 = scmp.eq.s32.totalorder %s451, 0
    %s454 = sadd.s32 %s453, 1
    %s455 = scalar_select %p452, %s453, %s454
    %p458 = pneg %p452
    %p459 = scmp.eq.s32.totalorder %s25, 1
    %p460 = por %p458, %p459
    %p461 = scmp.ne.s32.totalorder %s453, %s456
    %p462 = scmp.eq.s32.totalorder %s25, 0
    %p463 = por %p461, %p462
    %p464 = scmp.ne.s32.totalorder %s453, %s456
    %p465 = scmp.eq.s32.totalorder %s30, 1
    %p466 = por %p464, %p465
    %p467 = scmp.ne.s32.totalorder %s456, %s457
    %p468 = scmp.eq.s32.totalorder %s30, 0
    %p469 = por %p467, %p468
    %p470 = scmp.ne.s32.totalorder %s456, %s457
    %p471 = scmp.eq.s32.totalorder %s31, 1
    %p472 = por %p470, %p471
    %p474 = scmp.ne.s32.totalorder %s457, %s473
    %p475 = scmp.eq.s32.totalorder %s31, 0
    %p476 = por %p474, %p475
    %p477 = scmp.le.s32.totalorder 1, %s25
    %p478 = scmp.lt.s32.totalorder %s25, 3
    %p479 = pnand %p477, %p478
    %p480 = pneg %p479
    // Predicated region
    $region9: #{audio_tcn_forward.1} parent=5 // pred_check
      _
    $region10: #{audio_tcn_forward.1} parent=5 // pred_check_branch
      %482 = sbr.rel (%p479) target = $region12
    $region11: #{audio_tcn_forward.1} parent=5 // pred_region
      %s483 = ssub.s32 %s25, 1
      // Predicated region
      $region13: #{audio_tcn_forward.1} parent=11 // pred_check
        %p484 = pneg %p86
      $region14: #{audio_tcn_forward.1} parent=11 // pred_check_branch
        %486 = sbr.rel (%p484) target = $region16
      $region15: #{audio_tcn_forward.1} parent=11 // pred_region
        _
      $region16: #{audio_tcn_forward.1} parent=11 // pred_fallthru
        _
      // Predicated region
      $region17: #{audio_tcn_forward.1} parent=11 // pred_check
        %p487 = pneg %p107
      $region18: #{audio_tcn_forward.1} parent=11 // pred_check_branch
        %489 = sbr.rel (%p487) target = $region20
      $region19: #{audio_tcn_forward.1} parent=11 // pred_region
        _
      $region20: #{audio_tcn_forward.1} parent=11 // pred_fallthru
        _
      // Predicated region
      $region21: #{audio_tcn_forward.1} parent=11 // pred_check
        %p490 = pneg %p128
      $region22: #{audio_tcn_forward.1} parent=11 // pred_check_branch
        %492 = sbr.rel (%p490) target = $region24
      $region23: #{audio_tcn_forward.1} parent=11 // pred_region
        _
      $region24: #{audio_tcn_forward.1} parent=11 // pred_fallthru
        _
      // Predicated region
      $region25: #{audio_tcn_forward.1} parent=11 // pred_check
        %p493 = pneg %p149
      $region26: #{audio_tcn_forward.1} parent=11 // pred_check_branch
        %495 = sbr.rel (%p493) target = $region28
      $region27: #{audio_tcn_forward.1} parent=11 // pred_region
        _
      $region28: #{audio_tcn_forward.1} parent=11 // pred_fallthru
        _
      // Predicated region
      $region29: #{audio_tcn_forward.1} parent=11 // pred_check
        %p496 = pneg %p170
      $region30: #{audio_tcn_forward.1} parent=11 // pred_check_branch
        %498 = sbr.rel (%p496) target = $region32
      $region31: #{audio_tcn_forward.1} parent=11 // pred_region
        _
      $region32: #{audio_tcn_forward.1} parent=11 // pred_fallthru
        _
      // Predicated region
      $region33: #{audio_tcn_forward.1} parent=11 // pred_check
        %p499 = pneg %p191
      $region34: #{audio_tcn_forward.1} parent=11 // pred_check_branch
        %501 = sbr.rel (%p499) target = $region36
      $region35: #{audio_tcn_forward.1} parent=11 // pred_region
        _
      $region36: #{audio_tcn_forward.1} parent=11 // pred_fallthru
        _
      // Predicated region
      $region37: #{audio_tcn_forward.1} parent=11 // pred_check
        %p502 = pneg %p212
      $region38: #{audio_tcn_forward.1} parent=11 // pred_check_branch
        %504 = sbr.rel (%p502) target = $region40
      $region39: #{audio_tcn_forward.1} parent=11 // pred_region
        _
      $region40: #{audio_tcn_forward.1} parent=11 // pred_fallthru
        _
      // Predicated region
      $region41: #{audio_tcn_forward.1} parent=11 // pred_check
        %p505 = pneg %p233
      $region42: #{audio_tcn_forward.1} parent=11 // pred_check_branch
        %507 = sbr.rel (%p505) target = $region44
      $region43: #{audio_tcn_forward.1} parent=11 // pred_region
        _
      $region44: #{audio_tcn_forward.1} parent=11 // pred_fallthru
        _
      // Predicated region
      $region45: #{audio_tcn_forward.1} parent=11 // pred_check
        %p508 = pneg %p254
      $region46: #{audio_tcn_forward.1} parent=11 // pred_check_branch
        %510 = sbr.rel (%p508) target = $region48
      $region47: #{audio_tcn_forward.1} parent=11 // pred_region
        _
      $region48: #{audio_tcn_forward.1} parent=11 // pred_fallthru
        _
      // Predicated region
      $region49: #{audio_tcn_forward.1} parent=11 // pred_check
        %p511 = pneg %p275
      $region50: #{audio_tcn_forward.1} parent=11 // pred_check_branch
        %513 = sbr.rel (%p511) target = $region52
      $region51: #{audio_tcn_forward.1} parent=11 // pred_region
        _
      $region52: #{audio_tcn_forward.1} parent=11 // pred_fallthru
        _
      // Predicated region
      $region53: #{audio_tcn_forward.1} parent=11 // pred_check
        %p514 = pneg %p296
      $region54: #{audio_tcn_forward.1} parent=11 // pred_check_branch
        %516 = sbr.rel (%p514) target = $region56
      $region55: #{audio_tcn_forward.1} parent=11 // pred_region
        _
      $region56: #{audio_tcn_forward.1} parent=11 // pred_fallthru
        _
      // Predicated region
      $region57: #{audio_tcn_forward.1} parent=11 // pred_check
        %p517 = pneg %p317
      $region58: #{audio_tcn_forward.1} parent=11 // pred_check_branch
        %519 = sbr.rel (%p517) target = $region60
      $region59: #{audio_tcn_forward.1} parent=11 // pred_region
        _
      $region60: #{audio_tcn_forward.1} parent=11 // pred_fallthru
        _
      // Predicated region
      $region61: #{audio_tcn_forward.1} parent=11 // pred_check
        %p520 = pneg %p338
      $region62: #{audio_tcn_forward.1} parent=11 // pred_check_branch
        %522 = sbr.rel (%p520) target = $region64
      $region63: #{audio_tcn_forward.1} parent=11 // pred_region
        _
      $region64: #{audio_tcn_forward.1} parent=11 // pred_fallthru
        _
      // Predicated region
      $region65: #{audio_tcn_forward.1} parent=11 // pred_check
        %p523 = pneg %p359
      $region66: #{audio_tcn_forward.1} parent=11 // pred_check_branch
        %525 = sbr.rel (%p523) target = $region68
      $region67: #{audio_tcn_forward.1} parent=11 // pred_region
        _
      $region68: #{audio_tcn_forward.1} parent=11 // pred_fallthru
        _
      // Predicated region
      $region69: #{audio_tcn_forward.1} parent=11 // pred_check
        %p526 = pneg %p380
      $region70: #{audio_tcn_forward.1} parent=11 // pred_check_branch
        %528 = sbr.rel (%p526) target = $region72
      $region71: #{audio_tcn_forward.1} parent=11 // pred_region
        _
      $region72: #{audio_tcn_forward.1} parent=11 // pred_fallthru
        _
      // Predicated region
      $region73: #{audio_tcn_forward.1} parent=11 // pred_check
        %p529 = pneg %p401
      $region74: #{audio_tcn_forward.1} parent=11 // pred_check_branch
        %531 = sbr.rel (%p529) target = $region76
      $region75: #{audio_tcn_forward.1} parent=11 // pred_region
        _
      $region76: #{audio_tcn_forward.1} parent=11 // pred_fallthru
        _
      // Predicated region
      $region77: #{audio_tcn_forward.1} parent=11 // pred_check
        %p532 = pneg %p422
      $region78: #{audio_tcn_forward.1} parent=11 // pred_check_branch
        %534 = sbr.rel (%p532) target = $region80
      $region79: #{audio_tcn_forward.1} parent=11 // pred_region
        _
      $region80: #{audio_tcn_forward.1} parent=11 // pred_fallthru
        _
      // Predicated region
      $region81: #{audio_tcn_forward.1} parent=11 // pred_check
        %p535 = pneg %p443
      $region82: #{audio_tcn_forward.1} parent=11 // pred_check_branch
        %537 = sbr.rel (%p535) target = $region84
      $region83: #{audio_tcn_forward.1} parent=11 // pred_region
        _
      $region84: #{audio_tcn_forward.1} parent=11 // pred_fallthru
        _
    $region12: #{audio_tcn_forward.1} parent=5 // pred_fallthru
      _
    %p538 = scmp.lt.s32.totalorder %s25, 2
    // Predicated region
    $region85: #{audio_tcn_forward.1} parent=5 // pred_check
      %p539 = pneg %p538
    $region86: #{audio_tcn_forward.1} parent=5 // pred_check_branch
      %541 = sbr.rel (%p539) target = $region88
    $region87: #{audio_tcn_forward.1} parent=5 // pred_region
      // Predicated region
      $region89: #{audio_tcn_forward.1} parent=87 // pred_check
        %p542 = pneg %p59
      $region90: #{audio_tcn_forward.1} parent=87 // pred_check_branch
        %544 = sbr.rel (%p542) target = $region92
      $region91: #{audio_tcn_forward.1} parent=87 // pred_region
        %p545 = scmp.lt.s32.totalorder %s32, 1
        %s546 = scalar_select %p545, %s32, 1
        %p547 = scmp.lt.s32.totalorder %s33, 0
        %s548 = scalar_select %p547, %s33, 0
        %s549 = sadd.s32 %s548, %s546
        %s550 = smul.addr %s549, 4
        %s551 = scalar_lea.vmem %s0, %s550
      $region92: #{audio_tcn_forward.1} parent=87 // pred_fallthru
        _
    $region88: #{audio_tcn_forward.1} parent=5 // pred_fallthru
      _
    %p552 = scmp.le.s32.totalorder 1, %s25
    %p553 = scmp.lt.s32.totalorder %s25, 3
    %p554 = pnand %p552, %p553
    %p555 = pneg %p554
    // Predicated region
    $region93: #{audio_tcn_forward.1} parent=5 // pred_check
      _
    $region94: #{audio_tcn_forward.1} parent=5 // pred_check_branch
      %557 = sbr.rel (%p554) target = $region96
    $region95: #{audio_tcn_forward.1} parent=5 // pred_region
      %s558 = ssub.s32 %s25, 1
      %p559 = scmp.lt.s32.totalorder %s34, 1
      %s560 = scalar_select %p559, %s34, 1
      %p561 = scmp.lt.s32.totalorder %s35, 0
      %s562 = scalar_select %p561, %s35, 0
      %s563 = sadd.s32 %s562, %s560
      %s564 = smul.addr %s563, 4
      %s565 = scalar_lea.vmem %s0, %s564
      %p566 = pneg %p65
      %p567 = pneg %p62
      %p568 = pneg %p86
      %p569 = pneg %p83
      %p570 = pneg %p107
      %p571 = pneg %p104
      %p572 = pneg %p128
      %p573 = pneg %p125
      %p574 = pneg %p149
      %p575 = pneg %p146
      %p576 = pneg %p170
      %p577 = pneg %p167
      %p578 = pneg %p191
      %p579 = pneg %p188
      %p580 = pneg %p212
      %p581 = pneg %p209
      %p582 = pneg %p233
      %p583 = pneg %p230
      %p584 = pneg %p254
      %p585 = pneg %p251
      %p586 = pneg %p275
      %p587 = pneg %p272
      %p588 = pneg %p296
      %p589 = pneg %p293
      %p590 = pneg %p317
      %p591 = pneg %p314
      %p592 = pneg %p338
      %p593 = pneg %p335
      %p594 = pneg %p359
      %p595 = pneg %p356
      %p596 = pneg %p380
      %p597 = pneg %p377
      %p598 = pneg %p401
      %p599 = pneg %p398
      %p600 = pneg %p422
      %p601 = pneg %p419
      %p602 = pneg %p443
      %p603 = pneg %p440
      %p604 = pneg %p469
      %p605 = pneg %p466
      %p606 = scmp.lt.s32.totalorder %s34, 1
      %s607 = scalar_select %p606, %s34, 1
      %s608 = smul.addr %s607, 8
      %s609 = scalar_lea.vmem %s19, %s608
      %p610 = scmp.lt.s32.totalorder %s34, 1
      %s611 = scalar_select %p610, %s34, 1
      %p612 = scmp.lt.s32.totalorder %s35, 0
      %s613 = scalar_select %p612, %s35, 0
      %s614 = sadd.s32 %s613, %s611
      %s615 = smul.addr %s614, 4
      %s616 = scalar_lea.vmem %s0, %s615
      %p617 = scmp.lt.s32.totalorder %s34, 1
      %s618 = scalar_select %p617, %s34, 1
      %s619 = smul.addr %s618, 8
      %s620 = scalar_lea.vmem %s19, %s619
      %v621 = vld [vmem:[%s616] sm:$0xf]
      %p622 = scmp.eq.s32.totalorder %s35, 0
      // Predicated region
      $region97: #{audio_tcn_forward.1} parent=95 // pred_check
        %p623 = pneg %p622
      $region98: #{audio_tcn_forward.1} parent=95 // pred_check_branch
        %625 = sbr.rel (%p623) target = $region100
      $region99: #{audio_tcn_forward.1} parent=95 // pred_region
        %vm626 = vcmask 1044464
        %627 = vst.msk [vmem:[#allocation2] sm:$0xf] %vm626, 0.0
        %vm628 = vcmask 1048560
        %629 = vst.msk [vmem:[#allocation3] sm:$0xff] %vm628, 0.0
      $region100: #{audio_tcn_forward.1} parent=95 // pred_fallthru
        _
      %p630 = scmp.gt.s32.totalorder %s35, 0
      // Predicated region
      $region101: #{audio_tcn_forward.1} parent=95 // pred_check
        %p631 = pneg %p630
      $region102: #{audio_tcn_forward.1} parent=95 // pred_check_branch
        %633 = sbr.rel (%p631) target = $region104
      $region103: #{audio_tcn_forward.1} parent=95 // pred_region
        %v634 = vld [vmem:[#allocation2 + $0x4] sm:$0xf]
        %636 = vrot.lane.b32.xlu0 %v634, 112
        %v637 = vpop.permute.xlu0 %636
        %vm639 = vcmask 1044464
        %640 = vst.msk [vmem:[#allocation2] sm:$0xf] %vm639, %v637
        %v641 = vld [vmem:[#allocation3 + $0x8] sm:$0xff]
        %643 = vrot.lane.b32.xlu0 %v641, 112
        %v644 = vpop.permute.xlu0 %643
        %vm646 = vcmask 1048560
        %647 = vst.msk [vmem:[#allocation3] sm:$0xff] %vm646, %v644
      $region104: #{audio_tcn_forward.1} parent=95 // pred_fallthru
        _
      %vm648 = vcmask 125952
      %649 = vst.msk [vmem:[#allocation2 + $0x4] sm:$0xf] %vm648, %v621
      %v650 = vld [vmem:[%s1] sm:$0xff]
      %v651 = vld [vmem:[#allocation2] sm:$0xff]
      %653 = vrot.lane.b32.xlu0 %v650, 124
      %v654 = vpop.permute.xlu0 %653
      %v656 = vcombine.high %v651, %v651
      %657 = vrot.lane.b32.xlu0 %v651, 1
      %v658 = vpop.permute.xlu0 %657
      %659 = vrot.lane.b32.xlu0 %v656, 1
      %v660 = vpop.permute.xlu0 %659
      %vm661 = vcmask 7168
      %v662 = vsel %vm661, %v658, %v660
      %vm663 = vcmask 31744
      %v664 = vsel %vm663, %v654, 0
      %vm666 = vcmask 1043456
      %v667 = vsel %vm666, %v662, 0
      %669 = vmatprep.subr.mxu0 0.0
      %670 = vmatpush1.msra.mxu0 %v667
      %671 = vmatprep.subr.mxu0 0.0
      %672 = vmatpush1.msra.mxu0 0.0
      %673 = vmatprep.subr.mxu0 0.0
      %674 = vmatpush1.msra.mxu0 0.0
      %675 = vmatprep.subr.mxu0 0.0
      %676 = vmatpush1.msra.mxu0 0.0
      %677 = vmatprep.subr.mxu0 0.0
      %678 = vmatpush1.msra.mxu0 0.0
      %679 = vmatprep.subr.mxu0 0.0
      %680 = vmatpush1.msra.mxu0 0.0
      %681 = vmatprep.subr.mxu0 0.0
      %682 = vmatpush1.msra.mxu0 0.0
      %683 = vmatprep.subr.mxu0 0.0
      %684 = vmatpush1.msra.mxu0 0.0
      %685 = vmatprep.subr.mxu0 0.0
      %686 = vmatpush1.msra.mxu0 0.0
      %687 = vmatprep.subr.mxu0 0.0
      %688 = vmatpush1.msra.mxu0 0.0
      %689 = vmatprep.subr.mxu0 0.0
      %690 = vmatpush1.msra.mxu0 0.0
      %691 = vmatprep.subr.mxu0 0.0
      %692 = vmatpush1.msra.mxu0 0.0
      %693 = vmatprep.subr.mxu0 0.0
      %694 = vmatpush1.msra.mxu0 0.0
      %695 = vmatprep.subr.mxu0 0.0
      %696 = vmatpush1.msra.mxu0 0.0
      %697 = vmatprep.subr.mxu0 0.0
      %698 = vmatpush1.msra.mxu0 0.0
      %699 = vmatprep.subr.mxu0 0.0
      %700 = vmatpush1.msra.mxu0 0.0
      %701 = vmatprep.subr.mxu0 0.0
      %702 = vmatpush1.msra.mxu0 0.0
      %703 = vmatprep.subr.mxu0 0.0
      %704 = vmatpush1.msra.mxu0 0.0
      %705 = vmatprep.subr.mxu0 0.0
      %706 = vmatpush1.msra.mxu0 0.0
      %707 = vmatprep.subr.mxu0 0.0
      %708 = vmatpush1.msra.mxu0 0.0
      %709 = vmatprep.subr.mxu0 0.0
      %710 = vmatpush1.msra.mxu0 0.0
      %711 = vmatprep.subr.mxu0 0.0
      %712 = vmatpush1.msra.mxu0 0.0
      %713 = vmatprep.subr.mxu0 0.0
      %714 = vmatpush1.msra.mxu0 0.0
      %715 = vmatprep.subr.mxu0 0.0
      %716 = vmatpush1.msra.mxu0 0.0
      %717 = vmatprep.subr.mxu0 0.0
      %718 = vmatpush1.msra.mxu0 0.0
      %719 = vmatprep.subr.mxu0 0.0
      %720 = vmatpush1.msra.mxu0 0.0
      %721 = vmatprep.subr.mxu0 0.0
      %722 = vmatpush1.msra.mxu0 0.0
      %723 = vmatprep.subr.mxu0 0.0
      %724 = vmatpush1.msra.mxu0 0.0
      %725 = vmatprep.subr.mxu0 0.0
      %726 = vmatpush1.msra.mxu0 0.0
      %727 = vmatprep.subr.mxu0 0.0
      %728 = vmatpush1.msra.mxu0 0.0
      %729 = vmatprep.subr.mxu0 0.0
      %730 = vmatpush1.msra.mxu0 0.0
      %731 = vmatprep.subr.mxu0 0.0
      %732 = vmatpush1.msra.mxu0 0.0
      %733 = vmatprep.mubr.f32.mxu0 0.0
      %734 = vmatmul.mubr.f32.gmra.mrb[0].mxu0 %v664
      %v735 = vpop.f32.mrb[0].mxu0
      %v736 = vadd.f32 0.0, %v735
      %v737 = vpop.f32.mrb[0].mxu0
      %738 = vdwg.mxu0
      %739 = vrot.lane.b32.xlu0 %v651, 2
      %v740 = vpop.permute.xlu0 %739
      %741 = vrot.lane.b32.xlu0 %v656, 2
      %v742 = vpop.permute.xlu0 %741
      %vm743 = vcmask 15360
      %v744 = vsel %vm743, %v740, %v742
      %v745 = vsel %vm663, %v650, 0
      %v747 = vsel %vm666, %v744, 0
      %749 = vmatprep.subr.mxu0 0.0
      %750 = vmatpush1.msra.mxu0 %v747
      %751 = vmatprep.subr.mxu0 0.0
      %752 = vmatpush1.msra.mxu0 0.0
      %753 = vmatprep.subr.mxu0 0.0
      %754 = vmatpush1.msra.mxu0 0.0
      %755 = vmatprep.subr.mxu0 0.0
      %756 = vmatpush1.msra.mxu0 0.0
      %757 = vmatprep.subr.mxu0 0.0
      %758 = vmatpush1.msra.mxu0 0.0
      %759 = vmatprep.subr.mxu0 0.0
      %760 = vmatpush1.msra.mxu0 0.0
      %761 = vmatprep.subr.mxu0 0.0
      %762 = vmatpush1.msra.mxu0 0.0
      %763 = vmatprep.subr.mxu0 0.0
      %764 = vmatpush1.msra.mxu0 0.0
      %765 = vmatprep.subr.mxu0 0.0
      %766 = vmatpush1.msra.mxu0 0.0
      %767 = vmatprep.subr.mxu0 0.0
      %768 = vmatpush1.msra.mxu0 0.0
      %769 = vmatprep.subr.mxu0 0.0
      %770 = vmatpush1.msra.mxu0 0.0
      %771 = vmatprep.subr.mxu0 0.0
      %772 = vmatpush1.msra.mxu0 0.0
      %773 = vmatprep.subr.mxu0 0.0
      %774 = vmatpush1.msra.mxu0 0.0
      %775 = vmatprep.subr.mxu0 0.0
      %776 = vmatpush1.msra.mxu0 0.0
      %777 = vmatprep.subr.mxu0 0.0
      %778 = vmatpush1.msra.mxu0 0.0
      %779 = vmatprep.subr.mxu0 0.0
      %780 = vmatpush1.msra.mxu0 0.0
      %781 = vmatprep.subr.mxu0 0.0
      %782 = vmatpush1.msra.mxu0 0.0
      %783 = vmatprep.subr.mxu0 0.0
      %784 = vmatpush1.msra.mxu0 0.0
      %785 = vmatprep.subr.mxu0 0.0
      %786 = vmatpush1.msra.mxu0 0.0
      %787 = vmatprep.subr.mxu0 0.0
      %788 = vmatpush1.msra.mxu0 0.0
      %789 = vmatprep.subr.mxu0 0.0
      %790 = vmatpush1.msra.mxu0 0.0
      %791 = vmatprep.subr.mxu0 0.0
      %792 = vmatpush1.msra.mxu0 0.0
      %793 = vmatprep.subr.mxu0 0.0
      %794 = vmatpush1.msra.mxu0 0.0
      %795 = vmatprep.subr.mxu0 0.0
      %796 = vmatpush1.msra.mxu0 0.0
      %797 = vmatprep.subr.mxu0 0.0
      %798 = vmatpush1.msra.mxu0 0.0
      %799 = vmatprep.subr.mxu0 0.0
      %800 = vmatpush1.msra.mxu0 0.0
      %801 = vmatprep.subr.mxu0 0.0
      %802 = vmatpush1.msra.mxu0 0.0
      %803 = vmatprep.subr.mxu0 0.0
      %804 = vmatpush1.msra.mxu0 0.0
      %805 = vmatprep.subr.mxu0 0.0
      %806 = vmatpush1.msra.mxu0 0.0
      %807 = vmatprep.subr.mxu0 0.0
      %808 = vmatpush1.msra.mxu0 0.0
      %809 = vmatprep.subr.mxu0 0.0
      %810 = vmatpush1.msra.mxu0 0.0
      %811 = vmatprep.subr.mxu0 0.0
      %812 = vmatpush1.msra.mxu0 0.0
      %813 = vmatprep.mubr.f32.mxu0 0.0
      %814 = vmatmul.mubr.f32.gmra.mrb[0].mxu0 %v745
      %v815 = vpop.f32.mrb[0].mxu0
      %v816 = vadd.f32 %v736, %v815
      %v817 = vpop.f32.mrb[0].mxu0
      %818 = vdwg.mxu0
      %v819 = vld [vmem:[%s1] sm:$0xff]
      %v820 = vld [vmem:[#allocation2 + $0x4] sm:$0xf]
      %822 = vrot.lane.b32.xlu0 %v819, 120
      %v823 = vpop.permute.xlu0 %822
      %v824 = vsel %vm663, %v823, 0
      %v827 = vsel %vm666, %v820, 0
      %829 = vmatprep.subr.mxu0 0.0
      %830 = vmatpush1.msra.mxu0 %v827
      %831 = vmatprep.subr.mxu0 0.0
      %832 = vmatpush1.msra.mxu0 0.0
      %833 = vmatprep.subr.mxu0 0.0
      %834 = vmatpush1.msra.mxu0 0.0
      %835 = vmatprep.subr.mxu0 0.0
      %836 = vmatpush1.msra.mxu0 0.0
      %837 = vmatprep.subr.mxu0 0.0
      %838 = vmatpush1.msra.mxu0 0.0
      %839 = vmatprep.subr.mxu0 0.0
      %840 = vmatpush1.msra.mxu0 0.0
      %841 = vmatprep.subr.mxu0 0.0
      %842 = vmatpush1.msra.mxu0 0.0
      %843 = vmatprep.subr.mxu0 0.0
      %844 = vmatpush1.msra.mxu0 0.0
      %845 = vmatprep.subr.mxu0 0.0
      %846 = vmatpush1.msra.mxu0 0.0
      %847 = vmatprep.subr.mxu0 0.0
      %848 = vmatpush1.msra.mxu0 0.0
      %849 = vmatprep.subr.mxu0 0.0
      %850 = vmatpush1.msra.mxu0 0.0
      %851 = vmatprep.subr.mxu0 0.0
      %852 = vmatpush1.msra.mxu0 0.0
      %853 = vmatprep.subr.mxu0 0.0
      %854 = vmatpush1.msra.mxu0 0.0
      %855 = vmatprep.subr.mxu0 0.0
      %856 = vmatpush1.msra.mxu0 0.0
      %857 = vmatprep.subr.mxu0 0.0
      %858 = vmatpush1.msra.mxu0 0.0
      %859 = vmatprep.subr.mxu0 0.0
      %860 = vmatpush1.msra.mxu0 0.0
      %861 = vmatprep.subr.mxu0 0.0
      %862 = vmatpush1.msra.mxu0 0.0
      %863 = vmatprep.subr.mxu0 0.0
      %864 = vmatpush1.msra.mxu0 0.0
      %865 = vmatprep.subr.mxu0 0.0
      %866 = vmatpush1.msra.mxu0 0.0
      %867 = vmatprep.subr.mxu0 0.0
      %868 = vmatpush1.msra.mxu0 0.0
      %869 = vmatprep.subr.mxu0 0.0
      %870 = vmatpush1.msra.mxu0 0.0
      %871 = vmatprep.subr.mxu0 0.0
      %872 = vmatpush1.msra.mxu0 0.0
      %873 = vmatprep.subr.mxu0 0.0
      %874 = vmatpush1.msra.mxu0 0.0
      %875 = vmatprep.subr.mxu0 0.0
      %876 = vmatpush1.msra.mxu0 0.0
      %877 = vmatprep.subr.mxu0 0.0
      %878 = vmatpush1.msra.mxu0 0.0
      %879 = vmatprep.subr.mxu0 0.0
      %880 = vmatpush1.msra.mxu0 0.0
      %881 = vmatprep.subr.mxu0 0.0
      %882 = vmatpush1.msra.mxu0 0.0
      %883 = vmatprep.subr.mxu0 0.0
      %884 = vmatpush1.msra.mxu0 0.0
      %885 = vmatprep.subr.mxu0 0.0
      %886 = vmatpush1.msra.mxu0 0.0
      %887 = vmatprep.subr.mxu0 0.0
      %888 = vmatpush1.msra.mxu0 0.0
      %889 = vmatprep.subr.mxu0 0.0
      %890 = vmatpush1.msra.mxu0 0.0
      %891 = vmatprep.subr.mxu0 0.0
      %892 = vmatpush1.msra.mxu0 0.0
      %893 = vmatprep.mubr.f32.mxu0 0.0
      %894 = vmatmul.mubr.f32.gmra.mrb[0].mxu0 %v824
      %v895 = vpop.f32.mrb[0].mxu0
      %v896 = vadd.f32 0.0, %v895
      %v897 = vpop.f32.mrb[0].mxu0
      %898 = vdwg.mxu0
      %v899 = vadd.f32 %v816, %v896
      %v900 = vld [vmem:[%s2] sm:$0xff]
      %902 = vset.pattern.permute.xlu0 0
      %903 = vperm.xlu0 %902, %v900
      %v904 = vpop.permute.xlu0 %903
      %v906 = vadd.f32 %v899, %v904
      %v907 = vmax.f32 %v906, 0.0
      %vm908 = vcmask 130048
      %909 = vst.msk [vmem:[#allocation3 + $0x8] sm:$0xff] %vm908, %v907
      %v910 = vld [vmem:[%s3] sm:$0xff]
      %v911 = vld [vmem:[#allocation3] sm:$0xff]
      %v912 = vld [vmem:[#allocation3 + $0x8] sm:$0xff]
      %914 = vrot.lane.b32.xlu0 %v910, 120
      %v915 = vpop.permute.xlu0 %914
      %918 = vrot.lane.b32.xlu0 %v911, 1
      %v919 = vpop.permute.xlu0 %918
      %920 = vrot.lane.b32.xlu0 %v912, 1
      %v921 = vpop.permute.xlu0 %920
      %v922 = vsel %vm661, %v919, %v921
      %vm924 = vcmask 64512
      %v925 = vsel %vm924, %v915, 0
      %927 = vmatprep.subr.mxu0 0.0
      %928 = vmatpush1.msra.mxu0 %v922
      %929 = vmatprep.subr.mxu0 0.0
      %930 = vmatpush1.msra.mxu0 0.0
      %931 = vmatprep.subr.mxu0 0.0
      %932 = vmatpush1.msra.mxu0 0.0
      %933 = vmatprep.subr.mxu0 0.0
      %934 = vmatpush1.msra.mxu0 0.0
      %935 = vmatprep.subr.mxu0 0.0
      %936 = vmatpush1.msra.mxu0 0.0
      %937 = vmatprep.subr.mxu0 0.0
      %938 = vmatpush1.msra.mxu0 0.0
      %939 = vmatprep.subr.mxu0 0.0
      %940 = vmatpush1.msra.mxu0 0.0
      %941 = vmatprep.subr.mxu0 0.0
      %942 = vmatpush1.msra.mxu0 0.0
      %943 = vmatprep.subr.mxu0 0.0
      %944 = vmatpush1.msra.mxu0 0.0
      %945 = vmatprep.subr.mxu0 0.0
      %946 = vmatpush1.msra.mxu0 0.0
      %947 = vmatprep.subr.mxu0 0.0
      %948 = vmatpush1.msra.mxu0 0.0
      %949 = vmatprep.subr.mxu0 0.0
      %950 = vmatpush1.msra.mxu0 0.0
      %951 = vmatprep.subr.mxu0 0.0
      %952 = vmatpush1.msra.mxu0 0.0
      %953 = vmatprep.subr.mxu0 0.0
      %954 = vmatpush1.msra.mxu0 0.0
      %955 = vmatprep.subr.mxu0 0.0
      %956 = vmatpush1.msra.mxu0 0.0
      %957 = vmatprep.subr.mxu0 0.0
      %958 = vmatpush1.msra.mxu0 0.0
      %959 = vmatprep.subr.mxu0 0.0
      %960 = vmatpush1.msra.mxu0 0.0
      %961 = vmatprep.subr.mxu0 0.0
      %962 = vmatpush1.msra.mxu0 0.0
      %963 = vmatprep.subr.mxu0 0.0
      %964 = vmatpush1.msra.mxu0 0.0
      %965 = vmatprep.subr.mxu0 0.0
      %966 = vmatpush1.msra.mxu0 0.0
      %967 = vmatprep.subr.mxu0 0.0
      %968 = vmatpush1.msra.mxu0 0.0
      %969 = vmatprep.subr.mxu0 0.0
      %970 = vmatpush1.msra.mxu0 0.0
      %971 = vmatprep.subr.mxu0 0.0
      %972 = vmatpush1.msra.mxu0 0.0
      %973 = vmatprep.subr.mxu0 0.0
      %974 = vmatpush1.msra.mxu0 0.0
      %975 = vmatprep.subr.mxu0 0.0
      %976 = vmatpush1.msra.mxu0 0.0
      %977 = vmatprep.subr.mxu0 0.0
      %978 = vmatpush1.msra.mxu0 0.0
      %979 = vmatprep.subr.mxu0 0.0
      %980 = vmatpush1.msra.mxu0 0.0
      %981 = vmatprep.subr.mxu0 0.0
      %982 = vmatpush1.msra.mxu0 0.0
      %983 = vmatprep.subr.mxu0 0.0
      %984 = vmatpush1.msra.mxu0 0.0
      %985 = vmatprep.subr.mxu0 0.0
      %986 = vmatpush1.msra.mxu0 0.0
      %987 = vmatprep.subr.mxu0 0.0
      %988 = vmatpush1.msra.mxu0 0.0
      %989 = vmatprep.subr.mxu0 0.0
      %990 = vmatpush1.msra.mxu0 0.0
      %991 = vmatprep.mubr.f32.mxu0 0.0
      %992 = vmatmul.mubr.f32.gmra.mrb[0].mxu0 %v925
      %v993 = vpop.f32.mrb[0].mxu0
      %v994 = vadd.f32 0.0, %v993
      %v995 = vpop.f32.mrb[0].mxu0
      %996 = vdwg.mxu0
      %997 = vrot.lane.b32.xlu0 %v911, 2
      %v998 = vpop.permute.xlu0 %997
      %999 = vrot.lane.b32.xlu0 %v912, 2
      %v1000 = vpop.permute.xlu0 %999
      %v1001 = vsel %vm743, %v998, %v1000
      %v1003 = vsel %vm924, %v910, 0
      %1005 = vmatprep.subr.mxu0 0.0
      %1006 = vmatpush1.msra.mxu0 %v1001
      %1007 = vmatprep.subr.mxu0 0.0
      %1008 = vmatpush1.msra.mxu0 0.0
      %1009 = vmatprep.subr.mxu0 0.0
      %1010 = vmatpush1.msra.mxu0 0.0
      %1011 = vmatprep.subr.mxu0 0.0
      %1012 = vmatpush1.msra.mxu0 0.0
      %1013 = vmatprep.subr.mxu0 0.0
      %1014 = vmatpush1.msra.mxu0 0.0
      %1015 = vmatprep.subr.mxu0 0.0
      %1016 = vmatpush1.msra.mxu0 0.0
      %1017 = vmatprep.subr.mxu0 0.0
      %1018 = vmatpush1.msra.mxu0 0.0
      %1019 = vmatprep.subr.mxu0 0.0
      %1020 = vmatpush1.msra.mxu0 0.0
      %1021 = vmatprep.subr.mxu0 0.0
      %1022 = vmatpush1.msra.mxu0 0.0
      %1023 = vmatprep.subr.mxu0 0.0
      %1024 = vmatpush1.msra.mxu0 0.0
      %1025 = vmatprep.subr.mxu0 0.0
      %1026 = vmatpush1.msra.mxu0 0.0
      %1027 = vmatprep.subr.mxu0 0.0
      %1028 = vmatpush1.msra.mxu0 0.0
      %1029 = vmatprep.subr.mxu0 0.0
      %1030 = vmatpush1.msra.mxu0 0.0
      %1031 = vmatprep.subr.mxu0 0.0
      %1032 = vmatpush1.msra.mxu0 0.0
      %1033 = vmatprep.subr.mxu0 0.0
      %1034 = vmatpush1.msra.mxu0 0.0
      %1035 = vmatprep.subr.mxu0 0.0
      %1036 = vmatpush1.msra.mxu0 0.0
      %1037 = vmatprep.subr.mxu0 0.0
      %1038 = vmatpush1.msra.mxu0 0.0
      %1039 = vmatprep.subr.mxu0 0.0
      %1040 = vmatpush1.msra.mxu0 0.0
      %1041 = vmatprep.subr.mxu0 0.0
      %1042 = vmatpush1.msra.mxu0 0.0
      %1043 = vmatprep.subr.mxu0 0.0
      %1044 = vmatpush1.msra.mxu0 0.0
      %1045 = vmatprep.subr.mxu0 0.0
      %1046 = vmatpush1.msra.mxu0 0.0
      %1047 = vmatprep.subr.mxu0 0.0
      %1048 = vmatpush1.msra.mxu0 0.0
      %1049 = vmatprep.subr.mxu0 0.0
      %1050 = vmatpush1.msra.mxu0 0.0
      %1051 = vmatprep.subr.mxu0 0.0
      %1052 = vmatpush1.msra.mxu0 0.0
      %1053 = vmatprep.subr.mxu0 0.0
      %1054 = vmatpush1.msra.mxu0 0.0
      %1055 = vmatprep.subr.mxu0 0.0
      %1056 = vmatpush1.msra.mxu0 0.0
      %1057 = vmatprep.subr.mxu0 0.0
      %1058 = vmatpush1.msra.mxu0 0.0
      %1059 = vmatprep.subr.mxu0 0.0
      %1060 = vmatpush1.msra.mxu0 0.0
      %1061 = vmatprep.subr.mxu0 0.0
      %1062 = vmatpush1.msra.mxu0 0.0
      %1063 = vmatprep.subr.mxu0 0.0
      %1064 = vmatpush1.msra.mxu0 0.0
      %1065 = vmatprep.subr.mxu0 0.0
      %1066 = vmatpush1.msra.mxu0 0.0
      %1067 = vmatprep.subr.mxu0 0.0
      %1068 = vmatpush1.msra.mxu0 0.0
      %1069 = vmatprep.mubr.f32.mxu0 0.0
      %1070 = vmatmul.mubr.f32.gmra.mrb[0].mxu0 %v1003
      %v1071 = vpop.f32.mrb[0].mxu0
      %v1072 = vadd.f32 %v994, %v1071
      %v1073 = vpop.f32.mrb[0].mxu0
      %1074 = vdwg.mxu0
      %1075 = vrot.lane.b32.xlu0 %v910, 112
      %v1076 = vpop.permute.xlu0 %1075
      %v1077 = vsel %vm924, %v1076, 0
      %1079 = vmatprep.subr.mxu0 0.0
      %1080 = vmatpush1.msra.mxu0 %v912
      %1081 = vmatprep.subr.mxu0 0.0
      %1082 = vmatpush1.msra.mxu0 0.0
      %1083 = vmatprep.subr.mxu0 0.0
      %1084 = vmatpush1.msra.mxu0 0.0
      %1085 = vmatprep.subr.mxu0 0.0
      %1086 = vmatpush1.msra.mxu0 0.0
      %1087 = vmatprep.subr.mxu0 0.0
      %1088 = vmatpush1.msra.mxu0 0.0
      %1089 = vmatprep.subr.mxu0 0.0
      %1090 = vmatpush1.msra.mxu0 0.0
      %1091 = vmatprep.subr.mxu0 0.0
      %1092 = vmatpush1.msra.mxu0 0.0
      %1093 = vmatprep.subr.mxu0 0.0
      %1094 = vmatpush1.msra.mxu0 0.0
      %1095 = vmatprep.subr.mxu0 0.0
      %1096 = vmatpush1.msra.mxu0 0.0
      %1097 = vmatprep.subr.mxu0 0.0
      %1098 = vmatpush1.msra.mxu0 0.0
      %1099 = vmatprep.subr.mxu0 0.0
      %1100 = vmatpush1.msra.mxu0 0.0
      %1101 = vmatprep.subr.mxu0 0.0
      %1102 = vmatpush1.msra.mxu0 0.0
      %1103 = vmatprep.subr.mxu0 0.0
      %1104 = vmatpush1.msra.mxu0 0.0
      %1105 = vmatprep.subr.mxu0 0.0
      %1106 = vmatpush1.msra.mxu0 0.0
      %1107 = vmatprep.subr.mxu0 0.0
      %1108 = vmatpush1.msra.mxu0 0.0
      %1109 = vmatprep.subr.mxu0 0.0
      %1110 = vmatpush1.msra.mxu0 0.0
      %1111 = vmatprep.subr.mxu0 0.0
      %1112 = vmatpush1.msra.mxu0 0.0
      %1113 = vmatprep.subr.mxu0 0.0
      %1114 = vmatpush1.msra.mxu0 0.0
      %1115 = vmatprep.subr.mxu0 0.0
      %1116 = vmatpush1.msra.mxu0 0.0
      %1117 = vmatprep.subr.mxu0 0.0
      %1118 = vmatpush1.msra.mxu0 0.0
      %1119 = vmatprep.subr.mxu0 0.0
      %1120 = vmatpush1.msra.mxu0 0.0
      %1121 = vmatprep.subr.mxu0 0.0
      %1122 = vmatpush1.msra.mxu0 0.0
      %1123 = vmatprep.subr.mxu0 0.0
      %1124 = vmatpush1.msra.mxu0 0.0
      %1125 = vmatprep.subr.mxu0 0.0
      %1126 = vmatpush1.msra.mxu0 0.0
      %1127 = vmatprep.subr.mxu0 0.0
      %1128 = vmatpush1.msra.mxu0 0.0
      %1129 = vmatprep.subr.mxu0 0.0
      %1130 = vmatpush1.msra.mxu0 0.0
      %1131 = vmatprep.subr.mxu0 0.0
      %1132 = vmatpush1.msra.mxu0 0.0
      %1133 = vmatprep.subr.mxu0 0.0
      %1134 = vmatpush1.msra.mxu0 0.0
      %1135 = vmatprep.subr.mxu0 0.0
      %1136 = vmatpush1.msra.mxu0 0.0
      %1137 = vmatprep.subr.mxu0 0.0
      %1138 = vmatpush1.msra.mxu0 0.0
      %1139 = vmatprep.subr.mxu0 0.0
      %1140 = vmatpush1.msra.mxu0 0.0
      %1141 = vmatprep.subr.mxu0 0.0
      %1142 = vmatpush1.msra.mxu0 0.0
      %1143 = vmatprep.mubr.f32.mxu0 0.0
      %1144 = vmatmul.mubr.f32.gmra.mrb[0].mxu0 %v1077
      %v1145 = vpop.f32.mrb[0].mxu0
      %v1146 = vadd.f32 0.0, %v1145
      %v1147 = vpop.f32.mrb[0].mxu0
      %1148 = vdwg.mxu0
      %v1149 = vadd.f32 %v1072, %v1146
      %v1150 = vld [vmem:[%s4] sm:$0xff]
      %1152 = vset.pattern.permute.xlu0 0
      %1153 = vperm.xlu0 %1152, %v1150
      %v1154 = vpop.permute.xlu0 %1153
      %v1156 = vadd.f32 %v1149, %v1154
      %v1157 = vld [vmem:[%s5] sm:$0xff]
      %v1158 = vld [vmem:[%s6] sm:$0xff]
      %1160 = vset.pattern.permute.xlu0 0
      %1161 = vperm.xlu0 %1160, %v1158
      %v1162 = vpop.permute.xlu0 %1161
      %v1165 = vsel %vm663, %v1157, 0
      %v1168 = vsel %vm666, %v621, 0
      %1170 = vmatprep.subr.mxu0 0.0
      %1171 = vmatpush1.msra.mxu0 %v1168
      %1172 = vmatprep.subr.mxu0 0.0
      %1173 = vmatpush1.msra.mxu0 0.0
      %1174 = vmatprep.subr.mxu0 0.0
      %1175 = vmatpush1.msra.mxu0 0.0
      %1176 = vmatprep.subr.mxu0 0.0
      %1177 = vmatpush1.msra.mxu0 0.0
      %1178 = vmatprep.subr.mxu0 0.0
      %1179 = vmatpush1.msra.mxu0 0.0
      %1180 = vmatprep.subr.mxu0 0.0
      %1181 = vmatpush1.msra.mxu0 0.0
      %1182 = vmatprep.subr.mxu0 0.0
      %1183 = vmatpush1.msra.mxu0 0.0
      %1184 = vmatprep.subr.mxu0 0.0
      %1185 = vmatpush1.msra.mxu0 0.0
      %1186 = vmatprep.subr.mxu0 0.0
      %1187 = vmatpush1.msra.mxu0 0.0
      %1188 = vmatprep.subr.mxu0 0.0
      %1189 = vmatpush1.msra.mxu0 0.0
      %1190 = vmatprep.subr.mxu0 0.0
      %1191 = vmatpush1.msra.mxu0 0.0
      %1192 = vmatprep.subr.mxu0 0.0
      %1193 = vmatpush1.msra.mxu0 0.0
      %1194 = vmatprep.subr.mxu0 0.0
      %1195 = vmatpush1.msra.mxu0 0.0
      %1196 = vmatprep.subr.mxu0 0.0
      %1197 = vmatpush1.msra.mxu0 0.0
      %1198 = vmatprep.subr.mxu0 0.0
      %1199 = vmatpush1.msra.mxu0 0.0
      %1200 = vmatprep.subr.mxu0 0.0
      %1201 = vmatpush1.msra.mxu0 0.0
      %1202 = vmatprep.subr.mxu0 0.0
      %1203 = vmatpush1.msra.mxu0 0.0
      %1204 = vmatprep.subr.mxu0 0.0
      %1205 = vmatpush1.msra.mxu0 0.0
      %1206 = vmatprep.subr.mxu0 0.0
      %1207 = vmatpush1.msra.mxu0 0.0
      %1208 = vmatprep.subr.mxu0 0.0
      %1209 = vmatpush1.msra.mxu0 0.0
      %1210 = vmatprep.subr.mxu0 0.0
      %1211 = vmatpush1.msra.mxu0 0.0
      %1212 = vmatprep.subr.mxu0 0.0
      %1213 = vmatpush1.msra.mxu0 0.0
      %1214 = vmatprep.subr.mxu0 0.0
      %1215 = vmatpush1.msra.mxu0 0.0
      %1216 = vmatprep.subr.mxu0 0.0
      %1217 = vmatpush1.msra.mxu0 0.0
      %1218 = vmatprep.subr.mxu0 0.0
      %1219 = vmatpush1.msra.mxu0 0.0
      %1220 = vmatprep.subr.mxu0 0.0
      %1221 = vmatpush1.msra.mxu0 0.0
      %1222 = vmatprep.subr.mxu0 0.0
      %1223 = vmatpush1.msra.mxu0 0.0
      %1224 = vmatprep.subr.mxu0 0.0
      %1225 = vmatpush1.msra.mxu0 0.0
      %1226 = vmatprep.subr.mxu0 0.0
      %1227 = vmatpush1.msra.mxu0 0.0
      %1228 = vmatprep.subr.mxu0 0.0
      %1229 = vmatpush1.msra.mxu0 0.0
      %1230 = vmatprep.subr.mxu0 0.0
      %1231 = vmatpush1.msra.mxu0 0.0
      %1232 = vmatprep.subr.mxu0 0.0
      %1233 = vmatpush1.msra.mxu0 0.0
      %1234 = vmatprep.mubr.f32.mxu0 0.0
      %1235 = vmatmul.mubr.f32.gmra.mrb[0].mxu0 %v1165
      %v1236 = vpop.f32.mrb[0].mxu0
      %v1237 = vadd.f32 %v1162, %v1236
      %v1238 = vpop.f32.mrb[0].mxu0
      %1239 = vdwg.mxu0
      %v1240 = vadd.f32 %v1156, %v1237
      %v1241 = vmax.f32 %v1240, 0.0
      // Predicated region
      $region105: #{audio_tcn_forward.1} parent=95 // pred_check
        %p1242 = pneg %p622
      $region106: #{audio_tcn_forward.1} parent=95 // pred_check_branch
        %1244 = sbr.rel (%p1242) target = $region108
      $region107: #{audio_tcn_forward.1} parent=95 // pred_region
        %vm1245 = vcmask 1048544
        %1246 = vst.msk [vmem:[#allocation4] sm:$0xff] %vm1245, 0.0
        %1247 = vst.msk [vmem:[#allocation5] sm:$0xff] %vm1245, 0.0
      $region108: #{audio_tcn_forward.1} parent=95 // pred_fallthru
        _
      // Predicated region
      $region109: #{audio_tcn_forward.1} parent=95 // pred_check
        %p1248 = pneg %p630
      $region110: #{audio_tcn_forward.1} parent=95 // pred_check_branch
        %1250 = sbr.rel (%p1248) target = $region112
      $region111: #{audio_tcn_forward.1} parent=95 // pred_region
        %v1251 = vld [vmem:[#allocation4 + $0x8] sm:$0xff]
        %1253 = vrot.lane.b32.xlu0 %v1251, 112
        %v1254 = vpop.permute.xlu0 %1253
        %vm1256 = vcmask 1048544
        %1257 = vst.msk [vmem:[#allocation4] sm:$0xff] %vm1256, %v1254
        %v1258 = vld [vmem:[#allocation5 + $0x8] sm:$0xff]
        %1260 = vrot.lane.b32.xlu0 %v1258, 112
        %v1261 = vpop.permute.xlu0 %1260
        %1263 = vst.msk [vmem:[#allocation5] sm:$0xff] %vm1256, %v1261
      $region112: #{audio_tcn_forward.1} parent=95 // pred_fallthru
        _
      %1264 = vst.msk [vmem:[#allocation4 + $0x8] sm:$0xff] %vm908, %v1241
      %v1265 = vld [vmem:[%s7] sm:$0xff]
      %v1266 = vld [vmem:[#allocation4] sm:$0xff]
      %v1267 = vld [vmem:[#allocation4 + $0x8] sm:$0xff]
      %1269 = vrot.lane.b32.xlu0 %v1265, 120
      %v1270 = vpop.permute.xlu0 %1269
      %1273 = vrot.lane.b32.xlu0 %v1266, 2
      %v1274 = vpop.permute.xlu0 %1273
      %1275 = vrot.lane.b32.xlu0 %v1267, 2
      %v1276 = vpop.permute.xlu0 %1275
      %v1277 = vsel %vm743, %v1274, %v1276
      %v1279 = vsel %vm924, %v1270, 0
      %1281 = vmatprep.subr.mxu0 0.0
      %1282 = vmatpush1.msra.mxu0 %v1277
      %1283 = vmatprep.subr.mxu0 0.0
      %1284 = vmatpush1.msra.mxu0 0.0
      %1285 = vmatprep.subr.mxu0 0.0
      %1286 = vmatpush1.msra.mxu0 0.0
      %1287 = vmatprep.subr.mxu0 0.0
      %1288 = vmatpush1.msra.mxu0 0.0
      %1289 = vmatprep.subr.mxu0 0.0
      %1290 = vmatpush1.msra.mxu0 0.0
      %1291 = vmatprep.subr.mxu0 0.0
      %1292 = vmatpush1.msra.mxu0 0.0
      %1293 = vmatprep.subr.mxu0 0.0
      %1294 = vmatpush1.msra.mxu0 0.0
      %1295 = vmatprep.subr.mxu0 0.0
      %1296 = vmatpush1.msra.mxu0 0.0
      %1297 = vmatprep.subr.mxu0 0.0
      %1298 = vmatpush1.msra.mxu0 0.0
      %1299 = vmatprep.subr.mxu0 0.0
      %1300 = vmatpush1.msra.mxu0 0.0
      %1301 = vmatprep.subr.mxu0 0.0
      %1302 = vmatpush1.msra.mxu0 0.0
      %1303 = vmatprep.subr.mxu0 0.0
      %1304 = vmatpush1.msra.mxu0 0.0
      %1305 = vmatprep.subr.mxu0 0.0
      %1306 = vmatpush1.msra.mxu0 0.0
      %1307 = vmatprep.subr.mxu0 0.0
      %1308 = vmatpush1.msra.mxu0 0.0
      %1309 = vmatprep.subr.mxu0 0.0
      %1310 = vmatpush1.msra.mxu0 0.0
      %1311 = vmatprep.subr.mxu0 0.0
      %1312 = vmatpush1.msra.mxu0 0.0
      %1313 = vmatprep.subr.mxu0 0.0
      %1314 = vmatpush1.msra.mxu0 0.0
      %1315 = vmatprep.subr.mxu0 0.0
      %1316 = vmatpush1.msra.mxu0 0.0
      %1317 = vmatprep.subr.mxu0 0.0
      %1318 = vmatpush1.msra.mxu0 0.0
      %1319 = vmatprep.subr.mxu0 0.0
      %1320 = vmatpush1.msra.mxu0 0.0
      %1321 = vmatprep.subr.mxu0 0.0
      %1322 = vmatpush1.msra.mxu0 0.0
      %1323 = vmatprep.subr.mxu0 0.0
      %1324 = vmatpush1.msra.mxu0 0.0
      %1325 = vmatprep.subr.mxu0 0.0
      %1326 = vmatpush1.msra.mxu0 0.0
      %1327 = vmatprep.subr.mxu0 0.0
      %1328 = vmatpush1.msra.mxu0 0.0
      %1329 = vmatprep.subr.mxu0 0.0
      %1330 = vmatpush1.msra.mxu0 0.0
      %1331 = vmatprep.subr.mxu0 0.0
      %1332 = vmatpush1.msra.mxu0 0.0
      %1333 = vmatprep.subr.mxu0 0.0
      %1334 = vmatpush1.msra.mxu0 0.0
      %1335 = vmatprep.subr.mxu0 0.0
      %1336 = vmatpush1.msra.mxu0 0.0
      %1337 = vmatprep.subr.mxu0 0.0
      %1338 = vmatpush1.msra.mxu0 0.0
      %1339 = vmatprep.subr.mxu0 0.0
      %1340 = vmatpush1.msra.mxu0 0.0
      %1341 = vmatprep.subr.mxu0 0.0
      %1342 = vmatpush1.msra.mxu0 0.0
      %1343 = vmatprep.subr.mxu0 0.0
      %1344 = vmatpush1.msra.mxu0 0.0
      %1345 = vmatprep.mubr.f32.mxu0 0.0
      %1346 = vmatmul.mubr.f32.gmra.mrb[0].mxu0 %v1279
      %v1347 = vpop.f32.mrb[0].mxu0
      %v1348 = vadd.f32 0.0, %v1347
      %v1349 = vpop.f32.mrb[0].mxu0
      %1350 = vdwg.mxu0
      %1351 = vrot.lane.b32.xlu0 %v1266, 4
      %v1352 = vpop.permute.xlu0 %1351
      %1353 = vrot.lane.b32.xlu0 %v1267, 4
      %v1354 = vpop.permute.xlu0 %1353
      %v1355 = vsel %vm663, %v1352, %v1354
      %v1357 = vsel %vm924, %v1265, 0
      %1359 = vmatprep.subr.mxu0 0.0
      %1360 = vmatpush1.msra.mxu0 %v1355
      %1361 = vmatprep.subr.mxu0 0.0
      %1362 = vmatpush1.msra.mxu0 0.0
      %1363 = vmatprep.subr.mxu0 0.0
      %1364 = vmatpush1.msra.mxu0 0.0
      %1365 = vmatprep.subr.mxu0 0.0
      %1366 = vmatpush1.msra.mxu0 0.0
      %1367 = vmatprep.subr.mxu0 0.0
      %1368 = vmatpush1.msra.mxu0 0.0
      %1369 = vmatprep.subr.mxu0 0.0
      %1370 = vmatpush1.msra.mxu0 0.0
      %1371 = vmatprep.subr.mxu0 0.0
      %1372 = vmatpush1.msra.mxu0 0.0
      %1373 = vmatprep.subr.mxu0 0.0
      %1374 = vmatpush1.msra.mxu0 0.0
      %1375 = vmatprep.subr.mxu0 0.0
      %1376 = vmatpush1.msra.mxu0 0.0
      %1377 = vmatprep.subr.mxu0 0.0
      %1378 = vmatpush1.msra.mxu0 0.0
      %1379 = vmatprep.subr.mxu0 0.0
      %1380 = vmatpush1.msra.mxu0 0.0
      %1381 = vmatprep.subr.mxu0 0.0
      %1382 = vmatpush1.msra.mxu0 0.0
      %1383 = vmatprep.subr.mxu0 0.0
      %1384 = vmatpush1.msra.mxu0 0.0
      %1385 = vmatprep.subr.mxu0 0.0
      %1386 = vmatpush1.msra.mxu0 0.0
      %1387 = vmatprep.subr.mxu0 0.0
      %1388 = vmatpush1.msra.mxu0 0.0
      %1389 = vmatprep.subr.mxu0 0.0
      %1390 = vmatpush1.msra.mxu0 0.0
      %1391 = vmatprep.subr.mxu0 0.0
      %1392 = vmatpush1.msra.mxu0 0.0
      %1393 = vmatprep.subr.mxu0 0.0
      %1394 = vmatpush1.msra.mxu0 0.0
      %1395 = vmatprep.subr.mxu0 0.0
      %1396 = vmatpush1.msra.mxu0 0.0
      %1397 = vmatprep.subr.mxu0 0.0
      %1398 = vmatpush1.msra.mxu0 0.0
      %1399 = vmatprep.subr.mxu0 0.0
      %1400 = vmatpush1.msra.mxu0 0.0
      %1401 = vmatprep.subr.mxu0 0.0
      %1402 = vmatpush1.msra.mxu0 0.0
      %1403 = vmatprep.subr.mxu0 0.0
      %1404 = vmatpush1.msra.mxu0 0.0
      %1405 = vmatprep.subr.mxu0 0.0
      %1406 = vmatpush1.msra.mxu0 0.0
      %1407 = vmatprep.subr.mxu0 0.0
      %1408 = vmatpush1.msra.mxu0 0.0
      %1409 = vmatprep.subr.mxu0 0.0
      %1410 = vmatpush1.msra.mxu0 0.0
      %1411 = vmatprep.subr.mxu0 0.0
      %1412 = vmatpush1.msra.mxu0 0.0
      %1413 = vmatprep.subr.mxu0 0.0
      %1414 = vmatpush1.msra.mxu0 0.0
      %1415 = vmatprep.subr.mxu0 0.0
      %1416 = vmatpush1.msra.mxu0 0.0
      %1417 = vmatprep.subr.mxu0 0.0
      %1418 = vmatpush1.msra.mxu0 0.0
      %1419 = vmatprep.subr.mxu0 0.0
      %1420 = vmatpush1.msra.mxu0 0.0
      %1421 = vmatprep.subr.mxu0 0.0
      %1422 = vmatpush1.msra.mxu0 0.0
      %1423 = vmatprep.mubr.f32.mxu0 0.0
      %1424 = vmatmul.mubr.f32.gmra.mrb[0].mxu0 %v1357
      %v1425 = vpop.f32.mrb[0].mxu0
      %v1426 = vadd.f32 %v1348, %v1425
      %v1427 = vpop.f32.mrb[0].mxu0
      %1428 = vdwg.mxu0
      %1429 = vrot.lane.b32.xlu0 %v1265, 112
      %v1430 = vpop.permute.xlu0 %1429
      %v1431 = vsel %vm924, %v1430, 0
      %1433 = vmatprep.subr.mxu0 0.0
      %1434 = vmatpush1.msra.mxu0 %v1267
      %1435 = vmatprep.subr.mxu0 0.0
      %1436 = vmatpush1.msra.mxu0 0.0
      %1437 = vmatprep.subr.mxu0 0.0
      %1438 = vmatpush1.msra.mxu0 0.0
      %1439 = vmatprep.subr.mxu0 0.0
      %1440 = vmatpush1.msra.mxu0 0.0
      %1441 = vmatprep.subr.mxu0 0.0
      %1442 = vmatpush1.msra.mxu0 0.0
      %1443 = vmatprep.subr.mxu0 0.0
      %1444 = vmatpush1.msra.mxu0 0.0
      %1445 = vmatprep.subr.mxu0 0.0
      %1446 = vmatpush1.msra.mxu0 0.0
      %1447 = vmatprep.subr.mxu0 0.0
      %1448 = vmatpush1.msra.mxu0 0.0
      %1449 = vmatprep.subr.mxu0 0.0
      %1450 = vmatpush1.msra.mxu0 0.0
      %1451 = vmatprep.subr.mxu0 0.0
      %1452 = vmatpush1.msra.mxu0 0.0
      %1453 = vmatprep.subr.mxu0 0.0
      %1454 = vmatpush1.msra.mxu0 0.0
      %1455 = vmatprep.subr.mxu0 0.0
      %1456 = vmatpush1.msra.mxu0 0.0
      %1457 = vmatprep.subr.mxu0 0.0
      %1458 = vmatpush1.msra.mxu0 0.0
      %1459 = vmatprep.subr.mxu0 0.0
      %1460 = vmatpush1.msra.mxu0 0.0
      %1461 = vmatprep.subr.mxu0 0.0
      %1462 = vmatpush1.msra.mxu0 0.0
      %1463 = vmatprep.subr.mxu0 0.0
      %1464 = vmatpush1.msra.mxu0 0.0
      %1465 = vmatprep.subr.mxu0 0.0
      %1466 = vmatpush1.msra.mxu0 0.0
      %1467 = vmatprep.subr.mxu0 0.0
      %1468 = vmatpush1.msra.mxu0 0.0
      %1469 = vmatprep.subr.mxu0 0.0
      %1470 = vmatpush1.msra.mxu0 0.0
      %1471 = vmatprep.subr.mxu0 0.0
      %1472 = vmatpush1.msra.mxu0 0.0
      %1473 = vmatprep.subr.mxu0 0.0
      %1474 = vmatpush1.msra.mxu0 0.0
      %1475 = vmatprep.subr.mxu0 0.0
      %1476 = vmatpush1.msra.mxu0 0.0
      %1477 = vmatprep.subr.mxu0 0.0
      %1478 = vmatpush1.msra.mxu0 0.0
      %1479 = vmatprep.subr.mxu0 0.0
      %1480 = vmatpush1.msra.mxu0 0.0
      %1481 = vmatprep.subr.mxu0 0.0
      %1482 = vmatpush1.msra.mxu0 0.0
      %1483 = vmatprep.subr.mxu0 0.0
      %1484 = vmatpush1.msra.mxu0 0.0
      %1485 = vmatprep.subr.mxu0 0.0
      %1486 = vmatpush1.msra.mxu0 0.0
      %1487 = vmatprep.subr.mxu0 0.0
      %1488 = vmatpush1.msra.mxu0 0.0
      %1489 = vmatprep.subr.mxu0 0.0
      %1490 = vmatpush1.msra.mxu0 0.0
      %1491 = vmatprep.subr.mxu0 0.0
      %1492 = vmatpush1.msra.mxu0 0.0
      %1493 = vmatprep.subr.mxu0 0.0
      %1494 = vmatpush1.msra.mxu0 0.0
      %1495 = vmatprep.subr.mxu0 0.0
      %1496 = vmatpush1.msra.mxu0 0.0
      %1497 = vmatprep.mubr.f32.mxu0 0.0
      %1498 = vmatmul.mubr.f32.gmra.mrb[0].mxu0 %v1431
      %v1499 = vpop.f32.mrb[0].mxu0
      %v1500 = vadd.f32 0.0, %v1499
      %v1501 = vpop.f32.mrb[0].mxu0
      %1502 = vdwg.mxu0
      %v1503 = vadd.f32 %v1426, %v1500
      %v1504 = vld [vmem:[%s8] sm:$0xff]
      %1506 = vset.pattern.permute.xlu0 0
      %1507 = vperm.xlu0 %1506, %v1504
      %v1508 = vpop.permute.xlu0 %1507
      %v1510 = vadd.f32 %v1503, %v1508
      %v1511 = vmax.f32 %v1510, 0.0
      %1512 = vst.msk [vmem:[#allocation5 + $0x8] sm:$0xff] %vm908, %v1511
      %v1513 = vld [vmem:[%s9] sm:$0xff]
      %v1514 = vld [vmem:[#allocation5] sm:$0xff]
      %v1515 = vld [vmem:[#allocation5 + $0x8] sm:$0xff]
      %1517 = vrot.lane.b32.xlu0 %v1513, 120
      %v1518 = vpop.permute.xlu0 %1517
      %1521 = vrot.lane.b32.xlu0 %v1514, 2
      %v1522 = vpop.permute.xlu0 %1521
      %1523 = vrot.lane.b32.xlu0 %v1515, 2
      %v1524 = vpop.permute.xlu0 %1523
      %v1525 = vsel %vm743, %v1522, %v1524
      %v1527 = vsel %vm924, %v1518, 0
      %1529 = vmatprep.subr.mxu0 0.0
      %1530 = vmatpush1.msra.mxu0 %v1525
      %1531 = vmatprep.subr.mxu0 0.0
      %1532 = vmatpush1.msra.mxu0 0.0
      %1533 = vmatprep.subr.mxu0 0.0
      %1534 = vmatpush1.msra.mxu0 0.0
      %1535 = vmatprep.subr.mxu0 0.0
      %1536 = vmatpush1.msra.mxu0 0.0
      %1537 = vmatprep.subr.mxu0 0.0
      %1538 = vmatpush1.msra.mxu0 0.0
      %1539 = vmatprep.subr.mxu0 0.0
      %1540 = vmatpush1.msra.mxu0 0.0
      %1541 = vmatprep.subr.mxu0 0.0
      %1542 = vmatpush1.msra.mxu0 0.0
      %1543 = vmatprep.subr.mxu0 0.0
      %1544 = vmatpush1.msra.mxu0 0.0
      %1545 = vmatprep.subr.mxu0 0.0
      %1546 = vmatpush1.msra.mxu0 0.0
      %1547 = vmatprep.subr.mxu0 0.0
      %1548 = vmatpush1.msra.mxu0 0.0
      %1549 = vmatprep.subr.mxu0 0.0
      %1550 = vmatpush1.msra.mxu0 0.0
      %1551 = vmatprep.subr.mxu0 0.0
      %1552 = vmatpush1.msra.mxu0 0.0
      %1553 = vmatprep.subr.mxu0 0.0
      %1554 = vmatpush1.msra.mxu0 0.0
      %1555 = vmatprep.subr.mxu0 0.0
      %1556 = vmatpush1.msra.mxu0 0.0
      %1557 = vmatprep.subr.mxu0 0.0
      %1558 = vmatpush1.msra.mxu0 0.0
      %1559 = vmatprep.subr.mxu0 0.0
      %1560 = vmatpush1.msra.mxu0 0.0
      %1561 = vmatprep.subr.mxu0 0.0
      %1562 = vmatpush1.msra.mxu0 0.0
      %1563 = vmatprep.subr.mxu0 0.0
      %1564 = vmatpush1.msra.mxu0 0.0
      %1565 = vmatprep.subr.mxu0 0.0
      %1566 = vmatpush1.msra.mxu0 0.0
      %1567 = vmatprep.subr.mxu0 0.0
      %1568 = vmatpush1.msra.mxu0 0.0
      %1569 = vmatprep.subr.mxu0 0.0
      %1570 = vmatpush1.msra.mxu0 0.0
      %1571 = vmatprep.subr.mxu0 0.0
      %1572 = vmatpush1.msra.mxu0 0.0
      %1573 = vmatprep.subr.mxu0 0.0
      %1574 = vmatpush1.msra.mxu0 0.0
      %1575 = vmatprep.subr.mxu0 0.0
      %1576 = vmatpush1.msra.mxu0 0.0
      %1577 = vmatprep.subr.mxu0 0.0
      %1578 = vmatpush1.msra.mxu0 0.0
      %1579 = vmatprep.subr.mxu0 0.0
      %1580 = vmatpush1.msra.mxu0 0.0
      %1581 = vmatprep.subr.mxu0 0.0
      %1582 = vmatpush1.msra.mxu0 0.0
      %1583 = vmatprep.subr.mxu0 0.0
      %1584 = vmatpush1.msra.mxu0 0.0
      %1585 = vmatprep.subr.mxu0 0.0
      %1586 = vmatpush1.msra.mxu0 0.0
      %1587 = vmatprep.subr.mxu0 0.0
      %1588 = vmatpush1.msra.mxu0 0.0
      %1589 = vmatprep.subr.mxu0 0.0
      %1590 = vmatpush1.msra.mxu0 0.0
      %1591 = vmatprep.subr.mxu0 0.0
      %1592 = vmatpush1.msra.mxu0 0.0
      %1593 = vmatprep.mubr.f32.mxu0 0.0
      %1594 = vmatmul.mubr.f32.gmra.mrb[0].mxu0 %v1527
      %v1595 = vpop.f32.mrb[0].mxu0
      %v1596 = vadd.f32 0.0, %v1595
      %v1597 = vpop.f32.mrb[0].mxu0
      %1598 = vdwg.mxu0
      %1599 = vrot.lane.b32.xlu0 %v1514, 4
      %v1600 = vpop.permute.xlu0 %1599
      %1601 = vrot.lane.b32.xlu0 %v1515, 4
      %v1602 = vpop.permute.xlu0 %1601
      %v1603 = vsel %vm663, %v1600, %v1602
      %v1605 = vsel %vm924, %v1513, 0
      %1607 = vmatprep.subr.mxu0 0.0
      %1608 = vmatpush1.msra.mxu0 %v1603
      %1609 = vmatprep.subr.mxu0 0.0
      %1610 = vmatpush1.msra.mxu0 0.0
      %1611 = vmatprep.subr.mxu0 0.0
      %1612 = vmatpush1.msra.mxu0 0.0
      %1613 = vmatprep.subr.mxu0 0.0
      %1614 = vmatpush1.msra.mxu0 0.0
      %1615 = vmatprep.subr.mxu0 0.0
      %1616 = vmatpush1.msra.mxu0 0.0
      %1617 = vmatprep.subr.mxu0 0.0
      %1618 = vmatpush1.msra.mxu0 0.0
      %1619 = vmatprep.subr.mxu0 0.0
      %1620 = vmatpush1.msra.mxu0 0.0
      %1621 = vmatprep.subr.mxu0 0.0
      %1622 = vmatpush1.msra.mxu0 0.0
      %1623 = vmatprep.subr.mxu0 0.0
      %1624 = vmatpush1.msra.mxu0 0.0
      %1625 = vmatprep.subr.mxu0 0.0
      %1626 = vmatpush1.msra.mxu0 0.0
      %1627 = vmatprep.subr.mxu0 0.0
      %1628 = vmatpush1.msra.mxu0 0.0
      %1629 = vmatprep.subr.mxu0 0.0
      %1630 = vmatpush1.msra.mxu0 0.0
      %1631 = vmatprep.subr.mxu0 0.0
      %1632 = vmatpush1.msra.mxu0 0.0
      %1633 = vmatprep.subr.mxu0 0.0
      %1634 = vmatpush1.msra.mxu0 0.0
      %1635 = vmatprep.subr.mxu0 0.0
      %1636 = vmatpush1.msra.mxu0 0.0
      %1637 = vmatprep.subr.mxu0 0.0
      %1638 = vmatpush1.msra.mxu0 0.0
      %1639 = vmatprep.subr.mxu0 0.0
      %1640 = vmatpush1.msra.mxu0 0.0
      %1641 = vmatprep.subr.mxu0 0.0
      %1642 = vmatpush1.msra.mxu0 0.0
      %1643 = vmatprep.subr.mxu0 0.0
      %1644 = vmatpush1.msra.mxu0 0.0
      %1645 = vmatprep.subr.mxu0 0.0
      %1646 = vmatpush1.msra.mxu0 0.0
      %1647 = vmatprep.subr.mxu0 0.0
      %1648 = vmatpush1.msra.mxu0 0.0
      %1649 = vmatprep.subr.mxu0 0.0
      %1650 = vmatpush1.msra.mxu0 0.0
      %1651 = vmatprep.subr.mxu0 0.0
      %1652 = vmatpush1.msra.mxu0 0.0
      %1653 = vmatprep.subr.mxu0 0.0
      %1654 = vmatpush1.msra.mxu0 0.0
      %1655 = vmatprep.subr.mxu0 0.0
      %1656 = vmatpush1.msra.mxu0 0.0
      %1657 = vmatprep.subr.mxu0 0.0
      %1658 = vmatpush1.msra.mxu0 0.0
      %1659 = vmatprep.subr.mxu0 0.0
      %1660 = vmatpush1.msra.mxu0 0.0
      %1661 = vmatprep.subr.mxu0 0.0
      %1662 = vmatpush1.msra.mxu0 0.0
      %1663 = vmatprep.subr.mxu0 0.0
      %1664 = vmatpush1.msra.mxu0 0.0
      %1665 = vmatprep.subr.mxu0 0.0
      %1666 = vmatpush1.msra.mxu0 0.0
      %1667 = vmatprep.subr.mxu0 0.0
      %1668 = vmatpush1.msra.mxu0 0.0
      %1669 = vmatprep.subr.mxu0 0.0
      %1670 = vmatpush1.msra.mxu0 0.0
      %1671 = vmatprep.mubr.f32.mxu0 0.0
      %1672 = vmatmul.mubr.f32.gmra.mrb[0].mxu0 %v1605
      %v1673 = vpop.f32.mrb[0].mxu0
      %v1674 = vadd.f32 %v1596, %v1673
      %v1675 = vpop.f32.mrb[0].mxu0
      %1676 = vdwg.mxu0
      %1677 = vrot.lane.b32.xlu0 %v1513, 112
      %v1678 = vpop.permute.xlu0 %1677
      %v1679 = vsel %vm924, %v1678, 0
      %1681 = vmatprep.subr.mxu0 0.0
      %1682 = vmatpush1.msra.mxu0 %v1515
      %1683 = vmatprep.subr.mxu0 0.0
      %1684 = vmatpush1.msra.mxu0 0.0
      %1685 = vmatprep.subr.mxu0 0.0
      %1686 = vmatpush1.msra.mxu0 0.0
      %1687 = vmatprep.subr.mxu0 0.0
      %1688 = vmatpush1.msra.mxu0 0.0
      %1689 = vmatprep.subr.mxu0 0.0
      %1690 = vmatpush1.msra.mxu0 0.0
      %1691 = vmatprep.subr.mxu0 0.0
      %1692 = vmatpush1.msra.mxu0 0.0
      %1693 = vmatprep.subr.mxu0 0.0
      %1694 = vmatpush1.msra.mxu0 0.0
      %1695 = vmatprep.subr.mxu0 0.0
      %1696 = vmatpush1.msra.mxu0 0.0
      %1697 = vmatprep.subr.mxu0 0.0
      %1698 = vmatpush1.msra.mxu0 0.0
      %1699 = vmatprep.subr.mxu0 0.0
      %1700 = vmatpush1.msra.mxu0 0.0
      %1701 = vmatprep.subr.mxu0 0.0
      %1702 = vmatpush1.msra.mxu0 0.0
      %1703 = vmatprep.subr.mxu0 0.0
      %1704 = vmatpush1.msra.mxu0 0.0
      %1705 = vmatprep.subr.mxu0 0.0
      %1706 = vmatpush1.msra.mxu0 0.0
      %1707 = vmatprep.subr.mxu0 0.0
      %1708 = vmatpush1.msra.mxu0 0.0
      %1709 = vmatprep.subr.mxu0 0.0
      %1710 = vmatpush1.msra.mxu0 0.0
      %1711 = vmatprep.subr.mxu0 0.0
      %1712 = vmatpush1.msra.mxu0 0.0
      %1713 = vmatprep.subr.mxu0 0.0
      %1714 = vmatpush1.msra.mxu0 0.0
      %1715 = vmatprep.subr.mxu0 0.0
      %1716 = vmatpush1.msra.mxu0 0.0
      %1717 = vmatprep.subr.mxu0 0.0
      %1718 = vmatpush1.msra.mxu0 0.0
      %1719 = vmatprep.subr.mxu0 0.0
      %1720 = vmatpush1.msra.mxu0 0.0
      %1721 = vmatprep.subr.mxu0 0.0
      %1722 = vmatpush1.msra.mxu0 0.0
      %1723 = vmatprep.subr.mxu0 0.0
      %1724 = vmatpush1.msra.mxu0 0.0
      %1725 = vmatprep.subr.mxu0 0.0
      %1726 = vmatpush1.msra.mxu0 0.0
      %1727 = vmatprep.subr.mxu0 0.0
      %1728 = vmatpush1.msra.mxu0 0.0
      %1729 = vmatprep.subr.mxu0 0.0
      %1730 = vmatpush1.msra.mxu0 0.0
      %1731 = vmatprep.subr.mxu0 0.0
      %1732 = vmatpush1.msra.mxu0 0.0
      %1733 = vmatprep.subr.mxu0 0.0
      %1734 = vmatpush1.msra.mxu0 0.0
      %1735 = vmatprep.subr.mxu0 0.0
      %1736 = vmatpush1.msra.mxu0 0.0
      %1737 = vmatprep.subr.mxu0 0.0
      %1738 = vmatpush1.msra.mxu0 0.0
      %1739 = vmatprep.subr.mxu0 0.0
      %1740 = vmatpush1.msra.mxu0 0.0
      %1741 = vmatprep.subr.mxu0 0.0
      %1742 = vmatpush1.msra.mxu0 0.0
      %1743 = vmatprep.subr.mxu0 0.0
      %1744 = vmatpush1.msra.mxu0 0.0
      %1745 = vmatprep.mubr.f32.mxu0 0.0
      %1746 = vmatmul.mubr.f32.gmra.mrb[0].mxu0 %v1679
      %v1747 = vpop.f32.mrb[0].mxu0
      %v1748 = vadd.f32 0.0, %v1747
      %v1749 = vpop.f32.mrb[0].mxu0
      %1750 = vdwg.mxu0
      %v1751 = vadd.f32 %v1674, %v1748
      %v1752 = vld [vmem:[%s10] sm:$0xff]
      %1754 = vset.pattern.permute.xlu0 0
      %1755 = vperm.xlu0 %1754, %v1752
      %v1756 = vpop.permute.xlu0 %1755
      %v1758 = vadd.f32 %v1751, %v1756
      %v1759 = vadd.f32 %v1758, %v1241
      %v1760 = vmax.f32 %v1759, 0.0
      // Predicated region
      $region113: #{audio_tcn_forward.1} parent=95 // pred_check
        %p1761 = pneg %p622
      $region114: #{audio_tcn_forward.1} parent=95 // pred_check_branch
        %1763 = sbr.rel (%p1761) target = $region116
      $region115: #{audio_tcn_forward.1} parent=95 // pred_region
        %vm1764 = vcmask 1048512
        %1765 = vst.msk [vmem:[#allocation6] sm:$0xff] %vm1764, 0.0
        %1766 = vst.msk [vmem:[#allocation7] sm:$0xff] %vm1764, 0.0
        %1767 = vst.msk [vmem:[#allocation7 + $0x10] sm:$0xff] %vm1764, 0.0
      $region116: #{audio_tcn_forward.1} parent=95 // pred_fallthru
        _
      // Predicated region
      $region117: #{audio_tcn_forward.1} parent=95 // pred_check
        %p1768 = pneg %p630
      $region118: #{audio_tcn_forward.1} parent=95 // pred_check_branch
        %1770 = sbr.rel (%p1768) target = $region120
      $region119: #{audio_tcn_forward.1} parent=95 // pred_region
        %v1771 = vld [vmem:[#allocation6 + $0x8] sm:$0xff]
        %1773 = vrot.lane.b32.xlu0 %v1771, 112
        %v1774 = vpop.permute.xlu0 %1773
        %vm1776 = vcmask 1048512
        %1777 = vst.msk [vmem:[#allocation6] sm:$0xff] %vm1776, %v1774
        %v1778 = vld [vmem:[#allocation7 + $0x8] sm:$0xff]
        %v1779 = vld [vmem:[#allocation7 + $0x18] sm:$0xff]
        %1782 = vrot.lane.b32.xlu0 %v1778, 112
        %v1783 = vpop.permute.xlu0 %1782
        %1784 = vrot.lane.b32.xlu0 %v1779, 112
        %v1785 = vpop.permute.xlu0 %1784
        %1788 = vst.msk [vmem:[#allocation7] sm:$0xff] %vm1776, %v1783
        %1789 = vst.msk [vmem:[#allocation7 + $0x10] sm:$0xff] %vm1776, %v1785
      $region120: #{audio_tcn_forward.1} parent=95 // pred_fallthru
        _
      %1790 = vst.msk [vmem:[#allocation6 + $0x8] sm:$0xff] %vm908, %v1760
      %v1791 = vld [vmem:[%s11] sm:$0xff]
      %v1792 = vld [vmem:[%s11 + $0x8] sm:$0xff]
      %v1793 = vld [vmem:[#allocation6] sm:$0xff]
      %v1794 = vld [vmem:[#allocation6 + $0x8] sm:$0xff]
      %1797 = vrot.lane.b32.xlu0 %v1791, 120
      %v1798 = vpop.permute.xlu0 %1797
      %1799 = vrot.lane.b32.xlu0 %v1792, 120
      %v1800 = vpop.permute.xlu0 %1799
      %1803 = vrot.lane.b32.xlu0 %v1793, 4
      %v1804 = vpop.permute.xlu0 %1803
      %1805 = vrot.lane.b32.xlu0 %v1794, 4
      %v1806 = vpop.permute.xlu0 %1805
      %v1807 = vsel %vm663, %v1804, %v1806
      %v1809 = vsel %vm924, %v1798, 0
      %v1811 = vsel %vm924, %v1800, 0
      %1813 = vmatprep.subr.mxu0 0.0
      %1814 = vmatpush1.msra.mxu0 %v1807
      %1815 = vmatprep.subr.mxu0 0.0
      %1816 = vmatpush1.msra.mxu0 0.0
      %1817 = vmatprep.subr.mxu0 0.0
      %1818 = vmatpush1.msra.mxu0 0.0
      %1819 = vmatprep.subr.mxu0 0.0
      %1820 = vmatpush1.msra.mxu0 0.0
      %1821 = vmatprep.subr.mxu0 0.0
      %1822 = vmatpush1.msra.mxu0 0.0
      %1823 = vmatprep.subr.mxu0 0.0
      %1824 = vmatpush1.msra.mxu0 0.0
      %1825 = vmatprep.subr.mxu0 0.0
      %1826 = vmatpush1.msra.mxu0 0.0
      %1827 = vmatprep.subr.mxu0 0.0
      %1828 = vmatpush1.msra.mxu0 0.0
      %1829 = vmatprep.subr.mxu0 0.0
      %1830 = vmatpush1.msra.mxu0 0.0
      %1831 = vmatprep.subr.mxu0 0.0
      %1832 = vmatpush1.msra.mxu0 0.0
      %1833 = vmatprep.subr.mxu0 0.0
      %1834 = vmatpush1.msra.mxu0 0.0
      %1835 = vmatprep.subr.mxu0 0.0
      %1836 = vmatpush1.msra.mxu0 0.0
      %1837 = vmatprep.subr.mxu0 0.0
      %1838 = vmatpush1.msra.mxu0 0.0
      %1839 = vmatprep.subr.mxu0 0.0
      %1840 = vmatpush1.msra.mxu0 0.0
      %1841 = vmatprep.subr.mxu0 0.0
      %1842 = vmatpush1.msra.mxu0 0.0
      %1843 = vmatprep.subr.mxu0 0.0
      %1844 = vmatpush1.msra.mxu0 0.0
      %1845 = vmatprep.subr.mxu0 0.0
      %1846 = vmatpush1.msra.mxu0 0.0
      %1847 = vmatprep.subr.mxu0 0.0
      %1848 = vmatpush1.msra.mxu0 0.0
      %1849 = vmatprep.subr.mxu0 0.0
      %1850 = vmatpush1.msra.mxu0 0.0
      %1851 = vmatprep.subr.mxu0 0.0
      %1852 = vmatpush1.msra.mxu0 0.0
      %1853 = vmatprep.subr.mxu0 0.0
      %1854 = vmatpush1.msra.mxu0 0.0
      %1855 = vmatprep.subr.mxu0 0.0
      %1856 = vmatpush1.msra.mxu0 0.0
      %1857 = vmatprep.subr.mxu0 0.0
      %1858 = vmatpush1.msra.mxu0 0.0
      %1859 = vmatprep.subr.mxu0 0.0
      %1860 = vmatpush1.msra.mxu0 0.0
      %1861 = vmatprep.subr.mxu0 0.0
      %1862 = vmatpush1.msra.mxu0 0.0
      %1863 = vmatprep.subr.mxu0 0.0
      %1864 = vmatpush1.msra.mxu0 0.0
      %1865 = vmatprep.subr.mxu0 0.0
      %1866 = vmatpush1.msra.mxu0 0.0
      %1867 = vmatprep.subr.mxu0 0.0
      %1868 = vmatpush1.msra.mxu0 0.0
      %1869 = vmatprep.subr.mxu0 0.0
      %1870 = vmatpush1.msra.mxu0 0.0
      %1871 = vmatprep.subr.mxu0 0.0
      %1872 = vmatpush1.msra.mxu0 0.0
      %1873 = vmatprep.subr.mxu0 0.0
      %1874 = vmatpush1.msra.mxu0 0.0
      %1875 = vmatprep.subr.mxu0 0.0
      %1876 = vmatpush1.msra.mxu0 0.0
      %1877 = vmatprep.mubr.f32.mxu0 0.0
      %1878 = vmatmul.mubr.f32.gmra.mrb[0].mxu0 %v1809
      %v1879 = vpop.f32.mrb[0].mxu0
      %v1880 = vadd.f32 0.0, %v1879
      %v1881 = vpop.f32.mrb[0].mxu0
      %1882 = vmatprep.mubr.f32.mxu0 0.0
      %1883 = vmatmul.mubr.f32.gmra.mrb[0].mxu0 %v1811
      %v1884 = vpop.f32.mrb[0].mxu0
      %v1885 = vadd.f32 0.0, %v1884
      %v1886 = vpop.f32.mrb[0].mxu0
      %1887 = vdwg.mxu0
      %1888 = vrot.lane.b32.xlu0 %v1793, 8
      %v1889 = vpop.permute.xlu0 %1888
      %1890 = vrot.lane.b32.xlu0 %v1794, 8
      %v1891 = vpop.permute.xlu0 %1890
      %v1892 = vsel %vm924, %v1889, %v1891
      %v1894 = vsel %vm924, %v1791, 0
      %v1896 = vsel %vm924, %v1792, 0
      %1898 = vmatprep.subr.mxu0 0.0
      %1899 = vmatpush1.msra.mxu0 %v1892
      %1900 = vmatprep.subr.mxu0 0.0
      %1901 = vmatpush1.msra.mxu0 0.0
      %1902 = vmatprep.subr.mxu0 0.0
      %1903 = vmatpush1.msra.mxu0 0.0
      %1904 = vmatprep.subr.mxu0 0.0
      %1905 = vmatpush1.msra.mxu0 0.0
      %1906 = vmatprep.subr.mxu0 0.0
      %1907 = vmatpush1.msra.mxu0 0.0
      %1908 = vmatprep.subr.mxu0 0.0
      %1909 = vmatpush1.msra.mxu0 0.0
      %1910 = vmatprep.subr.mxu0 0.0
      %1911 = vmatpush1.msra.mxu0 0.0
      %1912 = vmatprep.subr.mxu0 0.0
      %1913 = vmatpush1.msra.mxu0 0.0
      %1914 = vmatprep.subr.mxu0 0.0
      %1915 = vmatpush1.msra.mxu0 0.0
      %1916 = vmatprep.subr.mxu0 0.0
      %1917 = vmatpush1.msra.mxu0 0.0
      %1918 = vmatprep.subr.mxu0 0.0
      %1919 = vmatpush1.msra.mxu0 0.0
      %1920 = vmatprep.subr.mxu0 0.0
      %1921 = vmatpush1.msra.mxu0 0.0
      %1922 = vmatprep.subr.mxu0 0.0
      %1923 = vmatpush1.msra.mxu0 0.0
      %1924 = vmatprep.subr.mxu0 0.0
      %1925 = vmatpush1.msra.mxu0 0.0
      %1926 = vmatprep.subr.mxu0 0.0
      %1927 = vmatpush1.msra.mxu0 0.0
      %1928 = vmatprep.subr.mxu0 0.0
      %1929 = vmatpush1.msra.mxu0 0.0
      %1930 = vmatprep.subr.mxu0 0.0
      %1931 = vmatpush1.msra.mxu0 0.0
      %1932 = vmatprep.subr.mxu0 0.0
      %1933 = vmatpush1.msra.mxu0 0.0
      %1934 = vmatprep.subr.mxu0 0.0
      %1935 = vmatpush1.msra.mxu0 0.0
      %1936 = vmatprep.subr.mxu0 0.0
      %1937 = vmatpush1.msra.mxu0 0.0
      %1938 = vmatprep.subr.mxu0 0.0
      %1939 = vmatpush1.msra.mxu0 0.0
      %1940 = vmatprep.subr.mxu0 0.0
      %1941 = vmatpush1.msra.mxu0 0.0
      %1942 = vmatprep.subr.mxu0 0.0
      %1943 = vmatpush1.msra.mxu0 0.0
      %1944 = vmatprep.subr.mxu0 0.0
      %1945 = vmatpush1.msra.mxu0 0.0
      %1946 = vmatprep.subr.mxu0 0.0
      %1947 = vmatpush1.msra.mxu0 0.0
      %1948 = vmatprep.subr.mxu0 0.0
      %1949 = vmatpush1.msra.mxu0 0.0
      %1950 = vmatprep.subr.mxu0 0.0
      %1951 = vmatpush1.msra.mxu0 0.0
      %1952 = vmatprep.subr.mxu0 0.0
      %1953 = vmatpush1.msra.mxu0 0.0
      %1954 = vmatprep.subr.mxu0 0.0
      %1955 = vmatpush1.msra.mxu0 0.0
      %1956 = vmatprep.subr.mxu0 0.0
      %1957 = vmatpush1.msra.mxu0 0.0
      %1958 = vmatprep.subr.mxu0 0.0
      %1959 = vmatpush1.msra.mxu0 0.0
      %1960 = vmatprep.subr.mxu0 0.0
      %1961 = vmatpush1.msra.mxu0 0.0
      %1962 = vmatprep.mubr.f32.mxu0 0.0
      %1963 = vmatmul.mubr.f32.gmra.mrb[0].mxu0 %v1894
      %v1964 = vpop.f32.mrb[0].mxu0
      %v1965 = vadd.f32 %v1880, %v1964
      %v1966 = vpop.f32.mrb[0].mxu0
      %1967 = vmatprep.mubr.f32.mxu0 0.0
      %1968 = vmatmul.mubr.f32.gmra.mrb[0].mxu0 %v1896
      %v1969 = vpop.f32.mrb[0].mxu0
      %v1970 = vadd.f32 %v1885, %v1969
      %v1971 = vpop.f32.mrb[0].mxu0
      %1972 = vdwg.mxu0
      %1973 = vrot.lane.b32.xlu0 %v1791, 112
      %v1974 = vpop.permute.xlu0 %1973
      %1975 = vrot.lane.b32.xlu0 %v1792, 112
      %v1976 = vpop.permute.xlu0 %1975
      %v1977 = vsel %vm924, %v1974, 0
      %v1979 = vsel %vm924, %v1976, 0
      %1981 = vmatprep.subr.mxu0 0.0
      %1982 = vmatpush1.msra.mxu0 %v1794
      %1983 = vmatprep.subr.mxu0 0.0
      %1984 = vmatpush1.msra.mxu0 0.0
      %1985 = vmatprep.subr.mxu0 0.0
      %1986 = vmatpush1.msra.mxu0 0.0
      %1987 = vmatprep.subr.mxu0 0.0
      %1988 = vmatpush1.msra.mxu0 0.0
      %1989 = vmatprep.subr.mxu0 0.0
      %1990 = vmatpush1.msra.mxu0 0.0
      %1991 = vmatprep.subr.mxu0 0.0
      %1992 = vmatpush1.msra.mxu0 0.0
      %1993 = vmatprep.subr.mxu0 0.0
      %1994 = vmatpush1.msra.mxu0 0.0
      %1995 = vmatprep.subr.mxu0 0.0
      %1996 = vmatpush1.msra.mxu0 0.0
      %1997 = vmatprep.subr.mxu0 0.0
      %1998 = vmatpush1.msra.mxu0 0.0
      %1999 = vmatprep.subr.mxu0 0.0
      %2000 = vmatpush1.msra.mxu0 0.0
      %2001 = vmatprep.subr.mxu0 0.0
      %2002 = vmatpush1.msra.mxu0 0.0
      %2003 = vmatprep.subr.mxu0 0.0
      %2004 = vmatpush1.msra.mxu0 0.0
      %2005 = vmatprep.subr.mxu0 0.0
      %2006 = vmatpush1.msra.mxu0 0.0
      %2007 = vmatprep.subr.mxu0 0.0
      %2008 = vmatpush1.msra.mxu0 0.0
      %2009 = vmatprep.subr.mxu0 0.0
      %2010 = vmatpush1.msra.mxu0 0.0
      %2011 = vmatprep.subr.mxu0 0.0
      %2012 = vmatpush1.msra.mxu0 0.0
      %2013 = vmatprep.subr.mxu0 0.0
      %2014 = vmatpush1.msra.mxu0 0.0
      %2015 = vmatprep.subr.mxu0 0.0
      %2016 = vmatpush1.msra.mxu0 0.0
      %2017 = vmatprep.subr.mxu0 0.0
      %2018 = vmatpush1.msra.mxu0 0.0
      %2019 = vmatprep.subr.mxu0 0.0
      %2020 = vmatpush1.msra.mxu0 0.0
      %2021 = vmatprep.subr.mxu0 0.0
      %2022 = vmatpush1.msra.mxu0 0.0
      %2023 = vmatprep.subr.mxu0 0.0
      %2024 = vmatpush1.msra.mxu0 0.0
      %2025 = vmatprep.subr.mxu0 0.0
      %2026 = vmatpush1.msra.mxu0 0.0
      %2027 = vmatprep.subr.mxu0 0.0
      %2028 = vmatpush1.msra.mxu0 0.0
      %2029 = vmatprep.subr.mxu0 0.0
      %2030 = vmatpush1.msra.mxu0 0.0
      %2031 = vmatprep.subr.mxu0 0.0
      %2032 = vmatpush1.msra.mxu0 0.0
      %2033 = vmatprep.subr.mxu0 0.0
      %2034 = vmatpush1.msra.mxu0 0.0
      %2035 = vmatprep.subr.mxu0 0.0
      %2036 = vmatpush1.msra.mxu0 0.0
      %2037 = vmatprep.subr.mxu0 0.0
      %2038 = vmatpush1.msra.mxu0 0.0
      %2039 = vmatprep.subr.mxu0 0.0
      %2040 = vmatpush1.msra.mxu0 0.0
      %2041 = vmatprep.subr.mxu0 0.0
      %2042 = vmatpush1.msra.mxu0 0.0
      %2043 = vmatprep.subr.mxu0 0.0
      %2044 = vmatpush1.msra.mxu0 0.0
      %2045 = vmatprep.mubr.f32.mxu0 0.0
      %2046 = vmatmul.mubr.f32.gmra.mrb[0].mxu0 %v1977
      %v2047 = vpop.f32.mrb[0].mxu0
      %v2048 = vadd.f32 0.0, %v2047
      %v2049 = vpop.f32.mrb[0].mxu0
      %2050 = vmatprep.mubr.f32.mxu0 0.0
      %2051 = vmatmul.mubr.f32.gmra.mrb[0].mxu0 %v1979
      %v2052 = vpop.f32.mrb[0].mxu0
      %v2053 = vadd.f32 0.0, %v2052
      %v2054 = vpop.f32.mrb[0].mxu0
      %2055 = vdwg.mxu0
      %v2056 = vadd.f32 %v1965, %v2048
      %v2057 = vadd.f32 %v1970, %v2053
      %v2058 = vld [vmem:[%s12] sm:$0xff]
      %v2059 = vld [vmem:[%s12 + $0x8] sm:$0xff]
      %2061 = vset.pattern.permute.xlu0 0
      %2062 = vperm.xlu0 %2061, %v2058
      %v2063 = vpop.permute.xlu0 %2062
      %2066 = vset.pattern.permute.xlu0 0
      %2067 = vperm.xlu0 %2066, %v2059
      %v2068 = vpop.permute.xlu0 %2067
      %v2070 = vadd.f32 %v2056, %v2063
      %v2071 = vadd.f32 %v2057, %v2068
      %v2072 = vmax.f32 %v2070, 0.0
      %v2073 = vmax.f32 %v2071, 0.0
      %2074 = vst.msk [vmem:[#allocation7 + $0x8] sm:$0xff] %vm908, %v2072
      %2075 = vst.msk [vmem:[#allocation7 + $0x18] sm:$0xff] %vm908, %v2073
      %v2076 = vld [vmem:[%s13] sm:$0xff]
      %v2077 = vld [vmem:[%s13 + $0x8] sm:$0xff]
      %v2078 = vld [vmem:[#allocation7] sm:$0xff]
      %v2079 = vld [vmem:[#allocation7 + $0x8] sm:$0xff]
      %v2080 = vld [vmem:[#allocation7 + $0x10] sm:$0xff]
      %v2081 = vld [vmem:[#allocation7 + $0x18] sm:$0xff]
      %2084 = vrot.lane.b32.xlu0 %v2076, 112
      %v2085 = vpop.permute.xlu0 %2084
      %2086 = vrot.lane.b32.xlu0 %v2077, 112
      %v2087 = vpop.permute.xlu0 %2086
      %2092 = vrot.lane.b32.xlu0 %v2078, 4
      %v2093 = vpop.permute.xlu0 %2092
      %2094 = vrot.lane.b32.xlu0 %v2079, 4
      %v2095 = vpop.permute.xlu0 %2094
      %2096 = vrot.lane.b32.xlu0 %v2080, 4
      %v2097 = vpop.permute.xlu0 %2096
      %2098 = vrot.lane.b32.xlu0 %v2081, 4
      %v2099 = vpop.permute.xlu0 %2098
      %v2100 = vsel %vm663, %v2093, %v2095
      %v2101 = vsel %vm663, %v2097, %v2099
      %v2104 = vsel %vm908, %v2085, 0
      %v2106 = vsel %vm908, %v2087, 0
      %2108 = vmatprep.subr.mxu0 0.0
      %2109 = vmatpush1.msra.mxu0 %v2100
      %2110 = vmatprep.subr.mxu0 0.0
      %2111 = vmatpush1.msra.mxu0 %v2101
      %2112 = vmatprep.subr.mxu0 0.0
      %2113 = vmatpush1.msra.mxu0 0.0
      %2114 = vmatprep.subr.mxu0 0.0
      %2115 = vmatpush1.msra.mxu0 0.0
      %2116 = vmatprep.subr.mxu0 0.0
      %2117 = vmatpush1.msra.mxu0 0.0
      %2118 = vmatprep.subr.mxu0 0.0
      %2119 = vmatpush1.msra.mxu0 0.0
      %2120 = vmatprep.subr.mxu0 0.0
      %2121 = vmatpush1.msra.mxu0 0.0
      %2122 = vmatprep.subr.mxu0 0.0
      %2123 = vmatpush1.msra.mxu0 0.0
      %2124 = vmatprep.subr.mxu0 0.0
      %2125 = vmatpush1.msra.mxu0 0.0
      %2126 = vmatprep.subr.mxu0 0.0
      %2127 = vmatpush1.msra.mxu0 0.0
      %2128 = vmatprep.subr.mxu0 0.0
      %2129 = vmatpush1.msra.mxu0 0.0
      %2130 = vmatprep.subr.mxu0 0.0
      %2131 = vmatpush1.msra.mxu0 0.0
      %2132 = vmatprep.subr.mxu0 0.0
      %2133 = vmatpush1.msra.mxu0 0.0
      %2134 = vmatprep.subr.mxu0 0.0
      %2135 = vmatpush1.msra.mxu0 0.0
      %2136 = vmatprep.subr.mxu0 0.0
      %2137 = vmatpush1.msra.mxu0 0.0
      %2138 = vmatprep.subr.mxu0 0.0
      %2139 = vmatpush1.msra.mxu0 0.0
      %2140 = vmatprep.subr.mxu0 0.0
      %2141 = vmatpush1.msra.mxu0 0.0
      %2142 = vmatprep.subr.mxu0 0.0
      %2143 = vmatpush1.msra.mxu0 0.0
      %2144 = vmatprep.subr.mxu0 0.0
      %2145 = vmatpush1.msra.mxu0 0.0
      %2146 = vmatprep.subr.mxu0 0.0
      %2147 = vmatpush1.msra.mxu0 0.0
      %2148 = vmatprep.subr.mxu0 0.0
      %2149 = vmatpush1.msra.mxu0 0.0
      %2150 = vmatprep.subr.mxu0 0.0
      %2151 = vmatpush1.msra.mxu0 0.0
      %2152 = vmatprep.subr.mxu0 0.0
      %2153 = vmatpush1.msra.mxu0 0.0
      %2154 = vmatprep.subr.mxu0 0.0
      %2155 = vmatpush1.msra.mxu0 0.0
      %2156 = vmatprep.subr.mxu0 0.0
      %2157 = vmatpush1.msra.mxu0 0.0
      %2158 = vmatprep.subr.mxu0 0.0
      %2159 = vmatpush1.msra.mxu0 0.0
      %2160 = vmatprep.subr.mxu0 0.0
      %2161 = vmatpush1.msra.mxu0 0.0
      %2162 = vmatprep.subr.mxu0 0.0
      %2163 = vmatpush1.msra.mxu0 0.0
      %2164 = vmatprep.subr.mxu0 0.0
      %2165 = vmatpush1.msra.mxu0 0.0
      %2166 = vmatprep.subr.mxu0 0.0
      %2167 = vmatpush1.msra.mxu0 0.0
      %2168 = vmatprep.subr.mxu0 0.0
      %2169 = vmatpush1.msra.mxu0 0.0
      %2170 = vmatprep.subr.mxu0 0.0
      %2171 = vmatpush1.msra.mxu0 0.0
      %2172 = vmatprep.mubr.f32.mxu0 0.0
      %2173 = vmatmul.mubr.f32.gmra.mrb[0].mxu0 %v2104
      %v2174 = vpop.f32.mrb[0].mxu0
      %v2175 = vadd.f32 0.0, %v2174
      %v2176 = vpop.f32.mrb[0].mxu0
      %2177 = vmatprep.mubr.f32.mxu0 0.0
      %2178 = vmatmul.mubr.f32.gmra.mrb[0].mxu0 %v2106
      %v2179 = vpop.f32.mrb[0].mxu0
      %v2180 = vadd.f32 0.0, %v2179
      %v2181 = vpop.f32.mrb[0].mxu0
      %2182 = vdwg.mxu0
      %2183 = vrot.lane.b32.xlu0 %v2078, 8
      %v2184 = vpop.permute.xlu0 %2183
      %2185 = vrot.lane.b32.xlu0 %v2079, 8
      %v2186 = vpop.permute.xlu0 %2185
      %2187 = vrot.lane.b32.xlu0 %v2080, 8
      %v2188 = vpop.permute.xlu0 %2187
      %2189 = vrot.lane.b32.xlu0 %v2081, 8
      %v2190 = vpop.permute.xlu0 %2189
      %v2191 = vsel %vm924, %v2184, %v2186
      %v2192 = vsel %vm924, %v2188, %v2190
      %v2195 = vsel %vm908, %v2076, 0
      %v2197 = vsel %vm908, %v2077, 0
      %2199 = vmatprep.subr.mxu0 0.0
      %2200 = vmatpush1.msra.mxu0 %v2191
      %2201 = vmatprep.subr.mxu0 0.0
      %2202 = vmatpush1.msra.mxu0 %v2192
      %2203 = vmatprep.subr.mxu0 0.0
      %2204 = vmatpush1.msra.mxu0 0.0
      %2205 = vmatprep.subr.mxu0 0.0
      %2206 = vmatpush1.msra.mxu0 0.0
      %2207 = vmatprep.subr.mxu0 0.0
      %2208 = vmatpush1.msra.mxu0 0.0
      %2209 = vmatprep.subr.mxu0 0.0
      %2210 = vmatpush1.msra.mxu0 0.0
      %2211 = vmatprep.subr.mxu0 0.0
      %2212 = vmatpush1.msra.mxu0 0.0
      %2213 = vmatprep.subr.mxu0 0.0
      %2214 = vmatpush1.msra.mxu0 0.0
      %2215 = vmatprep.subr.mxu0 0.0
      %2216 = vmatpush1.msra.mxu0 0.0
      %2217 = vmatprep.subr.mxu0 0.0
      %2218 = vmatpush1.msra.mxu0 0.0
      %2219 = vmatprep.subr.mxu0 0.0
      %2220 = vmatpush1.msra.mxu0 0.0
      %2221 = vmatprep.subr.mxu0 0.0
      %2222 = vmatpush1.msra.mxu0 0.0
      %2223 = vmatprep.subr.mxu0 0.0
      %2224 = vmatpush1.msra.mxu0 0.0
      %2225 = vmatprep.subr.mxu0 0.0
      %2226 = vmatpush1.msra.mxu0 0.0
      %2227 = vmatprep.subr.mxu0 0.0
      %2228 = vmatpush1.msra.mxu0 0.0
      %2229 = vmatprep.subr.mxu0 0.0
      %2230 = vmatpush1.msra.mxu0 0.0
      %2231 = vmatprep.subr.mxu0 0.0
      %2232 = vmatpush1.msra.mxu0 0.0
      %2233 = vmatprep.subr.mxu0 0.0
      %2234 = vmatpush1.msra.mxu0 0.0
      %2235 = vmatprep.subr.mxu0 0.0
      %2236 = vmatpush1.msra.mxu0 0.0
      %2237 = vmatprep.subr.mxu0 0.0
      %2238 = vmatpush1.msra.mxu0 0.0
      %2239 = vmatprep.subr.mxu0 0.0
      %2240 = vmatpush1.msra.mxu0 0.0
      %2241 = vmatprep.subr.mxu0 0.0
      %2242 = vmatpush1.msra.mxu0 0.0
      %2243 = vmatprep.subr.mxu0 0.0
      %2244 = vmatpush1.msra.mxu0 0.0
      %2245 = vmatprep.subr.mxu0 0.0
      %2246 = vmatpush1.msra.mxu0 0.0
      %2247 = vmatprep.subr.mxu0 0.0
      %2248 = vmatpush1.msra.mxu0 0.0
      %2249 = vmatprep.subr.mxu0 0.0
      %2250 = vmatpush1.msra.mxu0 0.0
      %2251 = vmatprep.subr.mxu0 0.0
      %2252 = vmatpush1.msra.mxu0 0.0
      %2253 = vmatprep.subr.mxu0 0.0
      %2254 = vmatpush1.msra.mxu0 0.0
      %2255 = vmatprep.subr.mxu0 0.0
      %2256 = vmatpush1.msra.mxu0 0.0
      %2257 = vmatprep.subr.mxu0 0.0
      %2258 = vmatpush1.msra.mxu0 0.0
      %2259 = vmatprep.subr.mxu0 0.0
      %2260 = vmatpush1.msra.mxu0 0.0
      %2261 = vmatprep.subr.mxu0 0.0
      %2262 = vmatpush1.msra.mxu0 0.0
      %2263 = vmatprep.mubr.f32.mxu0 0.0
      %2264 = vmatmul.mubr.f32.gmra.mrb[0].mxu0 %v2195
      %v2265 = vpop.f32.mrb[0].mxu0
      %v2266 = vadd.f32 %v2175, %v2265
      %v2267 = vpop.f32.mrb[0].mxu0
      %2268 = vmatprep.mubr.f32.mxu0 0.0
      %2269 = vmatmul.mubr.f32.gmra.mrb[0].mxu0 %v2197
      %v2270 = vpop.f32.mrb[0].mxu0
      %v2271 = vadd.f32 %v2180, %v2270
      %v2272 = vpop.f32.mrb[0].mxu0
      %2273 = vdwg.mxu0
      %2274 = vrot.lane.b32.xlu0 %v2076, 96
      %v2275 = vpop.permute.xlu0 %2274
      %2276 = vrot.lane.b32.xlu0 %v2077, 96
      %v2277 = vpop.permute.xlu0 %2276
      %v2278 = vsel %vm908, %v2275, 0
      %v2280 = vsel %vm908, %v2277, 0
      %2282 = vmatprep.subr.mxu0 0.0
      %2283 = vmatpush1.msra.mxu0 %v2079
      %2284 = vmatprep.subr.mxu0 0.0
      %2285 = vmatpush1.msra.mxu0 %v2081
      %2286 = vmatprep.subr.mxu0 0.0
      %2287 = vmatpush1.msra.mxu0 0.0
      %2288 = vmatprep.subr.mxu0 0.0
      %2289 = vmatpush1.msra.mxu0 0.0
      %2290 = vmatprep.subr.mxu0 0.0
      %2291 = vmatpush1.msra.mxu0 0.0
      %2292 = vmatprep.subr.mxu0 0.0
      %2293 = vmatpush1.msra.mxu0 0.0
      %2294 = vmatprep.subr.mxu0 0.0
      %2295 = vmatpush1.msra.mxu0 0.0
      %2296 = vmatprep.subr.mxu0 0.0
      %2297 = vmatpush1.msra.mxu0 0.0
      %2298 = vmatprep.subr.mxu0 0.0
      %2299 = vmatpush1.msra.mxu0 0.0
      %2300 = vmatprep.subr.mxu0 0.0
      %2301 = vmatpush1.msra.mxu0 0.0
      %2302 = vmatprep.subr.mxu0 0.0
      %2303 = vmatpush1.msra.mxu0 0.0
      %2304 = vmatprep.subr.mxu0 0.0
      %2305 = vmatpush1.msra.mxu0 0.0
      %2306 = vmatprep.subr.mxu0 0.0
      %2307 = vmatpush1.msra.mxu0 0.0
      %2308 = vmatprep.subr.mxu0 0.0
      %2309 = vmatpush1.msra.mxu0 0.0
      %2310 = vmatprep.subr.mxu0 0.0
      %2311 = vmatpush1.msra.mxu0 0.0
      %2312 = vmatprep.subr.mxu0 0.0
      %2313 = vmatpush1.msra.mxu0 0.0
      %2314 = vmatprep.subr.mxu0 0.0
      %2315 = vmatpush1.msra.mxu0 0.0
      %2316 = vmatprep.subr.mxu0 0.0
      %2317 = vmatpush1.msra.mxu0 0.0
      %2318 = vmatprep.subr.mxu0 0.0
      %2319 = vmatpush1.msra.mxu0 0.0
      %2320 = vmatprep.subr.mxu0 0.0
      %2321 = vmatpush1.msra.mxu0 0.0
      %2322 = vmatprep.subr.mxu0 0.0
      %2323 = vmatpush1.msra.mxu0 0.0
      %2324 = vmatprep.subr.mxu0 0.0
      %2325 = vmatpush1.msra.mxu0 0.0
      %2326 = vmatprep.subr.mxu0 0.0
      %2327 = vmatpush1.msra.mxu0 0.0
      %2328 = vmatprep.subr.mxu0 0.0
      %2329 = vmatpush1.msra.mxu0 0.0
      %2330 = vmatprep.subr.mxu0 0.0
      %2331 = vmatpush1.msra.mxu0 0.0
      %2332 = vmatprep.subr.mxu0 0.0
      %2333 = vmatpush1.msra.mxu0 0.0
      %2334 = vmatprep.subr.mxu0 0.0
      %2335 = vmatpush1.msra.mxu0 0.0
      %2336 = vmatprep.subr.mxu0 0.0
      %2337 = vmatpush1.msra.mxu0 0.0
      %2338 = vmatprep.subr.mxu0 0.0
      %2339 = vmatpush1.msra.mxu0 0.0
      %2340 = vmatprep.subr.mxu0 0.0
      %2341 = vmatpush1.msra.mxu0 0.0
      %2342 = vmatprep.subr.mxu0 0.0
      %2343 = vmatpush1.msra.mxu0 0.0
      %2344 = vmatprep.subr.mxu0 0.0
      %2345 = vmatpush1.msra.mxu0 0.0
      %2346 = vmatprep.mubr.f32.mxu0 0.0
      %2347 = vmatmul.mubr.f32.gmra.mrb[0].mxu0 %v2278
      %v2348 = vpop.f32.mrb[0].mxu0
      %v2349 = vadd.f32 0.0, %v2348
      %v2350 = vpop.f32.mrb[0].mxu0
      %2351 = vmatprep.mubr.f32.mxu0 0.0
      %2352 = vmatmul.mubr.f32.gmra.mrb[0].mxu0 %v2280
      %v2353 = vpop.f32.mrb[0].mxu0
      %v2354 = vadd.f32 0.0, %v2353
      %v2355 = vpop.f32.mrb[0].mxu0
      %2356 = vdwg.mxu0
      %v2357 = vadd.f32 %v2266, %v2349
      %v2358 = vadd.f32 %v2271, %v2354
      %v2359 = vld [vmem:[%s14] sm:$0xff]
      %v2360 = vld [vmem:[%s14 + $0x8] sm:$0xff]
      %2362 = vset.pattern.permute.xlu0 0
      %2363 = vperm.xlu0 %2362, %v2359
      %v2364 = vpop.permute.xlu0 %2363
      %2367 = vset.pattern.permute.xlu0 0
      %2368 = vperm.xlu0 %2367, %v2360
      %v2369 = vpop.permute.xlu0 %2368
      %v2371 = vadd.f32 %v2357, %v2364
      %v2372 = vadd.f32 %v2358, %v2369
      %v2373 = vld [vmem:[%s15] sm:$0xff]
      %v2374 = vld [vmem:[%s15 + $0x8] sm:$0xff]
      %v2375 = vld [vmem:[%s16] sm:$0xff]
      %v2376 = vld [vmem:[%s16 + $0x8] sm:$0xff]
      %2378 = vset.pattern.permute.xlu0 0
      %2379 = vperm.xlu0 %2378, %v2375
      %v2380 = vpop.permute.xlu0 %2379
      %2383 = vset.pattern.permute.xlu0 0
      %2384 = vperm.xlu0 %2383, %v2376
      %v2385 = vpop.permute.xlu0 %2384
      %v2388 = vsel %vm924, %v2373, 0
      %v2391 = vsel %vm924, %v2374, 0
      %2393 = vmatprep.subr.mxu0 0.0
      %2394 = vmatpush1.msra.mxu0 %v1760
      %2395 = vmatprep.subr.mxu0 0.0
      %2396 = vmatpush1.msra.mxu0 0.0
      %2397 = vmatprep.subr.mxu0 0.0
      %2398 = vmatpush1.msra.mxu0 0.0
      %2399 = vmatprep.subr.mxu0 0.0
      %2400 = vmatpush1.msra.mxu0 0.0
      %2401 = vmatprep.subr.mxu0 0.0
      %2402 = vmatpush1.msra.mxu0 0.0
      %2403 = vmatprep.subr.mxu0 0.0
      %2404 = vmatpush1.msra.mxu0 0.0
      %2405 = vmatprep.subr.mxu0 0.0
      %2406 = vmatpush1.msra.mxu0 0.0
      %2407 = vmatprep.subr.mxu0 0.0
      %2408 = vmatpush1.msra.mxu0 0.0
      %2409 = vmatprep.subr.mxu0 0.0
      %2410 = vmatpush1.msra.mxu0 0.0
      %2411 = vmatprep.subr.mxu0 0.0
      %2412 = vmatpush1.msra.mxu0 0.0
      %2413 = vmatprep.subr.mxu0 0.0
      %2414 = vmatpush1.msra.mxu0 0.0
      %2415 = vmatprep.subr.mxu0 0.0
      %2416 = vmatpush1.msra.mxu0 0.0
      %2417 = vmatprep.subr.mxu0 0.0
      %2418 = vmatpush1.msra.mxu0 0.0
      %2419 = vmatprep.subr.mxu0 0.0
      %2420 = vmatpush1.msra.mxu0 0.0
      %2421 = vmatprep.subr.mxu0 0.0
      %2422 = vmatpush1.msra.mxu0 0.0
      %2423 = vmatprep.subr.mxu0 0.0
      %2424 = vmatpush1.msra.mxu0 0.0
      %2425 = vmatprep.subr.mxu0 0.0
      %2426 = vmatpush1.msra.mxu0 0.0
      %2427 = vmatprep.subr.mxu0 0.0
      %2428 = vmatpush1.msra.mxu0 0.0
      %2429 = vmatprep.subr.mxu0 0.0
      %2430 = vmatpush1.msra.mxu0 0.0
      %2431 = vmatprep.subr.mxu0 0.0
      %2432 = vmatpush1.msra.mxu0 0.0
      %2433 = vmatprep.subr.mxu0 0.0
      %2434 = vmatpush1.msra.mxu0 0.0
      %2435 = vmatprep.subr.mxu0 0.0
      %2436 = vmatpush1.msra.mxu0 0.0
      %2437 = vmatprep.subr.mxu0 0.0
      %2438 = vmatpush1.msra.mxu0 0.0
      %2439 = vmatprep.subr.mxu0 0.0
      %2440 = vmatpush1.msra.mxu0 0.0
      %2441 = vmatprep.subr.mxu0 0.0
      %2442 = vmatpush1.msra.mxu0 0.0
      %2443 = vmatprep.subr.mxu0 0.0
      %2444 = vmatpush1.msra.mxu0 0.0
      %2445 = vmatprep.subr.mxu0 0.0
      %2446 = vmatpush1.msra.mxu0 0.0
      %2447 = vmatprep.subr.mxu0 0.0
      %2448 = vmatpush1.msra.mxu0 0.0
      %2449 = vmatprep.subr.mxu0 0.0
      %2450 = vmatpush1.msra.mxu0 0.0
      %2451 = vmatprep.subr.mxu0 0.0
      %2452 = vmatpush1.msra.mxu0 0.0
      %2453 = vmatprep.subr.mxu0 0.0
      %2454 = vmatpush1.msra.mxu0 0.0
      %2455 = vmatprep.subr.mxu0 0.0
      %2456 = vmatpush1.msra.mxu0 0.0
      %2457 = vmatprep.mubr.f32.mxu0 0.0
      %2458 = vmatmul.mubr.f32.gmra.mrb[0].mxu0 %v2388
      %v2459 = vpop.f32.mrb[0].mxu0
      %v2460 = vadd.f32 %v2380, %v2459
      %v2461 = vpop.f32.mrb[0].mxu0
      %2462 = vmatprep.mubr.f32.mxu0 0.0
      %2463 = vmatmul.mubr.f32.gmra.mrb[0].mxu0 %v2391
      %v2464 = vpop.f32.mrb[0].mxu0
      %v2465 = vadd.f32 %v2385, %v2464
      %v2466 = vpop.f32.mrb[0].mxu0
      %2467 = vdwg.mxu0
      %v2468 = vadd.f32 %v2371, %v2460
      %v2469 = vadd.f32 %v2372, %v2465
      %v2470 = vmax.f32 %v2468, 0.0
      %v2471 = vmax.f32 %v2469, 0.0
      // Predicated region
      $region121: #{audio_tcn_forward.1} parent=95 // pred_check
        %p2472 = pneg %p622
      $region122: #{audio_tcn_forward.1} parent=95 // pred_check_branch
        %2474 = sbr.rel (%p2472) target = $region124
      $region123: #{audio_tcn_forward.1} parent=95 // pred_region
        %2475 = vst.msk [vmem:[#allocation8] sm:$0xff] %vm661, 0.0
        %2476 = vst.msk [vmem:[#allocation8 + $0x8] sm:$0xff] %vm661, 0.0
      $region124: #{audio_tcn_forward.1} parent=95 // pred_fallthru
        _
      %v2477 = vld [vmem:[#allocation8] sm:$0xff]
      %v2478 = vld [vmem:[#allocation8 + $0x8] sm:$0xff]
      %v2479 = vsel %vm908, %v2470, 0.0
      %2480 = vadd.xlane.f32.xlu0 %v2479
      %v2481 = vpop.xlane.xlu0 %2480
      %v2482 = vsel %vm908, %v2471, 0.0
      %2483 = vadd.xlane.f32.xlu0 %v2482
      %v2484 = vpop.xlane.xlu0 %2483
      %v2485 = vadd.f32 %v2477, %v2481
      %v2486 = vadd.f32 %v2478, %v2484
      %2487 = vst.msk [vmem:[#allocation8] sm:$0xff] %vm661, %v2485
      %2488 = vst.msk [vmem:[#allocation8 + $0x8] sm:$0xff] %vm661, %v2486
      // Predicated region
      $region125: #{audio_tcn_forward.1} parent=95 // pred_check
        %p2489 = pneg %p622
      $region126: #{audio_tcn_forward.1} parent=95 // pred_check_branch
        %2491 = sbr.rel (%p2489) target = $region128
      $region127: #{audio_tcn_forward.1} parent=95 // pred_region
        %v2492 = vld [vmem:[#allocation8] sm:$0xff]
        %v2493 = vld [vmem:[#allocation8 + $0x8] sm:$0xff]
        %v2494 = vmul.f32 %v2492, 0.0625
        %v2495 = vmul.f32 %v2493, 0.0625
        %v2496 = vld [vmem:[%s17] sm:$0x1f]
        %v2497 = vld [vmem:[%s18] sm:$0x1f]
        %v2499 = vsel %vm908, %v2496, 0
        %2501 = vmatprep.subr.mxu0 0.0
        %2502 = vmatpush1.msra.mxu0 %v2494
        %2503 = vmatprep.subr.mxu0 0.0
        %2504 = vmatpush1.msra.mxu0 %v2495
        %2505 = vmatprep.subr.mxu0 0.0
        %2506 = vmatpush1.msra.mxu0 0.0
        %2507 = vmatprep.subr.mxu0 0.0
        %2508 = vmatpush1.msra.mxu0 0.0
        %2509 = vmatprep.subr.mxu0 0.0
        %2510 = vmatpush1.msra.mxu0 0.0
        %2511 = vmatprep.subr.mxu0 0.0
        %2512 = vmatpush1.msra.mxu0 0.0
        %2513 = vmatprep.subr.mxu0 0.0
        %2514 = vmatpush1.msra.mxu0 0.0
        %2515 = vmatprep.subr.mxu0 0.0
        %2516 = vmatpush1.msra.mxu0 0.0
        %2517 = vmatprep.subr.mxu0 0.0
        %2518 = vmatpush1.msra.mxu0 0.0
        %2519 = vmatprep.subr.mxu0 0.0
        %2520 = vmatpush1.msra.mxu0 0.0
        %2521 = vmatprep.subr.mxu0 0.0
        %2522 = vmatpush1.msra.mxu0 0.0
        %2523 = vmatprep.subr.mxu0 0.0
        %2524 = vmatpush1.msra.mxu0 0.0
        %2525 = vmatprep.subr.mxu0 0.0
        %2526 = vmatpush1.msra.mxu0 0.0
        %2527 = vmatprep.subr.mxu0 0.0
        %2528 = vmatpush1.msra.mxu0 0.0
        %2529 = vmatprep.subr.mxu0 0.0
        %2530 = vmatpush1.msra.mxu0 0.0
        %2531 = vmatprep.subr.mxu0 0.0
        %2532 = vmatpush1.msra.mxu0 0.0
        %2533 = vmatprep.subr.mxu0 0.0
        %2534 = vmatpush1.msra.mxu0 0.0
        %2535 = vmatprep.subr.mxu0 0.0
        %2536 = vmatpush1.msra.mxu0 0.0
        %2537 = vmatprep.subr.mxu0 0.0
        %2538 = vmatpush1.msra.mxu0 0.0
        %2539 = vmatprep.subr.mxu0 0.0
        %2540 = vmatpush1.msra.mxu0 0.0
        %2541 = vmatprep.subr.mxu0 0.0
        %2542 = vmatpush1.msra.mxu0 0.0
        %2543 = vmatprep.subr.mxu0 0.0
        %2544 = vmatpush1.msra.mxu0 0.0
        %2545 = vmatprep.subr.mxu0 0.0
        %2546 = vmatpush1.msra.mxu0 0.0
        %2547 = vmatprep.subr.mxu0 0.0
        %2548 = vmatpush1.msra.mxu0 0.0
        %2549 = vmatprep.subr.mxu0 0.0
        %2550 = vmatpush1.msra.mxu0 0.0
        %2551 = vmatprep.subr.mxu0 0.0
        %2552 = vmatpush1.msra.mxu0 0.0
        %2553 = vmatprep.subr.mxu0 0.0
        %2554 = vmatpush1.msra.mxu0 0.0
        %2555 = vmatprep.subr.mxu0 0.0
        %2556 = vmatpush1.msra.mxu0 0.0
        %2557 = vmatprep.subr.mxu0 0.0
        %2558 = vmatpush1.msra.mxu0 0.0
        %2559 = vmatprep.subr.mxu0 0.0
        %2560 = vmatpush1.msra.mxu0 0.0
        %2561 = vmatprep.subr.mxu0 0.0
        %2562 = vmatpush1.msra.mxu0 0.0
        %2563 = vmatprep.subr.mxu0 0.0
        %2564 = vmatpush1.msra.mxu0 0.0
        %2565 = vmatprep.mubr.f32.mxu0 0.0
        %2566 = vmatmul.mubr.f32.gmra.mrb[0].mxu0 %v2499
        %v2567 = vpop.f32.mrb[0].mxu0
        %v2568 = vadd.f32 %v2497, %v2567
        %v2569 = vpop.f32.mrb[0].mxu0
        %2570 = vdwg.mxu0
        %vm2571 = vcmask 4096
        %2572 = vst.msk [vmem:[%s620] sm:$0x1f] %vm2571, %v2568
      $region128: #{audio_tcn_forward.1} parent=95 // pred_fallthru
        _
      %p2573 = scmp.lt.s32.totalorder %s34, 1
      %s2574 = scalar_select %p2573, %s34, 1
      %s2575 = smul.addr %s2574, 8
      %s2576 = scalar_lea.vmem %s19, %s2575
      // Predicated region
      $region129: #{audio_tcn_forward.1} parent=95 // pred_check
        %p2577 = pneg %p466
      $region130: #{audio_tcn_forward.1} parent=95 // pred_check_branch
        %2579 = sbr.rel (%p2577) target = $region132
      $region131: #{audio_tcn_forward.1} parent=95 // pred_region
        _
      $region132: #{audio_tcn_forward.1} parent=95 // pred_fallthru
        _
    $region96: #{audio_tcn_forward.1} parent=5 // pred_fallthru
      _
    %p2580 = scmp.le.s32.totalorder 2, %s25
    // Predicated region
    $region133: #{audio_tcn_forward.1} parent=5 // pred_check
      %p2581 = pneg %p2580
    $region134: #{audio_tcn_forward.1} parent=5 // pred_check_branch
      %2583 = sbr.rel (%p2581) target = $region136
    $region135: #{audio_tcn_forward.1} parent=5 // pred_region
      %s2584 = ssub.s32 %s25, 2
      // Predicated region
      $region137: #{audio_tcn_forward.1} parent=135 // pred_check
        %p2585 = pneg %p472
      $region138: #{audio_tcn_forward.1} parent=135 // pred_check_branch
        %2587 = sbr.rel (%p2585) target = $region140
      $region139: #{audio_tcn_forward.1} parent=135 // pred_region
        %p2588 = scmp.lt.s32.totalorder %s36, 1
        %s2589 = scalar_select %p2588, %s36, 1
        %s2590 = smul.addr %s2589, 8
        %s2591 = scalar_lea.vmem %s19, %s2590
      $region140: #{audio_tcn_forward.1} parent=135 // pred_fallthru
        _
    $region136: #{audio_tcn_forward.1} parent=5 // pred_fallthru
      _
  $region6: #{audio_tcn_forward.1} parent=0 // loop_footer
    %s29 = sadd.s32 1, %s25
  $region7: #{audio_tcn_forward.1} parent=0 // loop_footer_branch
    %24 = sbr.rel target = $region3
  $region8: #{audio_tcn_forward.1} parent=0 // loop_exit
    _

</llo_original>
